<compile_context>
chip_gen: v5e
topology: v5e:2x2
jax: 0.10.0
libtpu: 0.0.40
codegen_flags: <defaults>
</compile_context>

<pallas_src>
import functools
import math

import numpy as np
import jax
import jax.numpy as jnp
from jax.experimental import pallas as pl
from jax.experimental.pallas import tpu as pltpu


# --------------------------- weight packing (init-time) ---------------------

def _banded_conv_weight(w, length, in_spatial_major):
    """Pack a PyTorch Conv1d weight (O, Cin, K) (stride 1, 'same' padding)
    into a banded matmul weight of shape (Cin*length, length*O).

    Row layout (input features of one window):
        in_spatial_major=False -> idx = c*length + s  (raw input, channel-major)
        in_spatial_major=True  -> idx = s*Cin  + c    (pooled conv activations)
    Column layout (conv output): [all even positions | all odd positions],
    spatial-major inside each half (col = pos*O + o).  MaxPool1d(2) then
    becomes an element-wise max of the two 128-aligned halves.
    """
    O, Cin, K = w.shape
    pad = K // 2
    half = (length // 2) * O
    w_np = np.asarray(w, dtype=np.float32)
    Wb = np.zeros((Cin * length, length * O), np.float32)
    for s_out in range(length):
        col0 = (half if (s_out % 2) else 0) + (s_out // 2) * O
        for k in range(K):
            s_in = s_out + k - pad
            if not (0 <= s_in < length):
                continue                                # zero-padding tap
            for c in range(Cin):
                row = s_in * Cin + c if in_spatial_major else c * length + s_in
                Wb[row, col0:col0 + O] = w_np[:, c, k]
    return jnp.asarray(Wb)


# ------------------------------- fused kernel -------------------------------

def _fused_forward_kernel(
        x_ref, pos_ref,
        w1_ref, b1_ref, w2_ref, b2_ref, wp_ref, pb_ref,
        wqkv_ref, bqkv_ref, wo_ref, bo_ref,
        wf1_ref, bf1_ref, wf2_ref, bf2_ref,
        g1_ref, n1b_ref, g2_ref, n2b_ref,
        gc_ref, bc_ref, wc_ref, cb_ref,
        o_ref,
        *, batch_tile, seq_len, nhead, num_layers, eps, per_window):
    """CNN -> input_proj(+pos) -> num_layers encoder layers -> classifier,
    for one batch tile of `batch_tile` elements (batch_tile*seq_len rows)."""
    Bt, T = batch_tile, seq_len
    R = Bt * T

    def layer_norm(v, g, b):
        mu = jnp.mean(v, axis=-1, keepdims=True)
        var = jnp.mean((v - mu) ** 2, axis=-1, keepdims=True)
        return (v - mu) * jax.lax.rsqrt(var + eps) * g + b

    # ---- CNN front-end: two banded matmuls + pairwise-max pooling ---------
    x = x_ref[...].reshape(R, x_ref.shape[-1])                 # (R, C*S) f32
    y1 = jnp.dot(x, w1_ref[...], preferred_element_type=jnp.float32)
    y1 = jnp.maximum(y1 + b1_ref[...], 0.0)                    # (R, S*O1)
    half1 = y1.shape[-1] // 2
    p1 = jnp.maximum(y1[:, :half1], y1[:, half1:])             # (R, L2*O1)

    y2 = jnp.dot(p1, w2_ref[...], preferred_element_type=jnp.float32)
    y2 = jnp.maximum(y2 + b2_ref[...], 0.0)                    # (R, L2*O2)
    half2 = y2.shape[-1] // 2
    p2 = jnp.maximum(y2[:, :half2], y2[:, half2:])             # (R, L4*O2)

    # flatten + input_proj as one K = L4*O2 matmul, then bias + pos embedding
    tok = jnp.dot(p2.astype(jnp.bfloat16), wp_ref[...],
                  preferred_element_type=jnp.float32) + pb_ref[...]
    D = tok.shape[-1]
    tok = (tok.reshape(Bt, T, D) + pos_ref[...][None]).reshape(R, D)

    # ---- transformer encoder (post-norm, ReLU FFN) -------------------------
    Dh = D // nhead
    scale = 1.0 / math.sqrt(Dh)
    for li in range(num_layers):
        wqkv_l = wqkv_ref[li]
        wo_l = wo_ref[li]

        qkv = jnp.dot(tok.astype(jnp.bfloat16), wqkv_l,
                      preferred_element_type=jnp.float32) + bqkv_ref[li]
        qkv = qkv.astype(jnp.bfloat16)                         # cast ONCE
        q = qkv[:, 0 * D:1 * D].reshape(Bt, T, D)
        k = qkv[:, 1 * D:2 * D].reshape(Bt, T, D)
        v = qkv[:, 2 * D:3 * D].reshape(Bt, T, D)

        attn = jnp.zeros((R, D), jnp.float32)
        for h in range(nhead):
            lo, hi = h * Dh, (h + 1) * Dh
            s = jnp.einsum("bqd,bkd->bqk", q[:, :, lo:hi], k[:, :, lo:hi],
                           preferred_element_type=jnp.float32) * scale
            s = s - jnp.max(s, axis=-1, keepdims=True)
            p = jnp.exp(s)
            # approx reciprocal (EUP) ~2^-12 rel error vs exact division.
            p = p * pl.reciprocal(jnp.sum(p, axis=-1, keepdims=True),
                                  approx=True)
            oh = jnp.einsum("bqk,bkd->bqd", p.astype(jnp.bfloat16),
                            v[:, :, lo:hi],
                            preferred_element_type=jnp.float32)   # (Bt,T,Dh)
            # out-projection accumulated per head -> no head concat needed.
            attn = attn + jnp.dot(oh.reshape(R, Dh).astype(jnp.bfloat16),
                                  wo_l[lo:hi, :],
                                  preferred_element_type=jnp.float32)
        attn = attn + bo_ref[li]

        h1 = layer_norm(tok + attn, g1_ref[li], n1b_ref[li])

        f = jnp.dot(h1.astype(jnp.bfloat16), wf1_ref[li],
                    preferred_element_type=jnp.float32) + bf1_ref[li]
        f = jnp.maximum(f, 0.0)
        f = jnp.dot(f.astype(jnp.bfloat16), wf2_ref[li],
                    preferred_element_type=jnp.float32) + bf2_ref[li]
        tok = layer_norm(h1 + f, g2_ref[li], n2b_ref[li])

    # ---- classifier head ----------------------------------------------------
    if per_window:
        z = layer_norm(tok, gc_ref[...], bc_ref[...])
        logits = jnp.dot(z.astype(jnp.bfloat16), wc_ref[...],
                         preferred_element_type=jnp.float32) + cb_ref[...]
        o_ref[...] = logits.reshape(Bt, T, -1)
    else:
        pooled = jnp.mean(tok.reshape(Bt, T, D), axis=1)        # (Bt, D)
        z = layer_norm(pooled, gc_ref[...], bc_ref[...])
        o_ref[...] = jnp.dot(z.astype(jnp.bfloat16), wc_ref[...],
                             preferred_element_type=jnp.float32) + cb_ref[...]


# ------------------------------- call wrapper --------------------------------

_PARAM_ORDER = (
    "conv1_w", "conv1_b", "conv2_w", "conv2_b", "proj_w", "proj_b",
    "wqkv", "bqkv", "wo", "bo", "lin1_w", "lin1_b", "lin2_w", "lin2_b",
    "norm1_g", "norm1_b", "norm2_g", "norm2_b",
    "cls_norm_g", "cls_norm_b", "cls_w", "cls_b")


def _pick_batch_tile(B, T, target_rows=256):
    """Largest divisor of B with Bt*T <= target_rows (>=1).  Packs rows into
    the matmul M dimension; with larger batches this also leaves >=2 parallel
    grid steps so both v7x TensorCores get work."""
    best = 1
    for bt in range(1, B + 1):
        if B % bt == 0 and bt * T <= target_rows:
            best = bt
    return best


def forward(params, x, *, nhead=4, num_classes=2, per_window=False, eps=1e-5):
    B, T, C, S = x.shape
    pos_table = params["pos_emb"]
    if T > pos_table.shape[1]:
        raise ValueError(f"T={T} exceeds positional-embedding table size "
                         f"{pos_table.shape[1]}")
    D = pos_table.shape[-1]
    NCp = params["cls_w"].shape[-1]
    num_layers = params["wqkv"].shape[0]

    Bt = _pick_batch_tile(B, T)
    grid = (B // Bt,)

    # Pure reshape (no transpose): banded conv1 weight expects channel-major
    # per-window features (idx = c*S + s), which is the natural flatten.
    x2 = x.reshape(B, T, C * S)
    pos = pos_table[0, :T, :]                                   # (T, D)

    def full(arr):
        return pl.BlockSpec(arr.shape, lambda b, _n=arr.ndim: (0,) * _n)

    in_specs = [
        pl.BlockSpec((Bt, T, C * S), lambda b: (b, 0, 0)),
        pl.BlockSpec((T, D), lambda b: (0, 0)),
    ] + [full(params[k]) for k in _PARAM_ORDER]
    args = (x2, pos) + tuple(params[k] for k in _PARAM_ORDER)

    if per_window:
        out_shape = jax.ShapeDtypeStruct((B, T, NCp), jnp.float32)
        out_specs = pl.BlockSpec((Bt, T, NCp), lambda b: (b, 0, 0))
    else:
        out_shape = jax.ShapeDtypeStruct((B, NCp), jnp.float32)
        out_specs = pl.BlockSpec((Bt, NCp), lambda b: (b, 0))

    kernel = functools.partial(
        _fused_forward_kernel, batch_tile=Bt, seq_len=T, nhead=nhead,
        num_layers=num_layers, eps=eps, per_window=per_window)

    out = pl.pallas_call(
        kernel,
        grid=grid,
        in_specs=in_specs,
        out_specs=out_specs,
        out_shape=out_shape,
        compiler_params=pltpu.CompilerParams(
            dimension_semantics=("parallel",)),
    )(*args)

    if per_window:
        return out[:, :, :num_classes]                          # (B, T, NC)
    return out[:, :num_classes]                                 # (B, NC)


# --------------------------------- parameters --------------------------------

def init_params(key, num_channels, input_length, num_classes=2,
                cnn_hidden=(32, 64), d_model=128, nhead=4, num_layers=2,
                d_ff=256, max_windows=4000):
    assert input_length % 4 == 0, "input_length must be divisible by 4"
    keys = jax.random.split(key, 16 + 8 * num_layers)
    ki = iter(keys)

    def rn(shape, scale):
        return scale * jax.random.normal(next(ki), shape, dtype=jnp.float32)

    O1, O2 = cnn_hidden
    K1, K2 = 5, 3
    L2 = input_length // 2
    L4 = L2 // 2
    cnn_out_dim = O2 * L4
    nc_pad = pl.cdiv(num_classes, 128) * 128

    # ---- PyTorch-layout weights (what a state_dict would hold) ----
    conv1_w = rn((O1, num_channels, K1), 0.1)       # Conv1d: (out, in, k)
    conv1_b = rn((O1,), 0.1)
    conv2_w = rn((O2, O1, K2), 0.1)
    conv2_b = rn((O2,), 0.1)
    proj_w = rn((d_model, cnn_out_dim), 0.05)       # Linear: (out, in)
    proj_b = rn((d_model,), 0.05)
    pos_emb = rn((1, max_windows, d_model), 0.02)
    cls_w = rn((num_classes, d_model), 0.05)
    cls_b = rn((num_classes,), 0.05)

    # ---- pack ONCE for the kernel (no per-forward transposes) ----
    p = {
        # banded conv weights: one lane-dense matmul per conv; output columns
        # packed [even | odd] so MaxPool2 = max of two 128-aligned halves.
        "conv1_w": _banded_conv_weight(conv1_w, input_length,
                                       in_spatial_major=False),
        "conv1_b": jnp.tile(conv1_b, input_length).reshape(1, input_length * O1),
        "conv2_w": _banded_conv_weight(conv2_w, L2, in_spatial_major=True),
        "conv2_b": jnp.tile(conv2_b, L2).reshape(1, L2 * O2),
        # PyTorch flatten is channel-major (idx = o2*L4 + l); our pooled conv2
        # activation is spatial-major (idx = l*O2 + o2) -> permute proj rows.
        "proj_w": proj_w.T.reshape(O2, L4, d_model).transpose(1, 0, 2)
                        .reshape(L4 * O2, d_model).astype(jnp.bfloat16),
        "proj_b": proj_b.reshape(1, d_model),
        "pos_emb": pos_emb,
        "cls_norm_g": jnp.ones((1, d_model), jnp.float32),
        "cls_norm_b": jnp.zeros((1, d_model), jnp.float32),
        # classifier padded to a 128-lane-dense output (sliced in the wrapper)
        "cls_w": jnp.zeros((d_model, nc_pad), jnp.float32)
                    .at[:, :num_classes].set(cls_w.T).astype(jnp.bfloat16),
        "cls_b": jnp.zeros((1, nc_pad), jnp.float32)
                    .at[0, :num_classes].set(cls_b),
    }

    # ---- encoder layers: stacked along a leading layer axis ----
    wqkv, bqkv, wo, bo = [], [], [], []
    wf1, bf1, wf2, bf2 = [], [], [], []
    g1, n1b, g2, n2b = [], [], [], []
    for _ in range(num_layers):
        in_proj_w = rn((3 * d_model, d_model), 0.05)
        in_proj_b = rn((3 * d_model,), 0.05)
        out_proj_w = rn((d_model, d_model), 0.05)
        out_proj_b = rn((d_model,), 0.05)
        lin1_w = rn((d_ff, d_model), 0.05)
        lin1_b = rn((d_ff,), 0.05)
        lin2_w = rn((d_model, d_ff), 0.05)
        lin2_b = rn((d_model,), 0.05)
        wqkv.append(in_proj_w.T.astype(jnp.bfloat16))           # (D, 3D)
        bqkv.append(in_proj_b.reshape(1, 3 * d_model))
        wo.append(out_proj_w.T.astype(jnp.bfloat16))            # (D, D)
        bo.append(out_proj_b.reshape(1, d_model))
        wf1.append(lin1_w.T.astype(jnp.bfloat16))               # (D, F)
        bf1.append(lin1_b.reshape(1, d_ff))
        wf2.append(lin2_w.T.astype(jnp.bfloat16))               # (F, D)
        bf2.append(lin2_b.reshape(1, d_model))
        g1.append(jnp.ones((1, d_model), jnp.float32))
        n1b.append(jnp.zeros((1, d_model), jnp.float32))
        g2.append(jnp.ones((1, d_model), jnp.float32))
        n2b.append(jnp.zeros((1, d_model), jnp.float32))

    p.update({
        "wqkv": jnp.stack(wqkv), "bqkv": jnp.stack(bqkv),
        "wo": jnp.stack(wo), "bo": jnp.stack(bo),
        "lin1_w": jnp.stack(wf1), "lin1_b": jnp.stack(bf1),
        "lin2_w": jnp.stack(wf2), "lin2_b": jnp.stack(bf2),
        "norm1_g": jnp.stack(g1), "norm1_b": jnp.stack(n1b),
        "norm2_g": jnp.stack(g2), "norm2_b": jnp.stack(n2b),
    })
    return p


# ------------------------------------ main -----------------------------------

if __name__ == "__main__":
    key = jax.random.PRNGKey(0)
    B, T, C, S = 2, 8, 4, 16        # batch, windows, channels, samples/window
    num_classes = 2

    pkey, xkey = jax.random.split(key)
    params = init_params(pkey, num_channels=C, input_length=S,
                         num_classes=num_classes)
    x = jax.random.normal(xkey, (B, T, C, S), dtype=jnp.float32)

    fwd = jax.jit(functools.partial(forward, nhead=4,
                                    num_classes=num_classes,
                                    per_window=False))
    out = jax.block_until_ready(fwd(params, x))
    assert out.shape == (B, num_classes), out.shape
    assert bool(jnp.all(jnp.isfinite(out)))
    print("KERNEL_OK")
</pallas_src>

<mosaic_0001>
module attributes {stable_mosaic.version = 11 : i64} {
  func.func @_fused_forward_kernel(%arg0: i32, %arg1: memref<2x8x64xf32, #tpu.memory_space<vmem>>, %arg2: memref<8x128xf32, #tpu.memory_space<vmem>>, %arg3: memref<64x512xf32, #tpu.memory_space<vmem>>, %arg4: memref<1x512xf32, #tpu.memory_space<vmem>>, %arg5: memref<256x512xf32, #tpu.memory_space<vmem>>, %arg6: memref<1x512xf32, #tpu.memory_space<vmem>>, %arg7: memref<256x128xbf16, #tpu.memory_space<vmem>>, %arg8: memref<1x128xf32, #tpu.memory_space<vmem>>, %arg9: memref<2x128x384xbf16, #tpu.memory_space<vmem>>, %arg10: memref<2x1x384xf32, #tpu.memory_space<vmem>>, %arg11: memref<2x128x128xbf16, #tpu.memory_space<vmem>>, %arg12: memref<2x1x128xf32, #tpu.memory_space<vmem>>, %arg13: memref<2x128x256xbf16, #tpu.memory_space<vmem>>, %arg14: memref<2x1x256xf32, #tpu.memory_space<vmem>>, %arg15: memref<2x256x128xbf16, #tpu.memory_space<vmem>>, %arg16: memref<2x1x128xf32, #tpu.memory_space<vmem>>, %arg17: memref<2x1x128xf32, #tpu.memory_space<vmem>>, %arg18: memref<2x1x128xf32, #tpu.memory_space<vmem>>, %arg19: memref<2x1x128xf32, #tpu.memory_space<vmem>>, %arg20: memref<2x1x128xf32, #tpu.memory_space<vmem>>, %arg21: memref<1x128xf32, #tpu.memory_space<vmem>>, %arg22: memref<1x128xf32, #tpu.memory_space<vmem>>, %arg23: memref<128x128xbf16, #tpu.memory_space<vmem>>, %arg24: memref<1x128xf32, #tpu.memory_space<vmem>>, %arg25: memref<2x128xf32, #tpu.memory_space<vmem>>) attributes {dimension_semantics = [#tpu.dimension_semantics<parallel>], iteration_bounds = array<i64: 1>, scalar_prefetch = 0 : i64, scratch_operands = 0 : i64, tpu.core_type = #tpu.core_type<tc>, window_params = [{transform_indices = @transform_0, window_bounds = array<i64: 2, 8, 64>}, {pipeline_mode = #tpu.pipeline_mode<synchronous>, transform_indices = @transform_1, window_bounds = array<i64: 8, 128>}, {pipeline_mode = #tpu.pipeline_mode<synchronous>, transform_indices = @transform_2, window_bounds = array<i64: 64, 512>}, {pipeline_mode = #tpu.pipeline_mode<synchronous>, transform_indices = @transform_3, window_bounds = array<i64: 1, 512>}, {pipeline_mode = #tpu.pipeline_mode<synchronous>, transform_indices = @transform_4, window_bounds = array<i64: 256, 512>}, {pipeline_mode = #tpu.pipeline_mode<synchronous>, transform_indices = @transform_5, window_bounds = array<i64: 1, 512>}, {pipeline_mode = #tpu.pipeline_mode<synchronous>, transform_indices = @transform_6, window_bounds = array<i64: 256, 128>}, {pipeline_mode = #tpu.pipeline_mode<synchronous>, transform_indices = @transform_7, window_bounds = array<i64: 1, 128>}, {pipeline_mode = #tpu.pipeline_mode<synchronous>, transform_indices = @transform_8, window_bounds = array<i64: 2, 128, 384>}, {pipeline_mode = #tpu.pipeline_mode<synchronous>, transform_indices = @transform_9, window_bounds = array<i64: 2, 1, 384>}, {pipeline_mode = #tpu.pipeline_mode<synchronous>, transform_indices = @transform_10, window_bounds = array<i64: 2, 128, 128>}, {pipeline_mode = #tpu.pipeline_mode<synchronous>, transform_indices = @transform_11, window_bounds = array<i64: 2, 1, 128>}, {pipeline_mode = #tpu.pipeline_mode<synchronous>, transform_indices = @transform_12, window_bounds = array<i64: 2, 128, 256>}, {pipeline_mode = #tpu.pipeline_mode<synchronous>, transform_indices = @transform_13, window_bounds = array<i64: 2, 1, 256>}, {pipeline_mode = #tpu.pipeline_mode<synchronous>, transform_indices = @transform_14, window_bounds = array<i64: 2, 256, 128>}, {pipeline_mode = #tpu.pipeline_mode<synchronous>, transform_indices = @transform_15, window_bounds = array<i64: 2, 1, 128>}, {pipeline_mode = #tpu.pipeline_mode<synchronous>, transform_indices = @transform_16, window_bounds = array<i64: 2, 1, 128>}, {pipeline_mode = #tpu.pipeline_mode<synchronous>, transform_indices = @transform_17, window_bounds = array<i64: 2, 1, 128>}, {pipeline_mode = #tpu.pipeline_mode<synchronous>, transform_indices = @transform_18, window_bounds = array<i64: 2, 1, 128>}, {pipeline_mode = #tpu.pipeline_mode<synchronous>, transform_indices = @transform_19, window_bounds = array<i64: 2, 1, 128>}, {pipeline_mode = #tpu.pipeline_mode<synchronous>, transform_indices = @transform_20, window_bounds = array<i64: 1, 128>}, {pipeline_mode = #tpu.pipeline_mode<synchronous>, transform_indices = @transform_21, window_bounds = array<i64: 1, 128>}, {pipeline_mode = #tpu.pipeline_mode<synchronous>, transform_indices = @transform_22, window_bounds = array<i64: 128, 128>}, {pipeline_mode = #tpu.pipeline_mode<synchronous>, transform_indices = @transform_23, window_bounds = array<i64: 1, 128>}, {transform_indices = @transform_24, window_bounds = array<i64: 2, 128>}]} {
    %c0 = arith.constant 0 : index
    %c0_0 = arith.constant 0 : index
    %c0_1 = arith.constant 0 : index
    %0 = vector.load %arg1[%c0, %c0_0, %c0_1] : memref<2x8x64xf32, #tpu.memory_space<vmem>>, vector<2x8x64xf32>
    %1 = vector.shape_cast %0 : vector<2x8x64xf32> to vector<16x64xf32>
    %c0_2 = arith.constant 0 : index
    %c0_3 = arith.constant 0 : index
    %2 = vector.load %arg3[%c0_2, %c0_3] : memref<64x512xf32, #tpu.memory_space<vmem>>, vector<64x512xf32>
    %cst = arith.constant dense<0.000000e+00> : vector<16x512xf32>
    %3 = tpu.matmul %1, %2, %cst {dimension_numbers = #tpu.dot_dimension_numbers<[1], [0], [0], [1], [0, 0, 1, 1], [], []>} : vector<16x64xf32>, vector<64x512xf32>, vector<16x512xf32> -> vector<16x512xf32>
    %c0_4 = arith.constant 0 : index
    %c0_5 = arith.constant 0 : index
    %4 = vector.load %arg4[%c0_4, %c0_5] : memref<1x512xf32, #tpu.memory_space<vmem>>, vector<1x512xf32>
    %5 = vector.broadcast %4 : vector<1x512xf32> to vector<16x512xf32>
    %6 = arith.addf %3, %5 : vector<16x512xf32>
    %cst_6 = arith.constant 0.000000e+00 : f32
    %7 = vector.broadcast %cst_6 : f32 to vector<16x512xf32>
    %8 = arith.maximumf %6, %7 : vector<16x512xf32>
    %9 = vector.extract_strided_slice %8 {offsets = [0, 0], sizes = [16, 256], strides = [1, 1]} : vector<16x512xf32> to vector<16x256xf32>
    %10 = vector.extract_strided_slice %8 {offsets = [0, 256], sizes = [16, 256], strides = [1, 1]} : vector<16x512xf32> to vector<16x256xf32>
    %11 = arith.maximumf %9, %10 : vector<16x256xf32>
    %c0_7 = arith.constant 0 : index
    %c0_8 = arith.constant 0 : index
    %12 = vector.load %arg5[%c0_7, %c0_8] : memref<256x512xf32, #tpu.memory_space<vmem>>, vector<256x512xf32>
    %cst_9 = arith.constant dense<0.000000e+00> : vector<16x512xf32>
    %13 = tpu.matmul %11, %12, %cst_9 {dimension_numbers = #tpu.dot_dimension_numbers<[1], [0], [0], [1], [0, 0, 1, 1], [], []>} : vector<16x256xf32>, vector<256x512xf32>, vector<16x512xf32> -> vector<16x512xf32>
    %c0_10 = arith.constant 0 : index
    %c0_11 = arith.constant 0 : index
    %14 = vector.load %arg6[%c0_10, %c0_11] : memref<1x512xf32, #tpu.memory_space<vmem>>, vector<1x512xf32>
    %15 = vector.broadcast %14 : vector<1x512xf32> to vector<16x512xf32>
    %16 = arith.addf %13, %15 : vector<16x512xf32>
    %cst_12 = arith.constant 0.000000e+00 : f32
    %17 = vector.broadcast %cst_12 : f32 to vector<16x512xf32>
    %18 = arith.maximumf %16, %17 : vector<16x512xf32>
    %19 = vector.extract_strided_slice %18 {offsets = [0, 0], sizes = [16, 256], strides = [1, 1]} : vector<16x512xf32> to vector<16x256xf32>
    %20 = vector.extract_strided_slice %18 {offsets = [0, 256], sizes = [16, 256], strides = [1, 1]} : vector<16x512xf32> to vector<16x256xf32>
    %21 = arith.maximumf %19, %20 : vector<16x256xf32>
    %22 = arith.truncf %21 : vector<16x256xf32> to vector<16x256xbf16>
    %c0_13 = arith.constant 0 : index
    %c0_14 = arith.constant 0 : index
    %23 = vector.load %arg7[%c0_13, %c0_14] : memref<256x128xbf16, #tpu.memory_space<vmem>>, vector<256x128xbf16>
    %cst_15 = arith.constant dense<0.000000e+00> : vector<16x128xf32>
    %24 = tpu.matmul %22, %23, %cst_15 {dimension_numbers = #tpu.dot_dimension_numbers<[1], [0], [0], [1], [0, 0, 1, 1], [], []>} : vector<16x256xbf16>, vector<256x128xbf16>, vector<16x128xf32> -> vector<16x128xf32>
    %c0_16 = arith.constant 0 : index
    %c0_17 = arith.constant 0 : index
    %25 = vector.load %arg8[%c0_16, %c0_17] : memref<1x128xf32, #tpu.memory_space<vmem>>, vector<1x128xf32>
    %26 = vector.broadcast %25 : vector<1x128xf32> to vector<16x128xf32>
    %27 = arith.addf %24, %26 : vector<16x128xf32>
    %28 = vector.shape_cast %27 : vector<16x128xf32> to vector<2x8x128xf32>
    %c0_18 = arith.constant 0 : index
    %c0_19 = arith.constant 0 : index
    %29 = vector.load %arg2[%c0_18, %c0_19] : memref<8x128xf32, #tpu.memory_space<vmem>>, vector<8x128xf32>
    %30 = vector.shape_cast %29 : vector<8x128xf32> to vector<1x8x128xf32>
    %31 = vector.broadcast %30 : vector<1x8x128xf32> to vector<2x8x128xf32>
    %32 = arith.addf %28, %31 : vector<2x8x128xf32>
    %33 = vector.shape_cast %32 : vector<2x8x128xf32> to vector<16x128xf32>
    %c0_20 = arith.constant 0 : index
    %c0_21 = arith.constant 0 : index
    %c0_22 = arith.constant 0 : index
    %34 = vector.load %arg9[%c0_20, %c0_21, %c0_22] : memref<2x128x384xbf16, #tpu.memory_space<vmem>>, vector<1x128x384xbf16>
    %35 = vector.shape_cast %34 : vector<1x128x384xbf16> to vector<128x384xbf16>
    %c0_23 = arith.constant 0 : index
    %c0_24 = arith.constant 0 : index
    %c0_25 = arith.constant 0 : index
    %36 = vector.load %arg11[%c0_23, %c0_24, %c0_25] : memref<2x128x128xbf16, #tpu.memory_space<vmem>>, vector<1x128x128xbf16>
    %37 = vector.shape_cast %36 : vector<1x128x128xbf16> to vector<128x128xbf16>
    %38 = arith.truncf %33 : vector<16x128xf32> to vector<16x128xbf16>
    %cst_26 = arith.constant dense<0.000000e+00> : vector<16x384xf32>
    %39 = tpu.matmul %38, %35, %cst_26 {dimension_numbers = #tpu.dot_dimension_numbers<[1], [0], [0], [1], [0, 0, 1, 1], [], []>} : vector<16x128xbf16>, vector<128x384xbf16>, vector<16x384xf32> -> vector<16x384xf32>
    %c0_27 = arith.constant 0 : index
    %c0_28 = arith.constant 0 : index
    %c0_29 = arith.constant 0 : index
    %40 = vector.load %arg10[%c0_27, %c0_28, %c0_29] : memref<2x1x384xf32, #tpu.memory_space<vmem>>, vector<1x1x384xf32>
    %41 = vector.shape_cast %40 : vector<1x1x384xf32> to vector<1x384xf32>
    %42 = vector.broadcast %41 : vector<1x384xf32> to vector<16x384xf32>
    %43 = arith.addf %39, %42 : vector<16x384xf32>
    %44 = arith.truncf %43 : vector<16x384xf32> to vector<16x384xbf16>
    %45 = vector.extract_strided_slice %44 {offsets = [0, 0], sizes = [16, 128], strides = [1, 1]} : vector<16x384xbf16> to vector<16x128xbf16>
    %46 = vector.shape_cast %45 : vector<16x128xbf16> to vector<2x8x128xbf16>
    %47 = vector.extract_strided_slice %44 {offsets = [0, 128], sizes = [16, 128], strides = [1, 1]} : vector<16x384xbf16> to vector<16x128xbf16>
    %48 = vector.shape_cast %47 : vector<16x128xbf16> to vector<2x8x128xbf16>
    %49 = vector.extract_strided_slice %44 {offsets = [0, 256], sizes = [16, 128], strides = [1, 1]} : vector<16x384xbf16> to vector<16x128xbf16>
    %50 = vector.shape_cast %49 : vector<16x128xbf16> to vector<2x8x128xbf16>
    %cst_30 = arith.constant 0.000000e+00 : f32
    %51 = vector.broadcast %cst_30 : f32 to vector<16x128xf32>
    %52 = vector.extract_strided_slice %46 {offsets = [0, 0, 0], sizes = [2, 8, 32], strides = [1, 1, 1]} : vector<2x8x128xbf16> to vector<2x8x32xbf16>
    %53 = vector.extract_strided_slice %48 {offsets = [0, 0, 0], sizes = [2, 8, 32], strides = [1, 1, 1]} : vector<2x8x128xbf16> to vector<2x8x32xbf16>
    "tpu.trace_start"() <{level = 10 : i32, message = "bqd,bkd->bqk"}> : () -> ()
    %cst_31 = arith.constant dense<0.000000e+00> : vector<2x8x8xf32>
    %54 = tpu.matmul %52, %53, %cst_31 {dimension_numbers = #tpu.dot_dimension_numbers<[2], [2], [1], [1], [0, 0, 0, 1, 1, 1], [0], [0]>} : vector<2x8x32xbf16>, vector<2x8x32xbf16>, vector<2x8x8xf32> -> vector<2x8x8xf32>
    "tpu.trace_stop"() : () -> ()
    %cst_32 = arith.constant 0.176776692 : f32
    %55 = vector.broadcast %cst_32 : f32 to vector<2x8x8xf32>
    %56 = arith.mulf %54, %55 : vector<2x8x8xf32>
    %cst_33 = arith.constant dense<0xFF800000> : vector<2x8xf32>
    %57 = vector.multi_reduction <maximumf>, %56, %cst_33 [2] : vector<2x8x8xf32> to vector<2x8xf32>
    %58 = vector.shape_cast %57 : vector<2x8xf32> to vector<2x8x1xf32>
    %59 = vector.broadcast %58 : vector<2x8x1xf32> to vector<2x8x8xf32>
    %60 = arith.subf %56, %59 : vector<2x8x8xf32>
    %61 = math.exp %60 : vector<2x8x8xf32>
    %cst_34 = arith.constant dense<0.000000e+00> : vector<2x8xf32>
    %62 = vector.multi_reduction <add>, %61, %cst_34 [2] : vector<2x8x8xf32> to vector<2x8xf32>
    %63 = vector.shape_cast %62 : vector<2x8xf32> to vector<2x8x1xf32>
    %64 = tpu.reciprocal %63 {approx = true} : vector<2x8x1xf32> -> vector<2x8x1xf32>
    %65 = vector.broadcast %64 : vector<2x8x1xf32> to vector<2x8x8xf32>
    %66 = arith.mulf %61, %65 : vector<2x8x8xf32>
    %67 = arith.truncf %66 : vector<2x8x8xf32> to vector<2x8x8xbf16>
    %68 = vector.extract_strided_slice %50 {offsets = [0, 0, 0], sizes = [2, 8, 32], strides = [1, 1, 1]} : vector<2x8x128xbf16> to vector<2x8x32xbf16>
    "tpu.trace_start"() <{level = 10 : i32, message = "bqk,bkd->bqd"}> : () -> ()
    %cst_35 = arith.constant dense<0.000000e+00> : vector<2x8x32xf32>
    %69 = tpu.matmul %67, %68, %cst_35 {dimension_numbers = #tpu.dot_dimension_numbers<[2], [1], [1], [2], [0, 0, 0, 1, 1, 2], [0], [0]>} : vector<2x8x8xbf16>, vector<2x8x32xbf16>, vector<2x8x32xf32> -> vector<2x8x32xf32>
    "tpu.trace_stop"() : () -> ()
    %70 = vector.shape_cast %69 : vector<2x8x32xf32> to vector<16x32xf32>
    %71 = arith.truncf %70 : vector<16x32xf32> to vector<16x32xbf16>
    %72 = vector.extract_strided_slice %37 {offsets = [0, 0], sizes = [32, 128], strides = [1, 1]} : vector<128x128xbf16> to vector<32x128xbf16>
    %cst_36 = arith.constant dense<0.000000e+00> : vector<16x128xf32>
    %73 = tpu.matmul %71, %72, %cst_36 {dimension_numbers = #tpu.dot_dimension_numbers<[1], [0], [0], [1], [0, 0, 1, 1], [], []>} : vector<16x32xbf16>, vector<32x128xbf16>, vector<16x128xf32> -> vector<16x128xf32>
    %74 = arith.addf %51, %73 : vector<16x128xf32>
    %75 = vector.extract_strided_slice %46 {offsets = [0, 0, 32], sizes = [2, 8, 32], strides = [1, 1, 1]} : vector<2x8x128xbf16> to vector<2x8x32xbf16>
    %76 = vector.extract_strided_slice %48 {offsets = [0, 0, 32], sizes = [2, 8, 32], strides = [1, 1, 1]} : vector<2x8x128xbf16> to vector<2x8x32xbf16>
    "tpu.trace_start"() <{level = 10 : i32, message = "bqd,bkd->bqk"}> : () -> ()
    %cst_37 = arith.constant dense<0.000000e+00> : vector<2x8x8xf32>
    %77 = tpu.matmul %75, %76, %cst_37 {dimension_numbers = #tpu.dot_dimension_numbers<[2], [2], [1], [1], [0, 0, 0, 1, 1, 1], [0], [0]>} : vector<2x8x32xbf16>, vector<2x8x32xbf16>, vector<2x8x8xf32> -> vector<2x8x8xf32>
    "tpu.trace_stop"() : () -> ()
    %cst_38 = arith.constant 0.176776692 : f32
    %78 = vector.broadcast %cst_38 : f32 to vector<2x8x8xf32>
    %79 = arith.mulf %77, %78 : vector<2x8x8xf32>
    %cst_39 = arith.constant dense<0xFF800000> : vector<2x8xf32>
    %80 = vector.multi_reduction <maximumf>, %79, %cst_39 [2] : vector<2x8x8xf32> to vector<2x8xf32>
    %81 = vector.shape_cast %80 : vector<2x8xf32> to vector<2x8x1xf32>
    %82 = vector.broadcast %81 : vector<2x8x1xf32> to vector<2x8x8xf32>
    %83 = arith.subf %79, %82 : vector<2x8x8xf32>
    %84 = math.exp %83 : vector<2x8x8xf32>
    %cst_40 = arith.constant dense<0.000000e+00> : vector<2x8xf32>
    %85 = vector.multi_reduction <add>, %84, %cst_40 [2] : vector<2x8x8xf32> to vector<2x8xf32>
    %86 = vector.shape_cast %85 : vector<2x8xf32> to vector<2x8x1xf32>
    %87 = tpu.reciprocal %86 {approx = true} : vector<2x8x1xf32> -> vector<2x8x1xf32>
    %88 = vector.broadcast %87 : vector<2x8x1xf32> to vector<2x8x8xf32>
    %89 = arith.mulf %84, %88 : vector<2x8x8xf32>
    %90 = arith.truncf %89 : vector<2x8x8xf32> to vector<2x8x8xbf16>
    %91 = vector.extract_strided_slice %50 {offsets = [0, 0, 32], sizes = [2, 8, 32], strides = [1, 1, 1]} : vector<2x8x128xbf16> to vector<2x8x32xbf16>
    "tpu.trace_start"() <{level = 10 : i32, message = "bqk,bkd->bqd"}> : () -> ()
    %cst_41 = arith.constant dense<0.000000e+00> : vector<2x8x32xf32>
    %92 = tpu.matmul %90, %91, %cst_41 {dimension_numbers = #tpu.dot_dimension_numbers<[2], [1], [1], [2], [0, 0, 0, 1, 1, 2], [0], [0]>} : vector<2x8x8xbf16>, vector<2x8x32xbf16>, vector<2x8x32xf32> -> vector<2x8x32xf32>
    "tpu.trace_stop"() : () -> ()
    %93 = vector.shape_cast %92 : vector<2x8x32xf32> to vector<16x32xf32>
    %94 = arith.truncf %93 : vector<16x32xf32> to vector<16x32xbf16>
    %95 = vector.extract_strided_slice %37 {offsets = [32, 0], sizes = [32, 128], strides = [1, 1]} : vector<128x128xbf16> to vector<32x128xbf16>
    %cst_42 = arith.constant dense<0.000000e+00> : vector<16x128xf32>
    %96 = tpu.matmul %94, %95, %cst_42 {dimension_numbers = #tpu.dot_dimension_numbers<[1], [0], [0], [1], [0, 0, 1, 1], [], []>} : vector<16x32xbf16>, vector<32x128xbf16>, vector<16x128xf32> -> vector<16x128xf32>
    %97 = arith.addf %74, %96 : vector<16x128xf32>
    %98 = vector.extract_strided_slice %46 {offsets = [0, 0, 64], sizes = [2, 8, 32], strides = [1, 1, 1]} : vector<2x8x128xbf16> to vector<2x8x32xbf16>
    %99 = vector.extract_strided_slice %48 {offsets = [0, 0, 64], sizes = [2, 8, 32], strides = [1, 1, 1]} : vector<2x8x128xbf16> to vector<2x8x32xbf16>
    "tpu.trace_start"() <{level = 10 : i32, message = "bqd,bkd->bqk"}> : () -> ()
    %cst_43 = arith.constant dense<0.000000e+00> : vector<2x8x8xf32>
    %100 = tpu.matmul %98, %99, %cst_43 {dimension_numbers = #tpu.dot_dimension_numbers<[2], [2], [1], [1], [0, 0, 0, 1, 1, 1], [0], [0]>} : vector<2x8x32xbf16>, vector<2x8x32xbf16>, vector<2x8x8xf32> -> vector<2x8x8xf32>
    "tpu.trace_stop"() : () -> ()
    %cst_44 = arith.constant 0.176776692 : f32
    %101 = vector.broadcast %cst_44 : f32 to vector<2x8x8xf32>
    %102 = arith.mulf %100, %101 : vector<2x8x8xf32>
    %cst_45 = arith.constant dense<0xFF800000> : vector<2x8xf32>
    %103 = vector.multi_reduction <maximumf>, %102, %cst_45 [2] : vector<2x8x8xf32> to vector<2x8xf32>
    %104 = vector.shape_cast %103 : vector<2x8xf32> to vector<2x8x1xf32>
    %105 = vector.broadcast %104 : vector<2x8x1xf32> to vector<2x8x8xf32>
    %106 = arith.subf %102, %105 : vector<2x8x8xf32>
    %107 = math.exp %106 : vector<2x8x8xf32>
    %cst_46 = arith.constant dense<0.000000e+00> : vector<2x8xf32>
    %108 = vector.multi_reduction <add>, %107, %cst_46 [2] : vector<2x8x8xf32> to vector<2x8xf32>
    %109 = vector.shape_cast %108 : vector<2x8xf32> to vector<2x8x1xf32>
    %110 = tpu.reciprocal %109 {approx = true} : vector<2x8x1xf32> -> vector<2x8x1xf32>
    %111 = vector.broadcast %110 : vector<2x8x1xf32> to vector<2x8x8xf32>
    %112 = arith.mulf %107, %111 : vector<2x8x8xf32>
    %113 = arith.truncf %112 : vector<2x8x8xf32> to vector<2x8x8xbf16>
    %114 = vector.extract_strided_slice %50 {offsets = [0, 0, 64], sizes = [2, 8, 32], strides = [1, 1, 1]} : vector<2x8x128xbf16> to vector<2x8x32xbf16>
    "tpu.trace_start"() <{level = 10 : i32, message = "bqk,bkd->bqd"}> : () -> ()
    %cst_47 = arith.constant dense<0.000000e+00> : vector<2x8x32xf32>
    %115 = tpu.matmul %113, %114, %cst_47 {dimension_numbers = #tpu.dot_dimension_numbers<[2], [1], [1], [2], [0, 0, 0, 1, 1, 2], [0], [0]>} : vector<2x8x8xbf16>, vector<2x8x32xbf16>, vector<2x8x32xf32> -> vector<2x8x32xf32>
    "tpu.trace_stop"() : () -> ()
    %116 = vector.shape_cast %115 : vector<2x8x32xf32> to vector<16x32xf32>
    %117 = arith.truncf %116 : vector<16x32xf32> to vector<16x32xbf16>
    %118 = vector.extract_strided_slice %37 {offsets = [64, 0], sizes = [32, 128], strides = [1, 1]} : vector<128x128xbf16> to vector<32x128xbf16>
    %cst_48 = arith.constant dense<0.000000e+00> : vector<16x128xf32>
    %119 = tpu.matmul %117, %118, %cst_48 {dimension_numbers = #tpu.dot_dimension_numbers<[1], [0], [0], [1], [0, 0, 1, 1], [], []>} : vector<16x32xbf16>, vector<32x128xbf16>, vector<16x128xf32> -> vector<16x128xf32>
    %120 = arith.addf %97, %119 : vector<16x128xf32>
    %121 = vector.extract_strided_slice %46 {offsets = [0, 0, 96], sizes = [2, 8, 32], strides = [1, 1, 1]} : vector<2x8x128xbf16> to vector<2x8x32xbf16>
    %122 = vector.extract_strided_slice %48 {offsets = [0, 0, 96], sizes = [2, 8, 32], strides = [1, 1, 1]} : vector<2x8x128xbf16> to vector<2x8x32xbf16>
    "tpu.trace_start"() <{level = 10 : i32, message = "bqd,bkd->bqk"}> : () -> ()
    %cst_49 = arith.constant dense<0.000000e+00> : vector<2x8x8xf32>
    %123 = tpu.matmul %121, %122, %cst_49 {dimension_numbers = #tpu.dot_dimension_numbers<[2], [2], [1], [1], [0, 0, 0, 1, 1, 1], [0], [0]>} : vector<2x8x32xbf16>, vector<2x8x32xbf16>, vector<2x8x8xf32> -> vector<2x8x8xf32>
    "tpu.trace_stop"() : () -> ()
    %cst_50 = arith.constant 0.176776692 : f32
    %124 = vector.broadcast %cst_50 : f32 to vector<2x8x8xf32>
    %125 = arith.mulf %123, %124 : vector<2x8x8xf32>
    %cst_51 = arith.constant dense<0xFF800000> : vector<2x8xf32>
    %126 = vector.multi_reduction <maximumf>, %125, %cst_51 [2] : vector<2x8x8xf32> to vector<2x8xf32>
    %127 = vector.shape_cast %126 : vector<2x8xf32> to vector<2x8x1xf32>
    %128 = vector.broadcast %127 : vector<2x8x1xf32> to vector<2x8x8xf32>
    %129 = arith.subf %125, %128 : vector<2x8x8xf32>
    %130 = math.exp %129 : vector<2x8x8xf32>
    %cst_52 = arith.constant dense<0.000000e+00> : vector<2x8xf32>
    %131 = vector.multi_reduction <add>, %130, %cst_52 [2] : vector<2x8x8xf32> to vector<2x8xf32>
    %132 = vector.shape_cast %131 : vector<2x8xf32> to vector<2x8x1xf32>
    %133 = tpu.reciprocal %132 {approx = true} : vector<2x8x1xf32> -> vector<2x8x1xf32>
    %134 = vector.broadcast %133 : vector<2x8x1xf32> to vector<2x8x8xf32>
    %135 = arith.mulf %130, %134 : vector<2x8x8xf32>
    %136 = arith.truncf %135 : vector<2x8x8xf32> to vector<2x8x8xbf16>
    %137 = vector.extract_strided_slice %50 {offsets = [0, 0, 96], sizes = [2, 8, 32], strides = [1, 1, 1]} : vector<2x8x128xbf16> to vector<2x8x32xbf16>
    "tpu.trace_start"() <{level = 10 : i32, message = "bqk,bkd->bqd"}> : () -> ()
    %cst_53 = arith.constant dense<0.000000e+00> : vector<2x8x32xf32>
    %138 = tpu.matmul %136, %137, %cst_53 {dimension_numbers = #tpu.dot_dimension_numbers<[2], [1], [1], [2], [0, 0, 0, 1, 1, 2], [0], [0]>} : vector<2x8x8xbf16>, vector<2x8x32xbf16>, vector<2x8x32xf32> -> vector<2x8x32xf32>
    "tpu.trace_stop"() : () -> ()
    %139 = vector.shape_cast %138 : vector<2x8x32xf32> to vector<16x32xf32>
    %140 = arith.truncf %139 : vector<16x32xf32> to vector<16x32xbf16>
    %141 = vector.extract_strided_slice %37 {offsets = [96, 0], sizes = [32, 128], strides = [1, 1]} : vector<128x128xbf16> to vector<32x128xbf16>
    %cst_54 = arith.constant dense<0.000000e+00> : vector<16x128xf32>
    %142 = tpu.matmul %140, %141, %cst_54 {dimension_numbers = #tpu.dot_dimension_numbers<[1], [0], [0], [1], [0, 0, 1, 1], [], []>} : vector<16x32xbf16>, vector<32x128xbf16>, vector<16x128xf32> -> vector<16x128xf32>
    %143 = arith.addf %120, %142 : vector<16x128xf32>
    %c0_55 = arith.constant 0 : index
    %c0_56 = arith.constant 0 : index
    %c0_57 = arith.constant 0 : index
    %144 = vector.load %arg12[%c0_55, %c0_56, %c0_57] : memref<2x1x128xf32, #tpu.memory_space<vmem>>, vector<1x1x128xf32>
    %145 = vector.shape_cast %144 : vector<1x1x128xf32> to vector<1x128xf32>
    %146 = vector.broadcast %145 : vector<1x128xf32> to vector<16x128xf32>
    %147 = arith.addf %143, %146 : vector<16x128xf32>
    %148 = arith.addf %33, %147 : vector<16x128xf32>
    %c0_58 = arith.constant 0 : index
    %c0_59 = arith.constant 0 : index
    %c0_60 = arith.constant 0 : index
    %149 = vector.load %arg17[%c0_58, %c0_59, %c0_60] : memref<2x1x128xf32, #tpu.memory_space<vmem>>, vector<1x1x128xf32>
    %150 = vector.shape_cast %149 : vector<1x1x128xf32> to vector<1x128xf32>
    %c0_61 = arith.constant 0 : index
    %c0_62 = arith.constant 0 : index
    %c0_63 = arith.constant 0 : index
    %151 = vector.load %arg18[%c0_61, %c0_62, %c0_63] : memref<2x1x128xf32, #tpu.memory_space<vmem>>, vector<1x1x128xf32>
    %152 = vector.shape_cast %151 : vector<1x1x128xf32> to vector<1x128xf32>
    %cst_64 = arith.constant dense<0.000000e+00> : vector<16xf32>
    %153 = vector.multi_reduction <add>, %148, %cst_64 [1] : vector<16x128xf32> to vector<16xf32>
    %154 = vector.shape_cast %153 : vector<16xf32> to vector<16x1xf32>
    %cst_65 = arith.constant 1.280000e+02 : f32
    %155 = vector.broadcast %cst_65 : f32 to vector<16x1xf32>
    %156 = arith.divf %154, %155 : vector<16x1xf32>
    %157 = vector.broadcast %156 : vector<16x1xf32> to vector<16x128xf32>
    %158 = arith.subf %148, %157 : vector<16x128xf32>
    %159 = arith.mulf %158, %158 : vector<16x128xf32>
    %cst_66 = arith.constant dense<0.000000e+00> : vector<16xf32>
    %160 = vector.multi_reduction <add>, %159, %cst_66 [1] : vector<16x128xf32> to vector<16xf32>
    %161 = vector.shape_cast %160 : vector<16xf32> to vector<16x1xf32>
    %cst_67 = arith.constant 1.280000e+02 : f32
    %162 = vector.broadcast %cst_67 : f32 to vector<16x1xf32>
    %163 = arith.divf %161, %162 : vector<16x1xf32>
    %164 = vector.broadcast %156 : vector<16x1xf32> to vector<16x128xf32>
    %165 = arith.subf %148, %164 : vector<16x128xf32>
    %cst_68 = arith.constant 9.99999974E-6 : f32
    %166 = vector.broadcast %cst_68 : f32 to vector<16x1xf32>
    %167 = arith.addf %163, %166 : vector<16x1xf32>
    %168 = math.rsqrt %167 : vector<16x1xf32>
    %169 = vector.broadcast %168 : vector<16x1xf32> to vector<16x128xf32>
    %170 = arith.mulf %165, %169 : vector<16x128xf32>
    %171 = vector.broadcast %150 : vector<1x128xf32> to vector<16x128xf32>
    %172 = arith.mulf %170, %171 : vector<16x128xf32>
    %173 = vector.broadcast %152 : vector<1x128xf32> to vector<16x128xf32>
    %174 = arith.addf %172, %173 : vector<16x128xf32>
    %175 = arith.truncf %174 : vector<16x128xf32> to vector<16x128xbf16>
    %c0_69 = arith.constant 0 : index
    %c0_70 = arith.constant 0 : index
    %c0_71 = arith.constant 0 : index
    %176 = vector.load %arg13[%c0_69, %c0_70, %c0_71] : memref<2x128x256xbf16, #tpu.memory_space<vmem>>, vector<1x128x256xbf16>
    %177 = vector.shape_cast %176 : vector<1x128x256xbf16> to vector<128x256xbf16>
    %cst_72 = arith.constant dense<0.000000e+00> : vector<16x256xf32>
    %178 = tpu.matmul %175, %177, %cst_72 {dimension_numbers = #tpu.dot_dimension_numbers<[1], [0], [0], [1], [0, 0, 1, 1], [], []>} : vector<16x128xbf16>, vector<128x256xbf16>, vector<16x256xf32> -> vector<16x256xf32>
    %c0_73 = arith.constant 0 : index
    %c0_74 = arith.constant 0 : index
    %c0_75 = arith.constant 0 : index
    %179 = vector.load %arg14[%c0_73, %c0_74, %c0_75] : memref<2x1x256xf32, #tpu.memory_space<vmem>>, vector<1x1x256xf32>
    %180 = vector.shape_cast %179 : vector<1x1x256xf32> to vector<1x256xf32>
    %181 = vector.broadcast %180 : vector<1x256xf32> to vector<16x256xf32>
    %182 = arith.addf %178, %181 : vector<16x256xf32>
    %cst_76 = arith.constant 0.000000e+00 : f32
    %183 = vector.broadcast %cst_76 : f32 to vector<16x256xf32>
    %184 = arith.maximumf %182, %183 : vector<16x256xf32>
    %185 = arith.truncf %184 : vector<16x256xf32> to vector<16x256xbf16>
    %c0_77 = arith.constant 0 : index
    %c0_78 = arith.constant 0 : index
    %c0_79 = arith.constant 0 : index
    %186 = vector.load %arg15[%c0_77, %c0_78, %c0_79] : memref<2x256x128xbf16, #tpu.memory_space<vmem>>, vector<1x256x128xbf16>
    %187 = vector.shape_cast %186 : vector<1x256x128xbf16> to vector<256x128xbf16>
    %cst_80 = arith.constant dense<0.000000e+00> : vector<16x128xf32>
    %188 = tpu.matmul %185, %187, %cst_80 {dimension_numbers = #tpu.dot_dimension_numbers<[1], [0], [0], [1], [0, 0, 1, 1], [], []>} : vector<16x256xbf16>, vector<256x128xbf16>, vector<16x128xf32> -> vector<16x128xf32>
    %c0_81 = arith.constant 0 : index
    %c0_82 = arith.constant 0 : index
    %c0_83 = arith.constant 0 : index
    %189 = vector.load %arg16[%c0_81, %c0_82, %c0_83] : memref<2x1x128xf32, #tpu.memory_space<vmem>>, vector<1x1x128xf32>
    %190 = vector.shape_cast %189 : vector<1x1x128xf32> to vector<1x128xf32>
    %191 = vector.broadcast %190 : vector<1x128xf32> to vector<16x128xf32>
    %192 = arith.addf %188, %191 : vector<16x128xf32>
    %193 = arith.addf %174, %192 : vector<16x128xf32>
    %c0_84 = arith.constant 0 : index
    %c0_85 = arith.constant 0 : index
    %c0_86 = arith.constant 0 : index
    %194 = vector.load %arg19[%c0_84, %c0_85, %c0_86] : memref<2x1x128xf32, #tpu.memory_space<vmem>>, vector<1x1x128xf32>
    %195 = vector.shape_cast %194 : vector<1x1x128xf32> to vector<1x128xf32>
    %c0_87 = arith.constant 0 : index
    %c0_88 = arith.constant 0 : index
    %c0_89 = arith.constant 0 : index
    %196 = vector.load %arg20[%c0_87, %c0_88, %c0_89] : memref<2x1x128xf32, #tpu.memory_space<vmem>>, vector<1x1x128xf32>
    %197 = vector.shape_cast %196 : vector<1x1x128xf32> to vector<1x128xf32>
    %cst_90 = arith.constant dense<0.000000e+00> : vector<16xf32>
    %198 = vector.multi_reduction <add>, %193, %cst_90 [1] : vector<16x128xf32> to vector<16xf32>
    %199 = vector.shape_cast %198 : vector<16xf32> to vector<16x1xf32>
    %cst_91 = arith.constant 1.280000e+02 : f32
    %200 = vector.broadcast %cst_91 : f32 to vector<16x1xf32>
    %201 = arith.divf %199, %200 : vector<16x1xf32>
    %202 = vector.broadcast %201 : vector<16x1xf32> to vector<16x128xf32>
    %203 = arith.subf %193, %202 : vector<16x128xf32>
    %204 = arith.mulf %203, %203 : vector<16x128xf32>
    %cst_92 = arith.constant dense<0.000000e+00> : vector<16xf32>
    %205 = vector.multi_reduction <add>, %204, %cst_92 [1] : vector<16x128xf32> to vector<16xf32>
    %206 = vector.shape_cast %205 : vector<16xf32> to vector<16x1xf32>
    %cst_93 = arith.constant 1.280000e+02 : f32
    %207 = vector.broadcast %cst_93 : f32 to vector<16x1xf32>
    %208 = arith.divf %206, %207 : vector<16x1xf32>
    %209 = vector.broadcast %201 : vector<16x1xf32> to vector<16x128xf32>
    %210 = arith.subf %193, %209 : vector<16x128xf32>
    %cst_94 = arith.constant 9.99999974E-6 : f32
    %211 = vector.broadcast %cst_94 : f32 to vector<16x1xf32>
    %212 = arith.addf %208, %211 : vector<16x1xf32>
    %213 = math.rsqrt %212 : vector<16x1xf32>
    %214 = vector.broadcast %213 : vector<16x1xf32> to vector<16x128xf32>
    %215 = arith.mulf %210, %214 : vector<16x128xf32>
    %216 = vector.broadcast %195 : vector<1x128xf32> to vector<16x128xf32>
    %217 = arith.mulf %215, %216 : vector<16x128xf32>
    %218 = vector.broadcast %197 : vector<1x128xf32> to vector<16x128xf32>
    %219 = arith.addf %217, %218 : vector<16x128xf32>
    %c1 = arith.constant 1 : index
    %c0_95 = arith.constant 0 : index
    %c0_96 = arith.constant 0 : index
    %220 = vector.load %arg9[%c1, %c0_95, %c0_96] : memref<2x128x384xbf16, #tpu.memory_space<vmem>>, vector<1x128x384xbf16>
    %221 = vector.shape_cast %220 : vector<1x128x384xbf16> to vector<128x384xbf16>
    %c1_97 = arith.constant 1 : index
    %c0_98 = arith.constant 0 : index
    %c0_99 = arith.constant 0 : index
    %222 = vector.load %arg11[%c1_97, %c0_98, %c0_99] : memref<2x128x128xbf16, #tpu.memory_space<vmem>>, vector<1x128x128xbf16>
    %223 = vector.shape_cast %222 : vector<1x128x128xbf16> to vector<128x128xbf16>
    %224 = arith.truncf %219 : vector<16x128xf32> to vector<16x128xbf16>
    %cst_100 = arith.constant dense<0.000000e+00> : vector<16x384xf32>
    %225 = tpu.matmul %224, %221, %cst_100 {dimension_numbers = #tpu.dot_dimension_numbers<[1], [0], [0], [1], [0, 0, 1, 1], [], []>} : vector<16x128xbf16>, vector<128x384xbf16>, vector<16x384xf32> -> vector<16x384xf32>
    %c1_101 = arith.constant 1 : index
    %c0_102 = arith.constant 0 : index
    %c0_103 = arith.constant 0 : index
    %226 = vector.load %arg10[%c1_101, %c0_102, %c0_103] : memref<2x1x384xf32, #tpu.memory_space<vmem>>, vector<1x1x384xf32>
    %227 = vector.shape_cast %226 : vector<1x1x384xf32> to vector<1x384xf32>
    %228 = vector.broadcast %227 : vector<1x384xf32> to vector<16x384xf32>
    %229 = arith.addf %225, %228 : vector<16x384xf32>
    %230 = arith.truncf %229 : vector<16x384xf32> to vector<16x384xbf16>
    %231 = vector.extract_strided_slice %230 {offsets = [0, 0], sizes = [16, 128], strides = [1, 1]} : vector<16x384xbf16> to vector<16x128xbf16>
    %232 = vector.shape_cast %231 : vector<16x128xbf16> to vector<2x8x128xbf16>
    %233 = vector.extract_strided_slice %230 {offsets = [0, 128], sizes = [16, 128], strides = [1, 1]} : vector<16x384xbf16> to vector<16x128xbf16>
    %234 = vector.shape_cast %233 : vector<16x128xbf16> to vector<2x8x128xbf16>
    %235 = vector.extract_strided_slice %230 {offsets = [0, 256], sizes = [16, 128], strides = [1, 1]} : vector<16x384xbf16> to vector<16x128xbf16>
    %236 = vector.shape_cast %235 : vector<16x128xbf16> to vector<2x8x128xbf16>
    %cst_104 = arith.constant 0.000000e+00 : f32
    %237 = vector.broadcast %cst_104 : f32 to vector<16x128xf32>
    %238 = vector.extract_strided_slice %232 {offsets = [0, 0, 0], sizes = [2, 8, 32], strides = [1, 1, 1]} : vector<2x8x128xbf16> to vector<2x8x32xbf16>
    %239 = vector.extract_strided_slice %234 {offsets = [0, 0, 0], sizes = [2, 8, 32], strides = [1, 1, 1]} : vector<2x8x128xbf16> to vector<2x8x32xbf16>
    "tpu.trace_start"() <{level = 10 : i32, message = "bqd,bkd->bqk"}> : () -> ()
    %cst_105 = arith.constant dense<0.000000e+00> : vector<2x8x8xf32>
    %240 = tpu.matmul %238, %239, %cst_105 {dimension_numbers = #tpu.dot_dimension_numbers<[2], [2], [1], [1], [0, 0, 0, 1, 1, 1], [0], [0]>} : vector<2x8x32xbf16>, vector<2x8x32xbf16>, vector<2x8x8xf32> -> vector<2x8x8xf32>
    "tpu.trace_stop"() : () -> ()
    %cst_106 = arith.constant 0.176776692 : f32
    %241 = vector.broadcast %cst_106 : f32 to vector<2x8x8xf32>
    %242 = arith.mulf %240, %241 : vector<2x8x8xf32>
    %cst_107 = arith.constant dense<0xFF800000> : vector<2x8xf32>
    %243 = vector.multi_reduction <maximumf>, %242, %cst_107 [2] : vector<2x8x8xf32> to vector<2x8xf32>
    %244 = vector.shape_cast %243 : vector<2x8xf32> to vector<2x8x1xf32>
    %245 = vector.broadcast %244 : vector<2x8x1xf32> to vector<2x8x8xf32>
    %246 = arith.subf %242, %245 : vector<2x8x8xf32>
    %247 = math.exp %246 : vector<2x8x8xf32>
    %cst_108 = arith.constant dense<0.000000e+00> : vector<2x8xf32>
    %248 = vector.multi_reduction <add>, %247, %cst_108 [2] : vector<2x8x8xf32> to vector<2x8xf32>
    %249 = vector.shape_cast %248 : vector<2x8xf32> to vector<2x8x1xf32>
    %250 = tpu.reciprocal %249 {approx = true} : vector<2x8x1xf32> -> vector<2x8x1xf32>
    %251 = vector.broadcast %250 : vector<2x8x1xf32> to vector<2x8x8xf32>
    %252 = arith.mulf %247, %251 : vector<2x8x8xf32>
    %253 = arith.truncf %252 : vector<2x8x8xf32> to vector<2x8x8xbf16>
    %254 = vector.extract_strided_slice %236 {offsets = [0, 0, 0], sizes = [2, 8, 32], strides = [1, 1, 1]} : vector<2x8x128xbf16> to vector<2x8x32xbf16>
    "tpu.trace_start"() <{level = 10 : i32, message = "bqk,bkd->bqd"}> : () -> ()
    %cst_109 = arith.constant dense<0.000000e+00> : vector<2x8x32xf32>
    %255 = tpu.matmul %253, %254, %cst_109 {dimension_numbers = #tpu.dot_dimension_numbers<[2], [1], [1], [2], [0, 0, 0, 1, 1, 2], [0], [0]>} : vector<2x8x8xbf16>, vector<2x8x32xbf16>, vector<2x8x32xf32> -> vector<2x8x32xf32>
    "tpu.trace_stop"() : () -> ()
    %256 = vector.shape_cast %255 : vector<2x8x32xf32> to vector<16x32xf32>
    %257 = arith.truncf %256 : vector<16x32xf32> to vector<16x32xbf16>
    %258 = vector.extract_strided_slice %223 {offsets = [0, 0], sizes = [32, 128], strides = [1, 1]} : vector<128x128xbf16> to vector<32x128xbf16>
    %cst_110 = arith.constant dense<0.000000e+00> : vector<16x128xf32>
    %259 = tpu.matmul %257, %258, %cst_110 {dimension_numbers = #tpu.dot_dimension_numbers<[1], [0], [0], [1], [0, 0, 1, 1], [], []>} : vector<16x32xbf16>, vector<32x128xbf16>, vector<16x128xf32> -> vector<16x128xf32>
    %260 = arith.addf %237, %259 : vector<16x128xf32>
    %261 = vector.extract_strided_slice %232 {offsets = [0, 0, 32], sizes = [2, 8, 32], strides = [1, 1, 1]} : vector<2x8x128xbf16> to vector<2x8x32xbf16>
    %262 = vector.extract_strided_slice %234 {offsets = [0, 0, 32], sizes = [2, 8, 32], strides = [1, 1, 1]} : vector<2x8x128xbf16> to vector<2x8x32xbf16>
    "tpu.trace_start"() <{level = 10 : i32, message = "bqd,bkd->bqk"}> : () -> ()
    %cst_111 = arith.constant dense<0.000000e+00> : vector<2x8x8xf32>
    %263 = tpu.matmul %261, %262, %cst_111 {dimension_numbers = #tpu.dot_dimension_numbers<[2], [2], [1], [1], [0, 0, 0, 1, 1, 1], [0], [0]>} : vector<2x8x32xbf16>, vector<2x8x32xbf16>, vector<2x8x8xf32> -> vector<2x8x8xf32>
    "tpu.trace_stop"() : () -> ()
    %cst_112 = arith.constant 0.176776692 : f32
    %264 = vector.broadcast %cst_112 : f32 to vector<2x8x8xf32>
    %265 = arith.mulf %263, %264 : vector<2x8x8xf32>
    %cst_113 = arith.constant dense<0xFF800000> : vector<2x8xf32>
    %266 = vector.multi_reduction <maximumf>, %265, %cst_113 [2] : vector<2x8x8xf32> to vector<2x8xf32>
    %267 = vector.shape_cast %266 : vector<2x8xf32> to vector<2x8x1xf32>
    %268 = vector.broadcast %267 : vector<2x8x1xf32> to vector<2x8x8xf32>
    %269 = arith.subf %265, %268 : vector<2x8x8xf32>
    %270 = math.exp %269 : vector<2x8x8xf32>
    %cst_114 = arith.constant dense<0.000000e+00> : vector<2x8xf32>
    %271 = vector.multi_reduction <add>, %270, %cst_114 [2] : vector<2x8x8xf32> to vector<2x8xf32>
    %272 = vector.shape_cast %271 : vector<2x8xf32> to vector<2x8x1xf32>
    %273 = tpu.reciprocal %272 {approx = true} : vector<2x8x1xf32> -> vector<2x8x1xf32>
    %274 = vector.broadcast %273 : vector<2x8x1xf32> to vector<2x8x8xf32>
    %275 = arith.mulf %270, %274 : vector<2x8x8xf32>
    %276 = arith.truncf %275 : vector<2x8x8xf32> to vector<2x8x8xbf16>
    %277 = vector.extract_strided_slice %236 {offsets = [0, 0, 32], sizes = [2, 8, 32], strides = [1, 1, 1]} : vector<2x8x128xbf16> to vector<2x8x32xbf16>
    "tpu.trace_start"() <{level = 10 : i32, message = "bqk,bkd->bqd"}> : () -> ()
    %cst_115 = arith.constant dense<0.000000e+00> : vector<2x8x32xf32>
    %278 = tpu.matmul %276, %277, %cst_115 {dimension_numbers = #tpu.dot_dimension_numbers<[2], [1], [1], [2], [0, 0, 0, 1, 1, 2], [0], [0]>} : vector<2x8x8xbf16>, vector<2x8x32xbf16>, vector<2x8x32xf32> -> vector<2x8x32xf32>
    "tpu.trace_stop"() : () -> ()
    %279 = vector.shape_cast %278 : vector<2x8x32xf32> to vector<16x32xf32>
    %280 = arith.truncf %279 : vector<16x32xf32> to vector<16x32xbf16>
    %281 = vector.extract_strided_slice %223 {offsets = [32, 0], sizes = [32, 128], strides = [1, 1]} : vector<128x128xbf16> to vector<32x128xbf16>
    %cst_116 = arith.constant dense<0.000000e+00> : vector<16x128xf32>
    %282 = tpu.matmul %280, %281, %cst_116 {dimension_numbers = #tpu.dot_dimension_numbers<[1], [0], [0], [1], [0, 0, 1, 1], [], []>} : vector<16x32xbf16>, vector<32x128xbf16>, vector<16x128xf32> -> vector<16x128xf32>
    %283 = arith.addf %260, %282 : vector<16x128xf32>
    %284 = vector.extract_strided_slice %232 {offsets = [0, 0, 64], sizes = [2, 8, 32], strides = [1, 1, 1]} : vector<2x8x128xbf16> to vector<2x8x32xbf16>
    %285 = vector.extract_strided_slice %234 {offsets = [0, 0, 64], sizes = [2, 8, 32], strides = [1, 1, 1]} : vector<2x8x128xbf16> to vector<2x8x32xbf16>
    "tpu.trace_start"() <{level = 10 : i32, message = "bqd,bkd->bqk"}> : () -> ()
    %cst_117 = arith.constant dense<0.000000e+00> : vector<2x8x8xf32>
    %286 = tpu.matmul %284, %285, %cst_117 {dimension_numbers = #tpu.dot_dimension_numbers<[2], [2], [1], [1], [0, 0, 0, 1, 1, 1], [0], [0]>} : vector<2x8x32xbf16>, vector<2x8x32xbf16>, vector<2x8x8xf32> -> vector<2x8x8xf32>
    "tpu.trace_stop"() : () -> ()
    %cst_118 = arith.constant 0.176776692 : f32
    %287 = vector.broadcast %cst_118 : f32 to vector<2x8x8xf32>
    %288 = arith.mulf %286, %287 : vector<2x8x8xf32>
    %cst_119 = arith.constant dense<0xFF800000> : vector<2x8xf32>
    %289 = vector.multi_reduction <maximumf>, %288, %cst_119 [2] : vector<2x8x8xf32> to vector<2x8xf32>
    %290 = vector.shape_cast %289 : vector<2x8xf32> to vector<2x8x1xf32>
    %291 = vector.broadcast %290 : vector<2x8x1xf32> to vector<2x8x8xf32>
    %292 = arith.subf %288, %291 : vector<2x8x8xf32>
    %293 = math.exp %292 : vector<2x8x8xf32>
    %cst_120 = arith.constant dense<0.000000e+00> : vector<2x8xf32>
    %294 = vector.multi_reduction <add>, %293, %cst_120 [2] : vector<2x8x8xf32> to vector<2x8xf32>
    %295 = vector.shape_cast %294 : vector<2x8xf32> to vector<2x8x1xf32>
    %296 = tpu.reciprocal %295 {approx = true} : vector<2x8x1xf32> -> vector<2x8x1xf32>
    %297 = vector.broadcast %296 : vector<2x8x1xf32> to vector<2x8x8xf32>
    %298 = arith.mulf %293, %297 : vector<2x8x8xf32>
    %299 = arith.truncf %298 : vector<2x8x8xf32> to vector<2x8x8xbf16>
    %300 = vector.extract_strided_slice %236 {offsets = [0, 0, 64], sizes = [2, 8, 32], strides = [1, 1, 1]} : vector<2x8x128xbf16> to vector<2x8x32xbf16>
    "tpu.trace_start"() <{level = 10 : i32, message = "bqk,bkd->bqd"}> : () -> ()
    %cst_121 = arith.constant dense<0.000000e+00> : vector<2x8x32xf32>
    %301 = tpu.matmul %299, %300, %cst_121 {dimension_numbers = #tpu.dot_dimension_numbers<[2], [1], [1], [2], [0, 0, 0, 1, 1, 2], [0], [0]>} : vector<2x8x8xbf16>, vector<2x8x32xbf16>, vector<2x8x32xf32> -> vector<2x8x32xf32>
    "tpu.trace_stop"() : () -> ()
    %302 = vector.shape_cast %301 : vector<2x8x32xf32> to vector<16x32xf32>
    %303 = arith.truncf %302 : vector<16x32xf32> to vector<16x32xbf16>
    %304 = vector.extract_strided_slice %223 {offsets = [64, 0], sizes = [32, 128], strides = [1, 1]} : vector<128x128xbf16> to vector<32x128xbf16>
    %cst_122 = arith.constant dense<0.000000e+00> : vector<16x128xf32>
    %305 = tpu.matmul %303, %304, %cst_122 {dimension_numbers = #tpu.dot_dimension_numbers<[1], [0], [0], [1], [0, 0, 1, 1], [], []>} : vector<16x32xbf16>, vector<32x128xbf16>, vector<16x128xf32> -> vector<16x128xf32>
    %306 = arith.addf %283, %305 : vector<16x128xf32>
    %307 = vector.extract_strided_slice %232 {offsets = [0, 0, 96], sizes = [2, 8, 32], strides = [1, 1, 1]} : vector<2x8x128xbf16> to vector<2x8x32xbf16>
    %308 = vector.extract_strided_slice %234 {offsets = [0, 0, 96], sizes = [2, 8, 32], strides = [1, 1, 1]} : vector<2x8x128xbf16> to vector<2x8x32xbf16>
    "tpu.trace_start"() <{level = 10 : i32, message = "bqd,bkd->bqk"}> : () -> ()
    %cst_123 = arith.constant dense<0.000000e+00> : vector<2x8x8xf32>
    %309 = tpu.matmul %307, %308, %cst_123 {dimension_numbers = #tpu.dot_dimension_numbers<[2], [2], [1], [1], [0, 0, 0, 1, 1, 1], [0], [0]>} : vector<2x8x32xbf16>, vector<2x8x32xbf16>, vector<2x8x8xf32> -> vector<2x8x8xf32>
    "tpu.trace_stop"() : () -> ()
    %cst_124 = arith.constant 0.176776692 : f32
    %310 = vector.broadcast %cst_124 : f32 to vector<2x8x8xf32>
    %311 = arith.mulf %309, %310 : vector<2x8x8xf32>
    %cst_125 = arith.constant dense<0xFF800000> : vector<2x8xf32>
    %312 = vector.multi_reduction <maximumf>, %311, %cst_125 [2] : vector<2x8x8xf32> to vector<2x8xf32>
    %313 = vector.shape_cast %312 : vector<2x8xf32> to vector<2x8x1xf32>
    %314 = vector.broadcast %313 : vector<2x8x1xf32> to vector<2x8x8xf32>
    %315 = arith.subf %311, %314 : vector<2x8x8xf32>
    %316 = math.exp %315 : vector<2x8x8xf32>
    %cst_126 = arith.constant dense<0.000000e+00> : vector<2x8xf32>
    %317 = vector.multi_reduction <add>, %316, %cst_126 [2] : vector<2x8x8xf32> to vector<2x8xf32>
    %318 = vector.shape_cast %317 : vector<2x8xf32> to vector<2x8x1xf32>
    %319 = tpu.reciprocal %318 {approx = true} : vector<2x8x1xf32> -> vector<2x8x1xf32>
    %320 = vector.broadcast %319 : vector<2x8x1xf32> to vector<2x8x8xf32>
    %321 = arith.mulf %316, %320 : vector<2x8x8xf32>
    %322 = arith.truncf %321 : vector<2x8x8xf32> to vector<2x8x8xbf16>
    %323 = vector.extract_strided_slice %236 {offsets = [0, 0, 96], sizes = [2, 8, 32], strides = [1, 1, 1]} : vector<2x8x128xbf16> to vector<2x8x32xbf16>
    "tpu.trace_start"() <{level = 10 : i32, message = "bqk,bkd->bqd"}> : () -> ()
    %cst_127 = arith.constant dense<0.000000e+00> : vector<2x8x32xf32>
    %324 = tpu.matmul %322, %323, %cst_127 {dimension_numbers = #tpu.dot_dimension_numbers<[2], [1], [1], [2], [0, 0, 0, 1, 1, 2], [0], [0]>} : vector<2x8x8xbf16>, vector<2x8x32xbf16>, vector<2x8x32xf32> -> vector<2x8x32xf32>
    "tpu.trace_stop"() : () -> ()
    %325 = vector.shape_cast %324 : vector<2x8x32xf32> to vector<16x32xf32>
    %326 = arith.truncf %325 : vector<16x32xf32> to vector<16x32xbf16>
    %327 = vector.extract_strided_slice %223 {offsets = [96, 0], sizes = [32, 128], strides = [1, 1]} : vector<128x128xbf16> to vector<32x128xbf16>
    %cst_128 = arith.constant dense<0.000000e+00> : vector<16x128xf32>
    %328 = tpu.matmul %326, %327, %cst_128 {dimension_numbers = #tpu.dot_dimension_numbers<[1], [0], [0], [1], [0, 0, 1, 1], [], []>} : vector<16x32xbf16>, vector<32x128xbf16>, vector<16x128xf32> -> vector<16x128xf32>
    %329 = arith.addf %306, %328 : vector<16x128xf32>
    %c1_129 = arith.constant 1 : index
    %c0_130 = arith.constant 0 : index
    %c0_131 = arith.constant 0 : index
    %330 = vector.load %arg12[%c1_129, %c0_130, %c0_131] : memref<2x1x128xf32, #tpu.memory_space<vmem>>, vector<1x1x128xf32>
    %331 = vector.shape_cast %330 : vector<1x1x128xf32> to vector<1x128xf32>
    %332 = vector.broadcast %331 : vector<1x128xf32> to vector<16x128xf32>
    %333 = arith.addf %329, %332 : vector<16x128xf32>
    %334 = arith.addf %219, %333 : vector<16x128xf32>
    %c1_132 = arith.constant 1 : index
    %c0_133 = arith.constant 0 : index
    %c0_134 = arith.constant 0 : index
    %335 = vector.load %arg17[%c1_132, %c0_133, %c0_134] : memref<2x1x128xf32, #tpu.memory_space<vmem>>, vector<1x1x128xf32>
    %336 = vector.shape_cast %335 : vector<1x1x128xf32> to vector<1x128xf32>
    %c1_135 = arith.constant 1 : index
    %c0_136 = arith.constant 0 : index
    %c0_137 = arith.constant 0 : index
    %337 = vector.load %arg18[%c1_135, %c0_136, %c0_137] : memref<2x1x128xf32, #tpu.memory_space<vmem>>, vector<1x1x128xf32>
    %338 = vector.shape_cast %337 : vector<1x1x128xf32> to vector<1x128xf32>
    %cst_138 = arith.constant dense<0.000000e+00> : vector<16xf32>
    %339 = vector.multi_reduction <add>, %334, %cst_138 [1] : vector<16x128xf32> to vector<16xf32>
    %340 = vector.shape_cast %339 : vector<16xf32> to vector<16x1xf32>
    %cst_139 = arith.constant 1.280000e+02 : f32
    %341 = vector.broadcast %cst_139 : f32 to vector<16x1xf32>
    %342 = arith.divf %340, %341 : vector<16x1xf32>
    %343 = vector.broadcast %342 : vector<16x1xf32> to vector<16x128xf32>
    %344 = arith.subf %334, %343 : vector<16x128xf32>
    %345 = arith.mulf %344, %344 : vector<16x128xf32>
    %cst_140 = arith.constant dense<0.000000e+00> : vector<16xf32>
    %346 = vector.multi_reduction <add>, %345, %cst_140 [1] : vector<16x128xf32> to vector<16xf32>
    %347 = vector.shape_cast %346 : vector<16xf32> to vector<16x1xf32>
    %cst_141 = arith.constant 1.280000e+02 : f32
    %348 = vector.broadcast %cst_141 : f32 to vector<16x1xf32>
    %349 = arith.divf %347, %348 : vector<16x1xf32>
    %350 = vector.broadcast %342 : vector<16x1xf32> to vector<16x128xf32>
    %351 = arith.subf %334, %350 : vector<16x128xf32>
    %cst_142 = arith.constant 9.99999974E-6 : f32
    %352 = vector.broadcast %cst_142 : f32 to vector<16x1xf32>
    %353 = arith.addf %349, %352 : vector<16x1xf32>
    %354 = math.rsqrt %353 : vector<16x1xf32>
    %355 = vector.broadcast %354 : vector<16x1xf32> to vector<16x128xf32>
    %356 = arith.mulf %351, %355 : vector<16x128xf32>
    %357 = vector.broadcast %336 : vector<1x128xf32> to vector<16x128xf32>
    %358 = arith.mulf %356, %357 : vector<16x128xf32>
    %359 = vector.broadcast %338 : vector<1x128xf32> to vector<16x128xf32>
    %360 = arith.addf %358, %359 : vector<16x128xf32>
    %361 = arith.truncf %360 : vector<16x128xf32> to vector<16x128xbf16>
    %c1_143 = arith.constant 1 : index
    %c0_144 = arith.constant 0 : index
    %c0_145 = arith.constant 0 : index
    %362 = vector.load %arg13[%c1_143, %c0_144, %c0_145] : memref<2x128x256xbf16, #tpu.memory_space<vmem>>, vector<1x128x256xbf16>
    %363 = vector.shape_cast %362 : vector<1x128x256xbf16> to vector<128x256xbf16>
    %cst_146 = arith.constant dense<0.000000e+00> : vector<16x256xf32>
    %364 = tpu.matmul %361, %363, %cst_146 {dimension_numbers = #tpu.dot_dimension_numbers<[1], [0], [0], [1], [0, 0, 1, 1], [], []>} : vector<16x128xbf16>, vector<128x256xbf16>, vector<16x256xf32> -> vector<16x256xf32>
    %c1_147 = arith.constant 1 : index
    %c0_148 = arith.constant 0 : index
    %c0_149 = arith.constant 0 : index
    %365 = vector.load %arg14[%c1_147, %c0_148, %c0_149] : memref<2x1x256xf32, #tpu.memory_space<vmem>>, vector<1x1x256xf32>
    %366 = vector.shape_cast %365 : vector<1x1x256xf32> to vector<1x256xf32>
    %367 = vector.broadcast %366 : vector<1x256xf32> to vector<16x256xf32>
    %368 = arith.addf %364, %367 : vector<16x256xf32>
    %cst_150 = arith.constant 0.000000e+00 : f32
    %369 = vector.broadcast %cst_150 : f32 to vector<16x256xf32>
    %370 = arith.maximumf %368, %369 : vector<16x256xf32>
    %371 = arith.truncf %370 : vector<16x256xf32> to vector<16x256xbf16>
    %c1_151 = arith.constant 1 : index
    %c0_152 = arith.constant 0 : index
    %c0_153 = arith.constant 0 : index
    %372 = vector.load %arg15[%c1_151, %c0_152, %c0_153] : memref<2x256x128xbf16, #tpu.memory_space<vmem>>, vector<1x256x128xbf16>
    %373 = vector.shape_cast %372 : vector<1x256x128xbf16> to vector<256x128xbf16>
    %cst_154 = arith.constant dense<0.000000e+00> : vector<16x128xf32>
    %374 = tpu.matmul %371, %373, %cst_154 {dimension_numbers = #tpu.dot_dimension_numbers<[1], [0], [0], [1], [0, 0, 1, 1], [], []>} : vector<16x256xbf16>, vector<256x128xbf16>, vector<16x128xf32> -> vector<16x128xf32>
    %c1_155 = arith.constant 1 : index
    %c0_156 = arith.constant 0 : index
    %c0_157 = arith.constant 0 : index
    %375 = vector.load %arg16[%c1_155, %c0_156, %c0_157] : memref<2x1x128xf32, #tpu.memory_space<vmem>>, vector<1x1x128xf32>
    %376 = vector.shape_cast %375 : vector<1x1x128xf32> to vector<1x128xf32>
    %377 = vector.broadcast %376 : vector<1x128xf32> to vector<16x128xf32>
    %378 = arith.addf %374, %377 : vector<16x128xf32>
    %379 = arith.addf %360, %378 : vector<16x128xf32>
    %c1_158 = arith.constant 1 : index
    %c0_159 = arith.constant 0 : index
    %c0_160 = arith.constant 0 : index
    %380 = vector.load %arg19[%c1_158, %c0_159, %c0_160] : memref<2x1x128xf32, #tpu.memory_space<vmem>>, vector<1x1x128xf32>
    %381 = vector.shape_cast %380 : vector<1x1x128xf32> to vector<1x128xf32>
    %c1_161 = arith.constant 1 : index
    %c0_162 = arith.constant 0 : index
    %c0_163 = arith.constant 0 : index
    %382 = vector.load %arg20[%c1_161, %c0_162, %c0_163] : memref<2x1x128xf32, #tpu.memory_space<vmem>>, vector<1x1x128xf32>
    %383 = vector.shape_cast %382 : vector<1x1x128xf32> to vector<1x128xf32>
    %cst_164 = arith.constant dense<0.000000e+00> : vector<16xf32>
    %384 = vector.multi_reduction <add>, %379, %cst_164 [1] : vector<16x128xf32> to vector<16xf32>
    %385 = vector.shape_cast %384 : vector<16xf32> to vector<16x1xf32>
    %cst_165 = arith.constant 1.280000e+02 : f32
    %386 = vector.broadcast %cst_165 : f32 to vector<16x1xf32>
    %387 = arith.divf %385, %386 : vector<16x1xf32>
    %388 = vector.broadcast %387 : vector<16x1xf32> to vector<16x128xf32>
    %389 = arith.subf %379, %388 : vector<16x128xf32>
    %390 = arith.mulf %389, %389 : vector<16x128xf32>
    %cst_166 = arith.constant dense<0.000000e+00> : vector<16xf32>
    %391 = vector.multi_reduction <add>, %390, %cst_166 [1] : vector<16x128xf32> to vector<16xf32>
    %392 = vector.shape_cast %391 : vector<16xf32> to vector<16x1xf32>
    %cst_167 = arith.constant 1.280000e+02 : f32
    %393 = vector.broadcast %cst_167 : f32 to vector<16x1xf32>
    %394 = arith.divf %392, %393 : vector<16x1xf32>
    %395 = vector.broadcast %387 : vector<16x1xf32> to vector<16x128xf32>
    %396 = arith.subf %379, %395 : vector<16x128xf32>
    %cst_168 = arith.constant 9.99999974E-6 : f32
    %397 = vector.broadcast %cst_168 : f32 to vector<16x1xf32>
    %398 = arith.addf %394, %397 : vector<16x1xf32>
    %399 = math.rsqrt %398 : vector<16x1xf32>
    %400 = vector.broadcast %399 : vector<16x1xf32> to vector<16x128xf32>
    %401 = arith.mulf %396, %400 : vector<16x128xf32>
    %402 = vector.broadcast %381 : vector<1x128xf32> to vector<16x128xf32>
    %403 = arith.mulf %401, %402 : vector<16x128xf32>
    %404 = vector.broadcast %383 : vector<1x128xf32> to vector<16x128xf32>
    %405 = arith.addf %403, %404 : vector<16x128xf32>
    %406 = vector.shape_cast %405 : vector<16x128xf32> to vector<2x8x128xf32>
    %cst_169 = arith.constant dense<0.000000e+00> : vector<2x128xf32>
    %407 = vector.multi_reduction <add>, %406, %cst_169 [1] : vector<2x8x128xf32> to vector<2x128xf32>
    %cst_170 = arith.constant 8.000000e+00 : f32
    %408 = vector.broadcast %cst_170 : f32 to vector<2x128xf32>
    %409 = arith.divf %407, %408 : vector<2x128xf32>
    %c0_171 = arith.constant 0 : index
    %c0_172 = arith.constant 0 : index
    %410 = vector.load %arg21[%c0_171, %c0_172] : memref<1x128xf32, #tpu.memory_space<vmem>>, vector<1x128xf32>
    %c0_173 = arith.constant 0 : index
    %c0_174 = arith.constant 0 : index
    %411 = vector.load %arg22[%c0_173, %c0_174] : memref<1x128xf32, #tpu.memory_space<vmem>>, vector<1x128xf32>
    %cst_175 = arith.constant dense<0.000000e+00> : vector<2xf32>
    %412 = vector.multi_reduction <add>, %409, %cst_175 [1] : vector<2x128xf32> to vector<2xf32>
    %413 = vector.shape_cast %412 : vector<2xf32> to vector<2x1xf32>
    %cst_176 = arith.constant 1.280000e+02 : f32
    %414 = vector.broadcast %cst_176 : f32 to vector<2x1xf32>
    %415 = arith.divf %413, %414 : vector<2x1xf32>
    %416 = vector.broadcast %415 : vector<2x1xf32> to vector<2x128xf32>
    %417 = arith.subf %409, %416 : vector<2x128xf32>
    %418 = arith.mulf %417, %417 : vector<2x128xf32>
    %cst_177 = arith.constant dense<0.000000e+00> : vector<2xf32>
    %419 = vector.multi_reduction <add>, %418, %cst_177 [1] : vector<2x128xf32> to vector<2xf32>
    %420 = vector.shape_cast %419 : vector<2xf32> to vector<2x1xf32>
    %cst_178 = arith.constant 1.280000e+02 : f32
    %421 = vector.broadcast %cst_178 : f32 to vector<2x1xf32>
    %422 = arith.divf %420, %421 : vector<2x1xf32>
    %423 = vector.broadcast %415 : vector<2x1xf32> to vector<2x128xf32>
    %424 = arith.subf %409, %423 : vector<2x128xf32>
    %cst_179 = arith.constant 9.99999974E-6 : f32
    %425 = vector.broadcast %cst_179 : f32 to vector<2x1xf32>
    %426 = arith.addf %422, %425 : vector<2x1xf32>
    %427 = math.rsqrt %426 : vector<2x1xf32>
    %428 = vector.broadcast %427 : vector<2x1xf32> to vector<2x128xf32>
    %429 = arith.mulf %424, %428 : vector<2x128xf32>
    %430 = vector.broadcast %410 : vector<1x128xf32> to vector<2x128xf32>
    %431 = arith.mulf %429, %430 : vector<2x128xf32>
    %432 = vector.broadcast %411 : vector<1x128xf32> to vector<2x128xf32>
    %433 = arith.addf %431, %432 : vector<2x128xf32>
    %434 = arith.truncf %433 : vector<2x128xf32> to vector<2x128xbf16>
    %c0_180 = arith.constant 0 : index
    %c0_181 = arith.constant 0 : index
    %435 = vector.load %arg23[%c0_180, %c0_181] : memref<128x128xbf16, #tpu.memory_space<vmem>>, vector<128x128xbf16>
    %cst_182 = arith.constant dense<0.000000e+00> : vector<2x128xf32>
    %436 = tpu.matmul %434, %435, %cst_182 {dimension_numbers = #tpu.dot_dimension_numbers<[1], [0], [0], [1], [0, 0, 1, 1], [], []>} : vector<2x128xbf16>, vector<128x128xbf16>, vector<2x128xf32> -> vector<2x128xf32>
    %c0_183 = arith.constant 0 : index
    %c0_184 = arith.constant 0 : index
    %437 = vector.load %arg24[%c0_183, %c0_184] : memref<1x128xf32, #tpu.memory_space<vmem>>, vector<1x128xf32>
    %438 = vector.broadcast %437 : vector<1x128xf32> to vector<2x128xf32>
    %439 = arith.addf %436, %438 : vector<2x128xf32>
    %c0_185 = arith.constant 0 : index
    %c0_186 = arith.constant 0 : index
    %440 = vector.load %arg25[%c0_185, %c0_186] : memref<2x128xf32, #tpu.memory_space<vmem>>, vector<2x128xf32>
    tpu.vector_store %arg25[%c0_185, %c0_186], %439 {strides = array<i32>} : memref<2x128xf32, #tpu.memory_space<vmem>>, vector<2x128xf32>,
    return
  }
  func.func @transform_0(%arg0: i32) -> (i32, i32, i32) {
    %c0_i32 = arith.constant 0 : i32
    %c0_i32_0 = arith.constant 0 : i32
    %c0_i32_1 = arith.constant 0 : i32
    return %arg0, %c0_i32, %c0_i32_0 : i32, i32, i32
  }
  func.func @transform_1(%arg0: i32) -> (i32, i32) {
    %c0_i32 = arith.constant 0 : i32
    %c0_i32_0 = arith.constant 0 : i32
    %c0_i32_1 = arith.constant 0 : i32
    return %c0_i32, %c0_i32_0 : i32, i32
  }
  func.func @transform_2(%arg0: i32) -> (i32, i32) {
    %c0_i32 = arith.constant 0 : i32
    %c0_i32_0 = arith.constant 0 : i32
    %c0_i32_1 = arith.constant 0 : i32
    return %c0_i32, %c0_i32_0 : i32, i32
  }
  func.func @transform_3(%arg0: i32) -> (i32, i32) {
    %c0_i32 = arith.constant 0 : i32
    %c0_i32_0 = arith.constant 0 : i32
    %c0_i32_1 = arith.constant 0 : i32
    return %c0_i32, %c0_i32_0 : i32, i32
  }
  func.func @transform_4(%arg0: i32) -> (i32, i32) {
    %c0_i32 = arith.constant 0 : i32
    %c0_i32_0 = arith.constant 0 : i32
    %c0_i32_1 = arith.constant 0 : i32
    return %c0_i32, %c0_i32_0 : i32, i32
  }
  func.func @transform_5(%arg0: i32) -> (i32, i32) {
    %c0_i32 = arith.constant 0 : i32
    %c0_i32_0 = arith.constant 0 : i32
    %c0_i32_1 = arith.constant 0 : i32
    return %c0_i32, %c0_i32_0 : i32, i32
  }
  func.func @transform_6(%arg0: i32) -> (i32, i32) {
    %c0_i32 = arith.constant 0 : i32
    %c0_i32_0 = arith.constant 0 : i32
    %c0_i32_1 = arith.constant 0 : i32
    return %c0_i32, %c0_i32_0 : i32, i32
  }
  func.func @transform_7(%arg0: i32) -> (i32, i32) {
    %c0_i32 = arith.constant 0 : i32
    %c0_i32_0 = arith.constant 0 : i32
    %c0_i32_1 = arith.constant 0 : i32
    return %c0_i32, %c0_i32_0 : i32, i32
  }
  func.func @transform_8(%arg0: i32) -> (i32, i32, i32) {
    %c0_i32 = arith.constant 0 : i32
    %c0_i32_0 = arith.constant 0 : i32
    %c0_i32_1 = arith.constant 0 : i32
    %c0_i32_2 = arith.constant 0 : i32
    return %c0_i32, %c0_i32_0, %c0_i32_1 : i32, i32, i32
  }
  func.func @transform_9(%arg0: i32) -> (i32, i32, i32) {
    %c0_i32 = arith.constant 0 : i32
    %c0_i32_0 = arith.constant 0 : i32
    %c0_i32_1 = arith.constant 0 : i32
    %c0_i32_2 = arith.constant 0 : i32
    return %c0_i32, %c0_i32_0, %c0_i32_1 : i32, i32, i32
  }
  func.func @transform_10(%arg0: i32) -> (i32, i32, i32) {
    %c0_i32 = arith.constant 0 : i32
    %c0_i32_0 = arith.constant 0 : i32
    %c0_i32_1 = arith.constant 0 : i32
    %c0_i32_2 = arith.constant 0 : i32
    return %c0_i32, %c0_i32_0, %c0_i32_1 : i32, i32, i32
  }
  func.func @transform_11(%arg0: i32) -> (i32, i32, i32) {
    %c0_i32 = arith.constant 0 : i32
    %c0_i32_0 = arith.constant 0 : i32
    %c0_i32_1 = arith.constant 0 : i32
    %c0_i32_2 = arith.constant 0 : i32
    return %c0_i32, %c0_i32_0, %c0_i32_1 : i32, i32, i32
  }
  func.func @transform_12(%arg0: i32) -> (i32, i32, i32) {
    %c0_i32 = arith.constant 0 : i32
    %c0_i32_0 = arith.constant 0 : i32
    %c0_i32_1 = arith.constant 0 : i32
    %c0_i32_2 = arith.constant 0 : i32
    return %c0_i32, %c0_i32_0, %c0_i32_1 : i32, i32, i32
  }
  func.func @transform_13(%arg0: i32) -> (i32, i32, i32) {
    %c0_i32 = arith.constant 0 : i32
    %c0_i32_0 = arith.constant 0 : i32
    %c0_i32_1 = arith.constant 0 : i32
    %c0_i32_2 = arith.constant 0 : i32
    return %c0_i32, %c0_i32_0, %c0_i32_1 : i32, i32, i32
  }
  func.func @transform_14(%arg0: i32) -> (i32, i32, i32) {
    %c0_i32 = arith.constant 0 : i32
    %c0_i32_0 = arith.constant 0 : i32
    %c0_i32_1 = arith.constant 0 : i32
    %c0_i32_2 = arith.constant 0 : i32
    return %c0_i32, %c0_i32_0, %c0_i32_1 : i32, i32, i32
  }
  func.func @transform_15(%arg0: i32) -> (i32, i32, i32) {
    %c0_i32 = arith.constant 0 : i32
    %c0_i32_0 = arith.constant 0 : i32
    %c0_i32_1 = arith.constant 0 : i32
    %c0_i32_2 = arith.constant 0 : i32
    return %c0_i32, %c0_i32_0, %c0_i32_1 : i32, i32, i32
  }
  func.func @transform_16(%arg0: i32) -> (i32, i32, i32) {
    %c0_i32 = arith.constant 0 : i32
    %c0_i32_0 = arith.constant 0 : i32
    %c0_i32_1 = arith.constant 0 : i32
    %c0_i32_2 = arith.constant 0 : i32
    return %c0_i32, %c0_i32_0, %c0_i32_1 : i32, i32, i32
  }
  func.func @transform_17(%arg0: i32) -> (i32, i32, i32) {
    %c0_i32 = arith.constant 0 : i32
    %c0_i32_0 = arith.constant 0 : i32
    %c0_i32_1 = arith.constant 0 : i32
    %c0_i32_2 = arith.constant 0 : i32
    return %c0_i32, %c0_i32_0, %c0_i32_1 : i32, i32, i32
  }
  func.func @transform_18(%arg0: i32) -> (i32, i32, i32) {
    %c0_i32 = arith.constant 0 : i32
    %c0_i32_0 = arith.constant 0 : i32
    %c0_i32_1 = arith.constant 0 : i32
    %c0_i32_2 = arith.constant 0 : i32
    return %c0_i32, %c0_i32_0, %c0_i32_1 : i32, i32, i32
  }
  func.func @transform_19(%arg0: i32) -> (i32, i32, i32) {
    %c0_i32 = arith.constant 0 : i32
    %c0_i32_0 = arith.constant 0 : i32
    %c0_i32_1 = arith.constant 0 : i32
    %c0_i32_2 = arith.constant 0 : i32
    return %c0_i32, %c0_i32_0, %c0_i32_1 : i32, i32, i32
  }
  func.func @transform_20(%arg0: i32) -> (i32, i32) {
    %c0_i32 = arith.constant 0 : i32
    %c0_i32_0 = arith.constant 0 : i32
    %c0_i32_1 = arith.constant 0 : i32
    return %c0_i32, %c0_i32_0 : i32, i32
  }
  func.func @transform_21(%arg0: i32) -> (i32, i32) {
    %c0_i32 = arith.constant 0 : i32
    %c0_i32_0 = arith.constant 0 : i32
    %c0_i32_1 = arith.constant 0 : i32
    return %c0_i32, %c0_i32_0 : i32, i32
  }
  func.func @transform_22(%arg0: i32) -> (i32, i32) {
    %c0_i32 = arith.constant 0 : i32
    %c0_i32_0 = arith.constant 0 : i32
    %c0_i32_1 = arith.constant 0 : i32
    return %c0_i32, %c0_i32_0 : i32, i32
  }
  func.func @transform_23(%arg0: i32) -> (i32, i32) {
    %c0_i32 = arith.constant 0 : i32
    %c0_i32_0 = arith.constant 0 : i32
    %c0_i32_1 = arith.constant 0 : i32
    return %c0_i32, %c0_i32_0 : i32, i32
  }
  func.func @transform_24(%arg0: i32) -> (i32, i32) {
    %c0_i32 = arith.constant 0 : i32
    %c0_i32_0 = arith.constant 0 : i32
    return %arg0, %c0_i32 : i32, i32
  }
}

</mosaic_0001>

<llo_original>
// kernel: forward.1
$region0: #{forward.1}
  #allocation0 [shape = 'u32[]', space=smem, size = 0x4, offset = 0x4, fixed_abs, tag = 'smem constant byte address 0x4 - core index']
  #allocation1 [shape = 'u32[72,128]{1,0:T(1,128)}', space=vmem, size = 0x9000, scoped, tag = 'internal scratch']
  %s0 = inlined_call_operand.vmem [shape: f32[2,8,64], index: 0, kind: input, shape index: {}]
  %s1 = inlined_call_operand.vmem [shape: f32[8,128], index: 1, kind: input, shape index: {}]
  %s2 = inlined_call_operand.hbm [shape: f32[64,512], index: 2, kind: input, shape index: {}]
  %s3 = inlined_call_operand.hbm [shape: f32[1,512], index: 3, kind: input, shape index: {}]
  %s4 = inlined_call_operand.hbm [shape: f32[256,512], index: 4, kind: input, shape index: {}]
  %s5 = inlined_call_operand.hbm [shape: f32[1,512], index: 5, kind: input, shape index: {}]
  %s6 = inlined_call_operand.hbm [shape: bf16[256,128], index: 6, kind: input, shape index: {}]
  %s7 = inlined_call_operand.hbm [shape: f32[1,128], index: 7, kind: input, shape index: {}]
  %s8 = inlined_call_operand.hbm [shape: bf16[2,128,384], index: 8, kind: input, shape index: {}]
  %s9 = inlined_call_operand.hbm [shape: f32[2,1,384], index: 9, kind: input, shape index: {}]
  %s10 = inlined_call_operand.hbm [shape: bf16[2,128,128], index: 10, kind: input, shape index: {}]
  %s11 = inlined_call_operand.hbm [shape: f32[2,1,128], index: 11, kind: input, shape index: {}]
  %s12 = inlined_call_operand.hbm [shape: bf16[2,128,256], index: 12, kind: input, shape index: {}]
  %s13 = inlined_call_operand.hbm [shape: f32[2,1,256], index: 13, kind: input, shape index: {}]
  %s14 = inlined_call_operand.hbm [shape: bf16[2,256,128], index: 14, kind: input, shape index: {}]
  %s15 = inlined_call_operand.hbm [shape: f32[2,1,128], index: 15, kind: input, shape index: {}]
  %s16 = inlined_call_operand.hbm [shape: f32[2,1,128], index: 16, kind: input, shape index: {}]
  %s17 = inlined_call_operand.hbm [shape: f32[2,1,128], index: 17, kind: input, shape index: {}]
  %s18 = inlined_call_operand.hbm [shape: f32[2,1,128], index: 18, kind: input, shape index: {}]
  %s19 = inlined_call_operand.hbm [shape: f32[2,1,128], index: 19, kind: input, shape index: {}]
  %s20 = inlined_call_operand.hbm [shape: f32[1,128], index: 20, kind: input, shape index: {}]
  %s21 = inlined_call_operand.hbm [shape: f32[1,128], index: 21, kind: input, shape index: {}]
  %s22 = inlined_call_operand.hbm [shape: bf16[128,128], index: 22, kind: input, shape index: {}]
  %s23 = inlined_call_operand.hbm [shape: f32[1,128], index: 23, kind: input, shape index: {}]
  %s24 = inlined_call_operand.hbm [shape: f32[2,128], index: 24, kind: output, shape index: {}]
  %s25 = sld [smem:[#allocation0]]
  $region194: #{forward.1} parent=0
    _
  %s27 = ssub.s32 1, %s25
  %s28 = scalar_select 0, %s27, %s25
  $region1: #{forward.1} parent=0
    #allocation2 [shape = 'u8[131072]{0}', space=vmem, size = 0x20000, scoped, tag = 'input window, operand 2, single buffered']
    #allocation3 [shape = 's32[1]{0}', space=sflag, size = 0x4, scoped, tag = 'scoped memory for forward.1']
    #allocation4 [shape = 's32[1]{0}', space=sflag, size = 0x4, scoped, tag = 'scoped memory for forward.1']
    #allocation5 [shape = 'u8[2048]{0}', space=vmem, size = 0x800, scoped, tag = 'input window, operand 3, single buffered']
    #allocation6 [shape = 's32[1]{0}', space=sflag, size = 0x4, scoped, tag = 'scoped memory for forward.1']
    #allocation7 [shape = 'u8[524288]{0}', space=vmem, size = 0x80000, scoped, tag = 'input window, operand 4, single buffered']
    #allocation8 [shape = 'u8[2048]{0}', space=vmem, size = 0x800, scoped, tag = 'input window, operand 5, single buffered']
    #allocation9 [shape = 's32[1]{0}', space=sflag, size = 0x4, scoped, tag = 'scoped memory for forward.1']
    #allocation10 [shape = 'u8[65536]{0}', space=vmem, size = 0x10000, scoped, tag = 'input window, operand 6, single buffered']
    #allocation11 [shape = 'u8[512]{0}', space=vmem, size = 0x400, scoped, tag = 'input window, operand 7, single buffered']
    #allocation12 [shape = 's32[1]{0}', space=sflag, size = 0x4, scoped, tag = 'scoped memory for forward.1']
    #allocation13 [shape = 'u8[196608]{0}', space=vmem, size = 0x30000, scoped, tag = 'input window, operand 8, single buffered']
    #allocation14 [shape = 'u8[3072]{0}', space=vmem, size = 0xc00, scoped, tag = 'input window, operand 9, single buffered']
    #allocation15 [shape = 's32[1]{0}', space=sflag, size = 0x4, scoped, tag = 'scoped memory for forward.1']
    #allocation16 [shape = 'u8[65536]{0}', space=vmem, size = 0x10000, scoped, tag = 'input window, operand 10, single buffered']
    #allocation17 [shape = 'u8[1024]{0}', space=vmem, size = 0x400, scoped, tag = 'input window, operand 11, single buffered']
    #allocation18 [shape = 's32[1]{0}', space=sflag, size = 0x4, scoped, tag = 'scoped memory for forward.1']
    #allocation19 [shape = 'u8[131072]{0}', space=vmem, size = 0x20000, scoped, tag = 'input window, operand 12, single buffered']
    #allocation20 [shape = 'u8[2048]{0}', space=vmem, size = 0x800, scoped, tag = 'input window, operand 13, single buffered']
    #allocation21 [shape = 's32[1]{0}', space=sflag, size = 0x4, scoped, tag = 'scoped memory for forward.1']
    #allocation22 [shape = 'u8[131072]{0}', space=vmem, size = 0x20000, scoped, tag = 'input window, operand 14, single buffered']
    #allocation23 [shape = 'u8[1024]{0}', space=vmem, size = 0x400, scoped, tag = 'input window, operand 15, single buffered']
    #allocation24 [shape = 's32[1]{0}', space=sflag, size = 0x4, scoped, tag = 'scoped memory for forward.1']
    #allocation25 [shape = 'u8[1024]{0}', space=vmem, size = 0x400, scoped, tag = 'input window, operand 16, single buffered']
    #allocation26 [shape = 'u8[1024]{0}', space=vmem, size = 0x400, scoped, tag = 'input window, operand 17, single buffered']
    #allocation27 [shape = 's32[1]{0}', space=sflag, size = 0x4, scoped, tag = 'scoped memory for forward.1']
    #allocation28 [shape = 'u8[1024]{0}', space=vmem, size = 0x400, scoped, tag = 'input window, operand 18, single buffered']
    #allocation29 [shape = 'u8[1024]{0}', space=vmem, size = 0x400, scoped, tag = 'input window, operand 19, single buffered']
    #allocation30 [shape = 's32[1]{0}', space=sflag, size = 0x4, scoped, tag = 'scoped memory for forward.1']
    #allocation31 [shape = 'u8[512]{0}', space=vmem, size = 0x400, scoped, tag = 'input window, operand 20, single buffered']
    #allocation32 [shape = 'u8[512]{0}', space=vmem, size = 0x400, scoped, tag = 'input window, operand 21, single buffered']
    #allocation33 [shape = 's32[1]{0}', space=sflag, size = 0x4, scoped, tag = 'scoped memory for forward.1']
    #allocation34 [shape = 'u8[32768]{0}', space=vmem, size = 0x8000, scoped, tag = 'input window, operand 22, single buffered']
    #allocation35 [shape = 'u8[512]{0}', space=vmem, size = 0x400, scoped, tag = 'input window, operand 23, single buffered']
    #allocation36 [shape = 's32[1]{0}', space=sflag, size = 0x4, scoped, tag = 'scoped memory for forward.1']
    #allocation37 [shape = 'u8[1024]{0}', space=vmem, size = 0x400, scoped, tag = 'output window, operand 0, single buffered']
    %29 = vsyncpa [#allocation3], 0
    %30 = vsyncpa [#allocation6], 0
    %31 = vsyncpa [#allocation9], 0
    %32 = vsyncpa [#allocation12], 0
    %33 = vsyncpa [#allocation15], 0
    %34 = vsyncpa [#allocation18], 0
    %35 = vsyncpa [#allocation21], 0
    %36 = vsyncpa [#allocation24], 0
    %37 = vsyncpa [#allocation27], 0
    %38 = vsyncpa [#allocation30], 0
    %39 = vsyncpa [#allocation33], 0
    %40 = vsyncpa [#allocation36], 0
    %41 = vsyncpa [#allocation4], 0
    // Predicated region
    $region2: #{forward.1} parent=1 // pred_check
      _
    $region3: #{forward.1} parent=1 // pred_check_branch
      %43 = sbr.rel (0) target = $region5
    $region4: #{forward.1} parent=1 // pred_region
      _
    $region5: #{forward.1} parent=1 // pred_fallthru
      _
    // Predicated region
    $region6: #{forward.1} parent=1 // pred_check
      _
    $region7: #{forward.1} parent=1 // pred_check_branch
      %45 = sbr.rel (0) target = $region9
    $region8: #{forward.1} parent=1 // pred_region
      _
    $region9: #{forward.1} parent=1 // pred_fallthru
      _
    // Predicated region
    $region10: #{forward.1} parent=1 // pred_check
      _
    $region11: #{forward.1} parent=1 // pred_check_branch
      %47 = sbr.rel (0) target = $region13
    $region12: #{forward.1} parent=1 // pred_region
      %49 = vsyncadd [#allocation3], 0
      %s50 = sshll.u32 %s2, 4
      %s51 = int_to_ptr.hbm [resolvable:$true] %s50
      %s52 = sshll.u32 [#allocation2], 4
      %s53 = int_to_ptr.vmem [resolvable:$true] %s52
      %58 = dma.hbm_to_vmem [thread:$0]  %s51, 4096, %s53, [#allocation3], 512, 512, 32
    $region13: #{forward.1} parent=1 // pred_fallthru
      _
    // Predicated region
    $region14: #{forward.1} parent=1 // pred_check
      _
    $region15: #{forward.1} parent=1 // pred_check_branch
      %60 = sbr.rel (0) target = $region17
    $region16: #{forward.1} parent=1 // pred_region
      %62 = vsyncadd [#allocation6], 0
      %s64 = sshll.u32 %s3, 4
      %s65 = int_to_ptr.hbm [resolvable:$true] %s64
      %s66 = sshll.u32 [#allocation5], 4
      %s67 = int_to_ptr.vmem [resolvable:$true] %s66
      %69 = dma.hbm_to_vmem [thread:$0]  %s65, 64, %s67, [#allocation6]
    $region17: #{forward.1} parent=1 // pred_fallthru
      _
    // Predicated region
    $region18: #{forward.1} parent=1 // pred_check
      _
    $region19: #{forward.1} parent=1 // pred_check_branch
      %71 = sbr.rel (0) target = $region21
    $region20: #{forward.1} parent=1 // pred_region
      %73 = vsyncadd [#allocation6], 0
      %s74 = sshll.u32 %s4, 4
      %s75 = int_to_ptr.hbm [resolvable:$true] %s74
      %s76 = sshll.u32 [#allocation7], 4
      %s77 = int_to_ptr.vmem [resolvable:$true] %s76
      %82 = dma.hbm_to_vmem [thread:$0]  %s75, 16384, %s77, [#allocation6], 512, 512, 32
    $region21: #{forward.1} parent=1 // pred_fallthru
      _
    // Predicated region
    $region22: #{forward.1} parent=1 // pred_check
      _
    $region23: #{forward.1} parent=1 // pred_check_branch
      %84 = sbr.rel (0) target = $region25
    $region24: #{forward.1} parent=1 // pred_region
      %86 = vsyncadd [#allocation9], 0
      %s88 = sshll.u32 %s5, 4
      %s89 = int_to_ptr.hbm [resolvable:$true] %s88
      %s90 = sshll.u32 [#allocation8], 4
      %s91 = int_to_ptr.vmem [resolvable:$true] %s90
      %93 = dma.hbm_to_vmem [thread:$0]  %s89, 64, %s91, [#allocation9]
    $region25: #{forward.1} parent=1 // pred_fallthru
      _
    // Predicated region
    $region26: #{forward.1} parent=1 // pred_check
      _
    $region27: #{forward.1} parent=1 // pred_check_branch
      %95 = sbr.rel (0) target = $region29
    $region28: #{forward.1} parent=1 // pred_region
      %97 = vsyncadd [#allocation9], 0
      %s98 = sshll.u32 %s6, 4
      %s99 = int_to_ptr.hbm [resolvable:$true] %s98
      %s100 = sshll.u32 [#allocation10], 4
      %s101 = int_to_ptr.vmem [resolvable:$true] %s100
      %106 = dma.hbm_to_vmem [thread:$0]  %s99, 2048, %s101, [#allocation9], 64, 64, 4
    $region29: #{forward.1} parent=1 // pred_fallthru
      _
    // Predicated region
    $region30: #{forward.1} parent=1 // pred_check
      _
    $region31: #{forward.1} parent=1 // pred_check_branch
      %108 = sbr.rel (0) target = $region33
    $region32: #{forward.1} parent=1 // pred_region
      %110 = vsyncadd [#allocation12], 0
      %s112 = sshll.u32 %s7, 4
      %s113 = int_to_ptr.hbm [resolvable:$true] %s112
      %s114 = sshll.u32 [#allocation11], 4
      %s115 = int_to_ptr.vmem [resolvable:$true] %s114
      %117 = dma.hbm_to_vmem [thread:$0]  %s113, 16, %s115, [#allocation12]
    $region33: #{forward.1} parent=1 // pred_fallthru
      _
    // Predicated region
    $region34: #{forward.1} parent=1 // pred_check
      _
    $region35: #{forward.1} parent=1 // pred_check_branch
      %119 = sbr.rel (0) target = $region37
    $region36: #{forward.1} parent=1 // pred_region
      %121 = vsyncadd [#allocation12], 0
      %s122 = sshll.u32 %s8, 4
      %s123 = int_to_ptr.hbm [resolvable:$true] %s122
      %s124 = sshll.u32 [#allocation13], 4
      %s125 = int_to_ptr.vmem [resolvable:$true] %s124
      %130 = dma.hbm_to_vmem [thread:$0]  %s123, 6144, %s125, [#allocation12], 192, 192, 12
    $region37: #{forward.1} parent=1 // pred_fallthru
      _
    // Predicated region
    $region38: #{forward.1} parent=1 // pred_check
      _
    $region39: #{forward.1} parent=1 // pred_check_branch
      %132 = sbr.rel (0) target = $region41
    $region40: #{forward.1} parent=1 // pred_region
      %134 = vsyncadd [#allocation15], 0
      %s135 = sshll.u32 %s9, 4
      %s136 = int_to_ptr.hbm [resolvable:$true] %s135
      %s137 = sshll.u32 [#allocation14], 4
      %s138 = int_to_ptr.vmem [resolvable:$true] %s137
      %143 = dma.hbm_to_vmem [thread:$0]  %s136, 96, %s138, [#allocation15], 48, 48, 3
    $region41: #{forward.1} parent=1 // pred_fallthru
      _
    // Predicated region
    $region42: #{forward.1} parent=1 // pred_check
      _
    $region43: #{forward.1} parent=1 // pred_check_branch
      %145 = sbr.rel (0) target = $region45
    $region44: #{forward.1} parent=1 // pred_region
      %147 = vsyncadd [#allocation15], 0
      %s148 = sshll.u32 %s10, 4
      %s149 = int_to_ptr.hbm [resolvable:$true] %s148
      %s150 = sshll.u32 [#allocation16], 4
      %s151 = int_to_ptr.vmem [resolvable:$true] %s150
      %156 = dma.hbm_to_vmem [thread:$0]  %s149, 2048, %s151, [#allocation15], 64, 64, 4
    $region45: #{forward.1} parent=1 // pred_fallthru
      _
    // Predicated region
    $region46: #{forward.1} parent=1 // pred_check
      _
    $region47: #{forward.1} parent=1 // pred_check_branch
      %158 = sbr.rel (0) target = $region49
    $region48: #{forward.1} parent=1 // pred_region
      %160 = vsyncadd [#allocation18], 0
      %s161 = sshll.u32 %s11, 4
      %s162 = int_to_ptr.hbm [resolvable:$true] %s161
      %s163 = sshll.u32 [#allocation17], 4
      %s164 = int_to_ptr.vmem [resolvable:$true] %s163
      %169 = dma.hbm_to_vmem [thread:$0]  %s162, 32, %s164, [#allocation18], 16, 16, 1
    $region49: #{forward.1} parent=1 // pred_fallthru
      _
    // Predicated region
    $region50: #{forward.1} parent=1 // pred_check
      _
    $region51: #{forward.1} parent=1 // pred_check_branch
      %171 = sbr.rel (0) target = $region53
    $region52: #{forward.1} parent=1 // pred_region
      %173 = vsyncadd [#allocation18], 0
      %s174 = sshll.u32 %s12, 4
      %s175 = int_to_ptr.hbm [resolvable:$true] %s174
      %s176 = sshll.u32 [#allocation19], 4
      %s177 = int_to_ptr.vmem [resolvable:$true] %s176
      %182 = dma.hbm_to_vmem [thread:$0]  %s175, 4096, %s177, [#allocation18], 128, 128, 8
    $region53: #{forward.1} parent=1 // pred_fallthru
      _
    // Predicated region
    $region54: #{forward.1} parent=1 // pred_check
      _
    $region55: #{forward.1} parent=1 // pred_check_branch
      %184 = sbr.rel (0) target = $region57
    $region56: #{forward.1} parent=1 // pred_region
      %186 = vsyncadd [#allocation21], 0
      %s187 = sshll.u32 %s13, 4
      %s188 = int_to_ptr.hbm [resolvable:$true] %s187
      %s189 = sshll.u32 [#allocation20], 4
      %s190 = int_to_ptr.vmem [resolvable:$true] %s189
      %195 = dma.hbm_to_vmem [thread:$0]  %s188, 64, %s190, [#allocation21], 32, 32, 2
    $region57: #{forward.1} parent=1 // pred_fallthru
      _
    // Predicated region
    $region58: #{forward.1} parent=1 // pred_check
      _
    $region59: #{forward.1} parent=1 // pred_check_branch
      %197 = sbr.rel (0) target = $region61
    $region60: #{forward.1} parent=1 // pred_region
      %199 = vsyncadd [#allocation21], 0
      %s200 = sshll.u32 %s14, 4
      %s201 = int_to_ptr.hbm [resolvable:$true] %s200
      %s202 = sshll.u32 [#allocation22], 4
      %s203 = int_to_ptr.vmem [resolvable:$true] %s202
      %208 = dma.hbm_to_vmem [thread:$0]  %s201, 4096, %s203, [#allocation21], 64, 64, 4
    $region61: #{forward.1} parent=1 // pred_fallthru
      _
    // Predicated region
    $region62: #{forward.1} parent=1 // pred_check
      _
    $region63: #{forward.1} parent=1 // pred_check_branch
      %210 = sbr.rel (0) target = $region65
    $region64: #{forward.1} parent=1 // pred_region
      %212 = vsyncadd [#allocation24], 0
      %s213 = sshll.u32 %s15, 4
      %s214 = int_to_ptr.hbm [resolvable:$true] %s213
      %s215 = sshll.u32 [#allocation23], 4
      %s216 = int_to_ptr.vmem [resolvable:$true] %s215
      %221 = dma.hbm_to_vmem [thread:$0]  %s214, 32, %s216, [#allocation24], 16, 16, 1
    $region65: #{forward.1} parent=1 // pred_fallthru
      _
    // Predicated region
    $region66: #{forward.1} parent=1 // pred_check
      _
    $region67: #{forward.1} parent=1 // pred_check_branch
      %223 = sbr.rel (0) target = $region69
    $region68: #{forward.1} parent=1 // pred_region
      %225 = vsyncadd [#allocation24], 0
      %s226 = sshll.u32 %s16, 4
      %s227 = int_to_ptr.hbm [resolvable:$true] %s226
      %s228 = sshll.u32 [#allocation25], 4
      %s229 = int_to_ptr.vmem [resolvable:$true] %s228
      %234 = dma.hbm_to_vmem [thread:$0]  %s227, 32, %s229, [#allocation24], 16, 16, 1
    $region69: #{forward.1} parent=1 // pred_fallthru
      _
    // Predicated region
    $region70: #{forward.1} parent=1 // pred_check
      _
    $region71: #{forward.1} parent=1 // pred_check_branch
      %236 = sbr.rel (0) target = $region73
    $region72: #{forward.1} parent=1 // pred_region
      %238 = vsyncadd [#allocation27], 0
      %s239 = sshll.u32 %s17, 4
      %s240 = int_to_ptr.hbm [resolvable:$true] %s239
      %s241 = sshll.u32 [#allocation26], 4
      %s242 = int_to_ptr.vmem [resolvable:$true] %s241
      %247 = dma.hbm_to_vmem [thread:$0]  %s240, 32, %s242, [#allocation27], 16, 16, 1
    $region73: #{forward.1} parent=1 // pred_fallthru
      _
    // Predicated region
    $region74: #{forward.1} parent=1 // pred_check
      _
    $region75: #{forward.1} parent=1 // pred_check_branch
      %249 = sbr.rel (0) target = $region77
    $region76: #{forward.1} parent=1 // pred_region
      %251 = vsyncadd [#allocation27], 0
      %s252 = sshll.u32 %s18, 4
      %s253 = int_to_ptr.hbm [resolvable:$true] %s252
      %s254 = sshll.u32 [#allocation28], 4
      %s255 = int_to_ptr.vmem [resolvable:$true] %s254
      %260 = dma.hbm_to_vmem [thread:$0]  %s253, 32, %s255, [#allocation27], 16, 16, 1
    $region77: #{forward.1} parent=1 // pred_fallthru
      _
    // Predicated region
    $region78: #{forward.1} parent=1 // pred_check
      _
    $region79: #{forward.1} parent=1 // pred_check_branch
      %262 = sbr.rel (0) target = $region81
    $region80: #{forward.1} parent=1 // pred_region
      %264 = vsyncadd [#allocation30], 0
      %s265 = sshll.u32 %s19, 4
      %s266 = int_to_ptr.hbm [resolvable:$true] %s265
      %s267 = sshll.u32 [#allocation29], 4
      %s268 = int_to_ptr.vmem [resolvable:$true] %s267
      %273 = dma.hbm_to_vmem [thread:$0]  %s266, 32, %s268, [#allocation30], 16, 16, 1
    $region81: #{forward.1} parent=1 // pred_fallthru
      _
    // Predicated region
    $region82: #{forward.1} parent=1 // pred_check
      _
    $region83: #{forward.1} parent=1 // pred_check_branch
      %275 = sbr.rel (0) target = $region85
    $region84: #{forward.1} parent=1 // pred_region
      %277 = vsyncadd [#allocation30], 0
      %s279 = sshll.u32 %s20, 4
      %s280 = int_to_ptr.hbm [resolvable:$true] %s279
      %s281 = sshll.u32 [#allocation31], 4
      %s282 = int_to_ptr.vmem [resolvable:$true] %s281
      %284 = dma.hbm_to_vmem [thread:$0]  %s280, 16, %s282, [#allocation30]
    $region85: #{forward.1} parent=1 // pred_fallthru
      _
    // Predicated region
    $region86: #{forward.1} parent=1 // pred_check
      _
    $region87: #{forward.1} parent=1 // pred_check_branch
      %286 = sbr.rel (0) target = $region89
    $region88: #{forward.1} parent=1 // pred_region
      %288 = vsyncadd [#allocation33], 0
      %s290 = sshll.u32 %s21, 4
      %s291 = int_to_ptr.hbm [resolvable:$true] %s290
      %s292 = sshll.u32 [#allocation32], 4
      %s293 = int_to_ptr.vmem [resolvable:$true] %s292
      %295 = dma.hbm_to_vmem [thread:$0]  %s291, 16, %s293, [#allocation33]
    $region89: #{forward.1} parent=1 // pred_fallthru
      _
    // Predicated region
    $region90: #{forward.1} parent=1 // pred_check
      _
    $region91: #{forward.1} parent=1 // pred_check_branch
      %297 = sbr.rel (0) target = $region93
    $region92: #{forward.1} parent=1 // pred_region
      %299 = vsyncadd [#allocation33], 0
      %s300 = sshll.u32 %s22, 4
      %s301 = int_to_ptr.hbm [resolvable:$true] %s300
      %s302 = sshll.u32 [#allocation34], 4
      %s303 = int_to_ptr.vmem [resolvable:$true] %s302
      %308 = dma.hbm_to_vmem [thread:$0]  %s301, 1024, %s303, [#allocation33], 64, 64, 4
    $region93: #{forward.1} parent=1 // pred_fallthru
      _
    // Predicated region
    $region94: #{forward.1} parent=1 // pred_check
      _
    $region95: #{forward.1} parent=1 // pred_check_branch
      %310 = sbr.rel (0) target = $region97
    $region96: #{forward.1} parent=1 // pred_region
      %312 = vsyncadd [#allocation36], 0
      %s314 = sshll.u32 %s23, 4
      %s315 = int_to_ptr.hbm [resolvable:$true] %s314
      %s316 = sshll.u32 [#allocation35], 4
      %s317 = int_to_ptr.vmem [resolvable:$true] %s316
      %319 = dma.hbm_to_vmem [thread:$0]  %s315, 16, %s317, [#allocation36]
    $region97: #{forward.1} parent=1 // pred_fallthru
      _
    // Predicated region
    $region98: #{forward.1} parent=1 // pred_check
      _
    $region99: #{forward.1} parent=1 // pred_check_branch
      %321 = sbr.rel (0) target = $region101
    $region100: #{forward.1} parent=1 // pred_region
      %323 = dma.done [#allocation3], 4096
    $region101: #{forward.1} parent=1 // pred_fallthru
      _
    // Predicated region
    $region102: #{forward.1} parent=1 // pred_check
      _
    $region103: #{forward.1} parent=1 // pred_check_branch
      %325 = sbr.rel (0) target = $region105
    $region104: #{forward.1} parent=1 // pred_region
      %327 = dma.done [#allocation6], 64
    $region105: #{forward.1} parent=1 // pred_fallthru
      _
    // Predicated region
    $region106: #{forward.1} parent=1 // pred_check
      _
    $region107: #{forward.1} parent=1 // pred_check_branch
      %329 = sbr.rel (0) target = $region109
    $region108: #{forward.1} parent=1 // pred_region
      %331 = dma.done [#allocation6], 16384
    $region109: #{forward.1} parent=1 // pred_fallthru
      _
    // Predicated region
    $region110: #{forward.1} parent=1 // pred_check
      _
    $region111: #{forward.1} parent=1 // pred_check_branch
      %333 = sbr.rel (0) target = $region113
    $region112: #{forward.1} parent=1 // pred_region
      %335 = dma.done [#allocation9], 64
    $region113: #{forward.1} parent=1 // pred_fallthru
      _
    // Predicated region
    $region114: #{forward.1} parent=1 // pred_check
      _
    $region115: #{forward.1} parent=1 // pred_check_branch
      %337 = sbr.rel (0) target = $region117
    $region116: #{forward.1} parent=1 // pred_region
      %339 = dma.done [#allocation9], 2048
    $region117: #{forward.1} parent=1 // pred_fallthru
      _
    // Predicated region
    $region118: #{forward.1} parent=1 // pred_check
      _
    $region119: #{forward.1} parent=1 // pred_check_branch
      %341 = sbr.rel (0) target = $region121
    $region120: #{forward.1} parent=1 // pred_region
      %343 = dma.done [#allocation12], 16
    $region121: #{forward.1} parent=1 // pred_fallthru
      _
    // Predicated region
    $region122: #{forward.1} parent=1 // pred_check
      _
    $region123: #{forward.1} parent=1 // pred_check_branch
      %345 = sbr.rel (0) target = $region125
    $region124: #{forward.1} parent=1 // pred_region
      %347 = dma.done [#allocation12], 6144
    $region125: #{forward.1} parent=1 // pred_fallthru
      _
    // Predicated region
    $region126: #{forward.1} parent=1 // pred_check
      _
    $region127: #{forward.1} parent=1 // pred_check_branch
      %349 = sbr.rel (0) target = $region129
    $region128: #{forward.1} parent=1 // pred_region
      %351 = dma.done [#allocation15], 96
    $region129: #{forward.1} parent=1 // pred_fallthru
      _
    // Predicated region
    $region130: #{forward.1} parent=1 // pred_check
      _
    $region131: #{forward.1} parent=1 // pred_check_branch
      %353 = sbr.rel (0) target = $region133
    $region132: #{forward.1} parent=1 // pred_region
      %355 = dma.done [#allocation15], 2048
    $region133: #{forward.1} parent=1 // pred_fallthru
      _
    // Predicated region
    $region134: #{forward.1} parent=1 // pred_check
      _
    $region135: #{forward.1} parent=1 // pred_check_branch
      %357 = sbr.rel (0) target = $region137
    $region136: #{forward.1} parent=1 // pred_region
      %359 = dma.done [#allocation18], 32
    $region137: #{forward.1} parent=1 // pred_fallthru
      _
    // Predicated region
    $region138: #{forward.1} parent=1 // pred_check
      _
    $region139: #{forward.1} parent=1 // pred_check_branch
      %361 = sbr.rel (0) target = $region141
    $region140: #{forward.1} parent=1 // pred_region
      %363 = dma.done [#allocation18], 4096
    $region141: #{forward.1} parent=1 // pred_fallthru
      _
    // Predicated region
    $region142: #{forward.1} parent=1 // pred_check
      _
    $region143: #{forward.1} parent=1 // pred_check_branch
      %365 = sbr.rel (0) target = $region145
    $region144: #{forward.1} parent=1 // pred_region
      %367 = dma.done [#allocation21], 64
    $region145: #{forward.1} parent=1 // pred_fallthru
      _
    // Predicated region
    $region146: #{forward.1} parent=1 // pred_check
      _
    $region147: #{forward.1} parent=1 // pred_check_branch
      %369 = sbr.rel (0) target = $region149
    $region148: #{forward.1} parent=1 // pred_region
      %371 = dma.done [#allocation21], 4096
    $region149: #{forward.1} parent=1 // pred_fallthru
      _
    // Predicated region
    $region150: #{forward.1} parent=1 // pred_check
      _
    $region151: #{forward.1} parent=1 // pred_check_branch
      %373 = sbr.rel (0) target = $region153
    $region152: #{forward.1} parent=1 // pred_region
      %375 = dma.done [#allocation24], 32
    $region153: #{forward.1} parent=1 // pred_fallthru
      _
    // Predicated region
    $region154: #{forward.1} parent=1 // pred_check
      _
    $region155: #{forward.1} parent=1 // pred_check_branch
      %377 = sbr.rel (0) target = $region157
    $region156: #{forward.1} parent=1 // pred_region
      %379 = dma.done [#allocation24], 32
    $region157: #{forward.1} parent=1 // pred_fallthru
      _
    // Predicated region
    $region158: #{forward.1} parent=1 // pred_check
      _
    $region159: #{forward.1} parent=1 // pred_check_branch
      %381 = sbr.rel (0) target = $region161
    $region160: #{forward.1} parent=1 // pred_region
      %383 = dma.done [#allocation27], 32
    $region161: #{forward.1} parent=1 // pred_fallthru
      _
    // Predicated region
    $region162: #{forward.1} parent=1 // pred_check
      _
    $region163: #{forward.1} parent=1 // pred_check_branch
      %385 = sbr.rel (0) target = $region165
    $region164: #{forward.1} parent=1 // pred_region
      %387 = dma.done [#allocation27], 32
    $region165: #{forward.1} parent=1 // pred_fallthru
      _
    // Predicated region
    $region166: #{forward.1} parent=1 // pred_check
      _
    $region167: #{forward.1} parent=1 // pred_check_branch
      %389 = sbr.rel (0) target = $region169
    $region168: #{forward.1} parent=1 // pred_region
      %391 = dma.done [#allocation30], 32
    $region169: #{forward.1} parent=1 // pred_fallthru
      _
    // Predicated region
    $region170: #{forward.1} parent=1 // pred_check
      _
    $region171: #{forward.1} parent=1 // pred_check_branch
      %393 = sbr.rel (0) target = $region173
    $region172: #{forward.1} parent=1 // pred_region
      %395 = dma.done [#allocation30], 16
    $region173: #{forward.1} parent=1 // pred_fallthru
      _
    // Predicated region
    $region174: #{forward.1} parent=1 // pred_check
      _
    $region175: #{forward.1} parent=1 // pred_check_branch
      %397 = sbr.rel (0) target = $region177
    $region176: #{forward.1} parent=1 // pred_region
      %399 = dma.done [#allocation33], 16
    $region177: #{forward.1} parent=1 // pred_fallthru
      _
    // Predicated region
    $region178: #{forward.1} parent=1 // pred_check
      _
    $region179: #{forward.1} parent=1 // pred_check_branch
      %401 = sbr.rel (0) target = $region181
    $region180: #{forward.1} parent=1 // pred_region
      %403 = dma.done [#allocation33], 1024
    $region181: #{forward.1} parent=1 // pred_fallthru
      _
    // Predicated region
    $region182: #{forward.1} parent=1 // pred_check
      _
    $region183: #{forward.1} parent=1 // pred_check_branch
      %405 = sbr.rel (0) target = $region185
    $region184: #{forward.1} parent=1 // pred_region
      %407 = dma.done [#allocation36], 16
    $region185: #{forward.1} parent=1 // pred_fallthru
      _
    %v409 = vld [vmem:[%s0] sm:$0xff]
    %v410 = vld [vmem:[%s0 + $0x8] sm:$0xff]
    %v411 = vld [vmem:[#allocation2] sm:$0xff]
    %v412 = vld [vmem:[#allocation2 + $0x8] sm:$0xff]
    %v413 = vld [vmem:[#allocation2 + $0x10] sm:$0xff]
    %v414 = vld [vmem:[#allocation2 + $0x18] sm:$0xff]
    %v415 = vld [vmem:[#allocation2 + $0x20] sm:$0xff]
    %v416 = vld [vmem:[#allocation2 + $0x28] sm:$0xff]
    %v417 = vld [vmem:[#allocation2 + $0x30] sm:$0xff]
    %v418 = vld [vmem:[#allocation2 + $0x38] sm:$0xff]
    %v419 = vld [vmem:[#allocation2 + $0x40] sm:$0xff]
    %v420 = vld [vmem:[#allocation2 + $0x48] sm:$0xff]
    %v421 = vld [vmem:[#allocation2 + $0x50] sm:$0xff]
    %v422 = vld [vmem:[#allocation2 + $0x58] sm:$0xff]
    %v423 = vld [vmem:[#allocation2 + $0x60] sm:$0xff]
    %v424 = vld [vmem:[#allocation2 + $0x68] sm:$0xff]
    %v425 = vld [vmem:[#allocation2 + $0x70] sm:$0xff]
    %v426 = vld [vmem:[#allocation2 + $0x78] sm:$0xff]
    %v427 = vld [vmem:[#allocation2 + $0x80] sm:$0xff]
    %v428 = vld [vmem:[#allocation2 + $0x88] sm:$0xff]
    %v429 = vld [vmem:[#allocation2 + $0x90] sm:$0xff]
    %v430 = vld [vmem:[#allocation2 + $0x98] sm:$0xff]
    %v431 = vld [vmem:[#allocation2 + $0xa0] sm:$0xff]
    %v432 = vld [vmem:[#allocation2 + $0xa8] sm:$0xff]
    %v433 = vld [vmem:[#allocation2 + $0xb0] sm:$0xff]
    %v434 = vld [vmem:[#allocation2 + $0xb8] sm:$0xff]
    %v435 = vld [vmem:[#allocation2 + $0xc0] sm:$0xff]
    %v436 = vld [vmem:[#allocation2 + $0xc8] sm:$0xff]
    %v437 = vld [vmem:[#allocation2 + $0xd0] sm:$0xff]
    %v438 = vld [vmem:[#allocation2 + $0xd8] sm:$0xff]
    %v439 = vld [vmem:[#allocation2 + $0xe0] sm:$0xff]
    %v440 = vld [vmem:[#allocation2 + $0xe8] sm:$0xff]
    %v441 = vld [vmem:[#allocation2 + $0xf0] sm:$0xff]
    %v442 = vld [vmem:[#allocation2 + $0xf8] sm:$0xff]
    %v443 = vld [vmem:[#allocation5] sm:$0xf]
    %v445 = vperm.slane %v443, 0
    %v446 = vperm.slane %v443, 1
    %v447 = vperm.slane %v443, 2
    %v448 = vperm.slane %v443, 3
    %vm453 = vcmask 523264
    %v455 = vsel %vm453, %v409, 0
    %v458 = vsel %vm453, %v410, 0
    %460 = vmatpush.msra.mxu0 0.0
    %461 = vmatpush.msra.mxu0 0.0
    %462 = vmatpush.msra.mxu0 0.0
    %463 = vmatpush.msra.mxu0 0.0
    %464 = vmatpush.msra.mxu0 0.0
    %465 = vmatpush.msra.mxu0 0.0
    %466 = vmatpush.msra.mxu0 0.0
    %467 = vmatpush.msra.mxu0 0.0
    %468 = vmatpush.msra.mxu0 %v439
    %469 = vmatpush.msra.mxu0 %v435
    %470 = vmatpush.msra.mxu0 %v431
    %471 = vmatpush.msra.mxu0 %v427
    %472 = vmatpush.msra.mxu0 %v423
    %473 = vmatpush.msra.mxu0 %v419
    %474 = vmatpush.msra.mxu0 %v415
    %475 = vmatpush.msra.mxu0 %v411
    %476 = vmatmul.f32.gmra.mxu0 %v455
    %v477 = vpop.f32.mrf.mxu0
    %v478 = vadd.f32 %v445, %v477
    %479 = vmatmul.f32.gmra.mxu0 %v458
    %v480 = vpop.f32.mrf.mxu0
    %v481 = vadd.f32 %v445, %v480
    %482 = vdwg.mxu0
    %483 = vmatpush.msra.mxu0 0.0
    %484 = vmatpush.msra.mxu0 0.0
    %485 = vmatpush.msra.mxu0 0.0
    %486 = vmatpush.msra.mxu0 0.0
    %487 = vmatpush.msra.mxu0 0.0
    %488 = vmatpush.msra.mxu0 0.0
    %489 = vmatpush.msra.mxu0 0.0
    %490 = vmatpush.msra.mxu0 0.0
    %491 = vmatpush.msra.mxu0 %v440
    %492 = vmatpush.msra.mxu0 %v436
    %493 = vmatpush.msra.mxu0 %v432
    %494 = vmatpush.msra.mxu0 %v428
    %495 = vmatpush.msra.mxu0 %v424
    %496 = vmatpush.msra.mxu0 %v420
    %497 = vmatpush.msra.mxu0 %v416
    %498 = vmatpush.msra.mxu0 %v412
    %499 = vmatmul.f32.gmra.mxu0 %v455
    %v500 = vpop.f32.mrf.mxu0
    %v501 = vadd.f32 %v446, %v500
    %502 = vmatmul.f32.gmra.mxu0 %v458
    %v503 = vpop.f32.mrf.mxu0
    %v504 = vadd.f32 %v446, %v503
    %505 = vdwg.mxu0
    %506 = vmatpush.msra.mxu0 0.0
    %507 = vmatpush.msra.mxu0 0.0
    %508 = vmatpush.msra.mxu0 0.0
    %509 = vmatpush.msra.mxu0 0.0
    %510 = vmatpush.msra.mxu0 0.0
    %511 = vmatpush.msra.mxu0 0.0
    %512 = vmatpush.msra.mxu0 0.0
    %513 = vmatpush.msra.mxu0 0.0
    %514 = vmatpush.msra.mxu0 %v441
    %515 = vmatpush.msra.mxu0 %v437
    %516 = vmatpush.msra.mxu0 %v433
    %517 = vmatpush.msra.mxu0 %v429
    %518 = vmatpush.msra.mxu0 %v425
    %519 = vmatpush.msra.mxu0 %v421
    %520 = vmatpush.msra.mxu0 %v417
    %521 = vmatpush.msra.mxu0 %v413
    %522 = vmatmul.f32.gmra.mxu0 %v455
    %v523 = vpop.f32.mrf.mxu0
    %v524 = vadd.f32 %v447, %v523
    %525 = vmatmul.f32.gmra.mxu0 %v458
    %v526 = vpop.f32.mrf.mxu0
    %v527 = vadd.f32 %v447, %v526
    %528 = vdwg.mxu0
    %529 = vmatpush.msra.mxu0 0.0
    %530 = vmatpush.msra.mxu0 0.0
    %531 = vmatpush.msra.mxu0 0.0
    %532 = vmatpush.msra.mxu0 0.0
    %533 = vmatpush.msra.mxu0 0.0
    %534 = vmatpush.msra.mxu0 0.0
    %535 = vmatpush.msra.mxu0 0.0
    %536 = vmatpush.msra.mxu0 0.0
    %537 = vmatpush.msra.mxu0 %v442
    %538 = vmatpush.msra.mxu0 %v438
    %539 = vmatpush.msra.mxu0 %v434
    %540 = vmatpush.msra.mxu0 %v430
    %541 = vmatpush.msra.mxu0 %v426
    %542 = vmatpush.msra.mxu0 %v422
    %543 = vmatpush.msra.mxu0 %v418
    %544 = vmatpush.msra.mxu0 %v414
    %545 = vmatmul.f32.gmra.mxu0 %v455
    %v546 = vpop.f32.mrf.mxu0
    %v547 = vadd.f32 %v448, %v546
    %548 = vmatmul.f32.gmra.mxu0 %v458
    %v549 = vpop.f32.mrf.mxu0
    %v550 = vadd.f32 %v448, %v549
    %551 = vdwg.mxu0
    %v552 = vmax.f32 %v478, 0.0
    %v553 = vmax.f32 %v501, 0.0
    %v554 = vmax.f32 %v524, 0.0
    %v555 = vmax.f32 %v547, 0.0
    %v556 = vmax.f32 %v481, 0.0
    %v557 = vmax.f32 %v504, 0.0
    %v558 = vmax.f32 %v527, 0.0
    %v559 = vmax.f32 %v550, 0.0
    %v560 = vmax.f32 %v552, %v554
    %v561 = vmax.f32 %v553, %v555
    %v562 = vmax.f32 %v556, %v558
    %v563 = vmax.f32 %v557, %v559
    %v564 = vld [vmem:[#allocation7] sm:$0xff]
    %v565 = vld [vmem:[#allocation7 + $0x8] sm:$0xff]
    %v566 = vld [vmem:[#allocation7 + $0x10] sm:$0xff]
    %v567 = vld [vmem:[#allocation7 + $0x18] sm:$0xff]
    %v568 = vld [vmem:[#allocation7 + $0x20] sm:$0xff]
    %v569 = vld [vmem:[#allocation7 + $0x28] sm:$0xff]
    %v570 = vld [vmem:[#allocation7 + $0x30] sm:$0xff]
    %v571 = vld [vmem:[#allocation7 + $0x38] sm:$0xff]
    %v572 = vld [vmem:[#allocation7 + $0x40] sm:$0xff]
    %v573 = vld [vmem:[#allocation7 + $0x48] sm:$0xff]
    %v574 = vld [vmem:[#allocation7 + $0x50] sm:$0xff]
    %v575 = vld [vmem:[#allocation7 + $0x58] sm:$0xff]
    %v576 = vld [vmem:[#allocation7 + $0x60] sm:$0xff]
    %v577 = vld [vmem:[#allocation7 + $0x68] sm:$0xff]
    %v578 = vld [vmem:[#allocation7 + $0x70] sm:$0xff]
    %v579 = vld [vmem:[#allocation7 + $0x78] sm:$0xff]
    %v580 = vld [vmem:[#allocation7 + $0x80] sm:$0xff]
    %v581 = vld [vmem:[#allocation7 + $0x88] sm:$0xff]
    %v582 = vld [vmem:[#allocation7 + $0x90] sm:$0xff]
    %v583 = vld [vmem:[#allocation7 + $0x98] sm:$0xff]
    %v584 = vld [vmem:[#allocation7 + $0xa0] sm:$0xff]
    %v585 = vld [vmem:[#allocation7 + $0xa8] sm:$0xff]
    %v586 = vld [vmem:[#allocation7 + $0xb0] sm:$0xff]
    %v587 = vld [vmem:[#allocation7 + $0xb8] sm:$0xff]
    %v588 = vld [vmem:[#allocation7 + $0xc0] sm:$0xff]
    %v589 = vld [vmem:[#allocation7 + $0xc8] sm:$0xff]
    %v590 = vld [vmem:[#allocation7 + $0xd0] sm:$0xff]
    %v591 = vld [vmem:[#allocation7 + $0xd8] sm:$0xff]
    %v592 = vld [vmem:[#allocation7 + $0xe0] sm:$0xff]
    %v593 = vld [vmem:[#allocation7 + $0xe8] sm:$0xff]
    %v594 = vld [vmem:[#allocation7 + $0xf0] sm:$0xff]
    %v595 = vld [vmem:[#allocation7 + $0xf8] sm:$0xff]
    %v596 = vld [vmem:[#allocation7 + $0x100] sm:$0xff]
    %v597 = vld [vmem:[#allocation7 + $0x108] sm:$0xff]
    %v598 = vld [vmem:[#allocation7 + $0x110] sm:$0xff]
    %v599 = vld [vmem:[#allocation7 + $0x118] sm:$0xff]
    %v600 = vld [vmem:[#allocation7 + $0x120] sm:$0xff]
    %v601 = vld [vmem:[#allocation7 + $0x128] sm:$0xff]
    %v602 = vld [vmem:[#allocation7 + $0x130] sm:$0xff]
    %v603 = vld [vmem:[#allocation7 + $0x138] sm:$0xff]
    %v604 = vld [vmem:[#allocation7 + $0x140] sm:$0xff]
    %v605 = vld [vmem:[#allocation7 + $0x148] sm:$0xff]
    %v606 = vld [vmem:[#allocation7 + $0x150] sm:$0xff]
    %v607 = vld [vmem:[#allocation7 + $0x158] sm:$0xff]
    %v608 = vld [vmem:[#allocation7 + $0x160] sm:$0xff]
    %v609 = vld [vmem:[#allocation7 + $0x168] sm:$0xff]
    %v610 = vld [vmem:[#allocation7 + $0x170] sm:$0xff]
    %v611 = vld [vmem:[#allocation7 + $0x178] sm:$0xff]
    %v612 = vld [vmem:[#allocation7 + $0x180] sm:$0xff]
    %v613 = vld [vmem:[#allocation7 + $0x188] sm:$0xff]
    %v614 = vld [vmem:[#allocation7 + $0x190] sm:$0xff]
    %v615 = vld [vmem:[#allocation7 + $0x198] sm:$0xff]
    %v616 = vld [vmem:[#allocation7 + $0x1a0] sm:$0xff]
    %v617 = vld [vmem:[#allocation7 + $0x1a8] sm:$0xff]
    %v618 = vld [vmem:[#allocation7 + $0x1b0] sm:$0xff]
    %v619 = vld [vmem:[#allocation7 + $0x1b8] sm:$0xff]
    %v620 = vld [vmem:[#allocation7 + $0x1c0] sm:$0xff]
    %v621 = vld [vmem:[#allocation7 + $0x1c8] sm:$0xff]
    %v622 = vld [vmem:[#allocation7 + $0x1d0] sm:$0xff]
    %v623 = vld [vmem:[#allocation7 + $0x1d8] sm:$0xff]
    %v624 = vld [vmem:[#allocation7 + $0x1e0] sm:$0xff]
    %v625 = vld [vmem:[#allocation7 + $0x1e8] sm:$0xff]
    %v626 = vld [vmem:[#allocation7 + $0x1f0] sm:$0xff]
    %v627 = vld [vmem:[#allocation7 + $0x1f8] sm:$0xff]
    %v628 = vld [vmem:[#allocation7 + $0x200] sm:$0xff]
    %v629 = vld [vmem:[#allocation7 + $0x208] sm:$0xff]
    %v630 = vld [vmem:[#allocation7 + $0x210] sm:$0xff]
    %v631 = vld [vmem:[#allocation7 + $0x218] sm:$0xff]
    %v632 = vld [vmem:[#allocation7 + $0x220] sm:$0xff]
    %v633 = vld [vmem:[#allocation7 + $0x228] sm:$0xff]
    %v634 = vld [vmem:[#allocation7 + $0x230] sm:$0xff]
    %v635 = vld [vmem:[#allocation7 + $0x238] sm:$0xff]
    %v636 = vld [vmem:[#allocation7 + $0x240] sm:$0xff]
    %v637 = vld [vmem:[#allocation7 + $0x248] sm:$0xff]
    %v638 = vld [vmem:[#allocation7 + $0x250] sm:$0xff]
    %v639 = vld [vmem:[#allocation7 + $0x258] sm:$0xff]
    %v640 = vld [vmem:[#allocation7 + $0x260] sm:$0xff]
    %v641 = vld [vmem:[#allocation7 + $0x268] sm:$0xff]
    %v642 = vld [vmem:[#allocation7 + $0x270] sm:$0xff]
    %v643 = vld [vmem:[#allocation7 + $0x278] sm:$0xff]
    %v644 = vld [vmem:[#allocation7 + $0x280] sm:$0xff]
    %v645 = vld [vmem:[#allocation7 + $0x288] sm:$0xff]
    %v646 = vld [vmem:[#allocation7 + $0x290] sm:$0xff]
    %v647 = vld [vmem:[#allocation7 + $0x298] sm:$0xff]
    %v648 = vld [vmem:[#allocation7 + $0x2a0] sm:$0xff]
    %v649 = vld [vmem:[#allocation7 + $0x2a8] sm:$0xff]
    %v650 = vld [vmem:[#allocation7 + $0x2b0] sm:$0xff]
    %v651 = vld [vmem:[#allocation7 + $0x2b8] sm:$0xff]
    %v652 = vld [vmem:[#allocation7 + $0x2c0] sm:$0xff]
    %v653 = vld [vmem:[#allocation7 + $0x2c8] sm:$0xff]
    %v654 = vld [vmem:[#allocation7 + $0x2d0] sm:$0xff]
    %v655 = vld [vmem:[#allocation7 + $0x2d8] sm:$0xff]
    %v656 = vld [vmem:[#allocation7 + $0x2e0] sm:$0xff]
    %v657 = vld [vmem:[#allocation7 + $0x2e8] sm:$0xff]
    %v658 = vld [vmem:[#allocation7 + $0x2f0] sm:$0xff]
    %v659 = vld [vmem:[#allocation7 + $0x2f8] sm:$0xff]
    %v660 = vld [vmem:[#allocation7 + $0x300] sm:$0xff]
    %v661 = vld [vmem:[#allocation7 + $0x308] sm:$0xff]
    %v662 = vld [vmem:[#allocation7 + $0x310] sm:$0xff]
    %v663 = vld [vmem:[#allocation7 + $0x318] sm:$0xff]
    %v664 = vld [vmem:[#allocation7 + $0x320] sm:$0xff]
    %v665 = vld [vmem:[#allocation7 + $0x328] sm:$0xff]
    %v666 = vld [vmem:[#allocation7 + $0x330] sm:$0xff]
    %v667 = vld [vmem:[#allocation7 + $0x338] sm:$0xff]
    %v668 = vld [vmem:[#allocation7 + $0x340] sm:$0xff]
    %v669 = vld [vmem:[#allocation7 + $0x348] sm:$0xff]
    %v670 = vld [vmem:[#allocation7 + $0x350] sm:$0xff]
    %v671 = vld [vmem:[#allocation7 + $0x358] sm:$0xff]
    %v672 = vld [vmem:[#allocation7 + $0x360] sm:$0xff]
    %v673 = vld [vmem:[#allocation7 + $0x368] sm:$0xff]
    %v674 = vld [vmem:[#allocation7 + $0x370] sm:$0xff]
    %v675 = vld [vmem:[#allocation7 + $0x378] sm:$0xff]
    %v676 = vld [vmem:[#allocation7 + $0x380] sm:$0xff]
    %v677 = vld [vmem:[#allocation7 + $0x388] sm:$0xff]
    %v678 = vld [vmem:[#allocation7 + $0x390] sm:$0xff]
    %v679 = vld [vmem:[#allocation7 + $0x398] sm:$0xff]
    %v680 = vld [vmem:[#allocation7 + $0x3a0] sm:$0xff]
    %v681 = vld [vmem:[#allocation7 + $0x3a8] sm:$0xff]
    %v682 = vld [vmem:[#allocation7 + $0x3b0] sm:$0xff]
    %v683 = vld [vmem:[#allocation7 + $0x3b8] sm:$0xff]
    %v684 = vld [vmem:[#allocation7 + $0x3c0] sm:$0xff]
    %v685 = vld [vmem:[#allocation7 + $0x3c8] sm:$0xff]
    %v686 = vld [vmem:[#allocation7 + $0x3d0] sm:$0xff]
    %v687 = vld [vmem:[#allocation7 + $0x3d8] sm:$0xff]
    %v688 = vld [vmem:[#allocation7 + $0x3e0] sm:$0xff]
    %v689 = vld [vmem:[#allocation7 + $0x3e8] sm:$0xff]
    %v690 = vld [vmem:[#allocation7 + $0x3f0] sm:$0xff]
    %v691 = vld [vmem:[#allocation7 + $0x3f8] sm:$0xff]
    %v692 = vld [vmem:[#allocation8] sm:$0xf]
    %v694 = vperm.slane %v692, 0
    %v695 = vperm.slane %v692, 1
    %v696 = vperm.slane %v692, 2
    %v697 = vperm.slane %v692, 3
    %702 = vmatpush.msra.mxu0 %v624
    %703 = vmatpush.msra.mxu0 %v620
    %704 = vmatpush.msra.mxu0 %v616
    %705 = vmatpush.msra.mxu0 %v612
    %706 = vmatpush.msra.mxu0 %v608
    %707 = vmatpush.msra.mxu0 %v604
    %708 = vmatpush.msra.mxu0 %v600
    %709 = vmatpush.msra.mxu0 %v596
    %710 = vmatpush.msra.mxu0 %v592
    %711 = vmatpush.msra.mxu0 %v588
    %712 = vmatpush.msra.mxu0 %v584
    %713 = vmatpush.msra.mxu0 %v580
    %714 = vmatpush.msra.mxu0 %v576
    %715 = vmatpush.msra.mxu0 %v572
    %716 = vmatpush.msra.mxu0 %v568
    %717 = vmatpush.msra.mxu0 %v564
    %718 = vmatmul.f32.gmra.mxu0 %v560
    %v719 = vpop.f32.mrf.mxu0
    %v720 = vadd.f32 %v694, %v719
    %721 = vmatmul.f32.gmra.mxu0 %v562
    %v722 = vpop.f32.mrf.mxu0
    %v723 = vadd.f32 %v694, %v722
    %724 = vdwg.mxu0
    %725 = vmatpush.msra.mxu0 %v688
    %726 = vmatpush.msra.mxu0 %v684
    %727 = vmatpush.msra.mxu0 %v680
    %728 = vmatpush.msra.mxu0 %v676
    %729 = vmatpush.msra.mxu0 %v672
    %730 = vmatpush.msra.mxu0 %v668
    %731 = vmatpush.msra.mxu0 %v664
    %732 = vmatpush.msra.mxu0 %v660
    %733 = vmatpush.msra.mxu0 %v656
    %734 = vmatpush.msra.mxu0 %v652
    %735 = vmatpush.msra.mxu0 %v648
    %736 = vmatpush.msra.mxu0 %v644
    %737 = vmatpush.msra.mxu0 %v640
    %738 = vmatpush.msra.mxu0 %v636
    %739 = vmatpush.msra.mxu0 %v632
    %740 = vmatpush.msra.mxu0 %v628
    %741 = vmatmul.f32.gmra.mxu0 %v561
    %v742 = vpop.f32.mrf.mxu0
    %v743 = vadd.f32 %v720, %v742
    %744 = vmatmul.f32.gmra.mxu0 %v563
    %v745 = vpop.f32.mrf.mxu0
    %v746 = vadd.f32 %v723, %v745
    %747 = vdwg.mxu0
    %748 = vmatpush.msra.mxu0 %v625
    %749 = vmatpush.msra.mxu0 %v621
    %750 = vmatpush.msra.mxu0 %v617
    %751 = vmatpush.msra.mxu0 %v613
    %752 = vmatpush.msra.mxu0 %v609
    %753 = vmatpush.msra.mxu0 %v605
    %754 = vmatpush.msra.mxu0 %v601
    %755 = vmatpush.msra.mxu0 %v597
    %756 = vmatpush.msra.mxu0 %v593
    %757 = vmatpush.msra.mxu0 %v589
    %758 = vmatpush.msra.mxu0 %v585
    %759 = vmatpush.msra.mxu0 %v581
    %760 = vmatpush.msra.mxu0 %v577
    %761 = vmatpush.msra.mxu0 %v573
    %762 = vmatpush.msra.mxu0 %v569
    %763 = vmatpush.msra.mxu0 %v565
    %764 = vmatmul.f32.gmra.mxu0 %v560
    %v765 = vpop.f32.mrf.mxu0
    %v766 = vadd.f32 %v695, %v765
    %767 = vmatmul.f32.gmra.mxu0 %v562
    %v768 = vpop.f32.mrf.mxu0
    %v769 = vadd.f32 %v695, %v768
    %770 = vdwg.mxu0
    %771 = vmatpush.msra.mxu0 %v689
    %772 = vmatpush.msra.mxu0 %v685
    %773 = vmatpush.msra.mxu0 %v681
    %774 = vmatpush.msra.mxu0 %v677
    %775 = vmatpush.msra.mxu0 %v673
    %776 = vmatpush.msra.mxu0 %v669
    %777 = vmatpush.msra.mxu0 %v665
    %778 = vmatpush.msra.mxu0 %v661
    %779 = vmatpush.msra.mxu0 %v657
    %780 = vmatpush.msra.mxu0 %v653
    %781 = vmatpush.msra.mxu0 %v649
    %782 = vmatpush.msra.mxu0 %v645
    %783 = vmatpush.msra.mxu0 %v641
    %784 = vmatpush.msra.mxu0 %v637
    %785 = vmatpush.msra.mxu0 %v633
    %786 = vmatpush.msra.mxu0 %v629
    %787 = vmatmul.f32.gmra.mxu0 %v561
    %v788 = vpop.f32.mrf.mxu0
    %v789 = vadd.f32 %v766, %v788
    %790 = vmatmul.f32.gmra.mxu0 %v563
    %v791 = vpop.f32.mrf.mxu0
    %v792 = vadd.f32 %v769, %v791
    %793 = vdwg.mxu0
    %794 = vmatpush.msra.mxu0 %v626
    %795 = vmatpush.msra.mxu0 %v622
    %796 = vmatpush.msra.mxu0 %v618
    %797 = vmatpush.msra.mxu0 %v614
    %798 = vmatpush.msra.mxu0 %v610
    %799 = vmatpush.msra.mxu0 %v606
    %800 = vmatpush.msra.mxu0 %v602
    %801 = vmatpush.msra.mxu0 %v598
    %802 = vmatpush.msra.mxu0 %v594
    %803 = vmatpush.msra.mxu0 %v590
    %804 = vmatpush.msra.mxu0 %v586
    %805 = vmatpush.msra.mxu0 %v582
    %806 = vmatpush.msra.mxu0 %v578
    %807 = vmatpush.msra.mxu0 %v574
    %808 = vmatpush.msra.mxu0 %v570
    %809 = vmatpush.msra.mxu0 %v566
    %810 = vmatmul.f32.gmra.mxu0 %v560
    %v811 = vpop.f32.mrf.mxu0
    %v812 = vadd.f32 %v696, %v811
    %813 = vmatmul.f32.gmra.mxu0 %v562
    %v814 = vpop.f32.mrf.mxu0
    %v815 = vadd.f32 %v696, %v814
    %816 = vdwg.mxu0
    %817 = vmatpush.msra.mxu0 %v690
    %818 = vmatpush.msra.mxu0 %v686
    %819 = vmatpush.msra.mxu0 %v682
    %820 = vmatpush.msra.mxu0 %v678
    %821 = vmatpush.msra.mxu0 %v674
    %822 = vmatpush.msra.mxu0 %v670
    %823 = vmatpush.msra.mxu0 %v666
    %824 = vmatpush.msra.mxu0 %v662
    %825 = vmatpush.msra.mxu0 %v658
    %826 = vmatpush.msra.mxu0 %v654
    %827 = vmatpush.msra.mxu0 %v650
    %828 = vmatpush.msra.mxu0 %v646
    %829 = vmatpush.msra.mxu0 %v642
    %830 = vmatpush.msra.mxu0 %v638
    %831 = vmatpush.msra.mxu0 %v634
    %832 = vmatpush.msra.mxu0 %v630
    %833 = vmatmul.f32.gmra.mxu0 %v561
    %v834 = vpop.f32.mrf.mxu0
    %v835 = vadd.f32 %v812, %v834
    %836 = vmatmul.f32.gmra.mxu0 %v563
    %v837 = vpop.f32.mrf.mxu0
    %v838 = vadd.f32 %v815, %v837
    %839 = vdwg.mxu0
    %840 = vmatpush.msra.mxu0 %v627
    %841 = vmatpush.msra.mxu0 %v623
    %842 = vmatpush.msra.mxu0 %v619
    %843 = vmatpush.msra.mxu0 %v615
    %844 = vmatpush.msra.mxu0 %v611
    %845 = vmatpush.msra.mxu0 %v607
    %846 = vmatpush.msra.mxu0 %v603
    %847 = vmatpush.msra.mxu0 %v599
    %848 = vmatpush.msra.mxu0 %v595
    %849 = vmatpush.msra.mxu0 %v591
    %850 = vmatpush.msra.mxu0 %v587
    %851 = vmatpush.msra.mxu0 %v583
    %852 = vmatpush.msra.mxu0 %v579
    %853 = vmatpush.msra.mxu0 %v575
    %854 = vmatpush.msra.mxu0 %v571
    %855 = vmatpush.msra.mxu0 %v567
    %856 = vmatmul.f32.gmra.mxu0 %v560
    %v857 = vpop.f32.mrf.mxu0
    %v858 = vadd.f32 %v697, %v857
    %859 = vmatmul.f32.gmra.mxu0 %v562
    %v860 = vpop.f32.mrf.mxu0
    %v861 = vadd.f32 %v697, %v860
    %862 = vdwg.mxu0
    %863 = vmatpush.msra.mxu0 %v691
    %864 = vmatpush.msra.mxu0 %v687
    %865 = vmatpush.msra.mxu0 %v683
    %866 = vmatpush.msra.mxu0 %v679
    %867 = vmatpush.msra.mxu0 %v675
    %868 = vmatpush.msra.mxu0 %v671
    %869 = vmatpush.msra.mxu0 %v667
    %870 = vmatpush.msra.mxu0 %v663
    %871 = vmatpush.msra.mxu0 %v659
    %872 = vmatpush.msra.mxu0 %v655
    %873 = vmatpush.msra.mxu0 %v651
    %874 = vmatpush.msra.mxu0 %v647
    %875 = vmatpush.msra.mxu0 %v643
    %876 = vmatpush.msra.mxu0 %v639
    %877 = vmatpush.msra.mxu0 %v635
    %878 = vmatpush.msra.mxu0 %v631
    %879 = vmatmul.f32.gmra.mxu0 %v561
    %v880 = vpop.f32.mrf.mxu0
    %v881 = vadd.f32 %v858, %v880
    %882 = vmatmul.f32.gmra.mxu0 %v563
    %v883 = vpop.f32.mrf.mxu0
    %v884 = vadd.f32 %v861, %v883
    %885 = vdwg.mxu0
    %v886 = vmax.f32 %v743, 0.0
    %v887 = vmax.f32 %v789, 0.0
    %v888 = vmax.f32 %v835, 0.0
    %v889 = vmax.f32 %v881, 0.0
    %v890 = vmax.f32 %v746, 0.0
    %v891 = vmax.f32 %v792, 0.0
    %v892 = vmax.f32 %v838, 0.0
    %v893 = vmax.f32 %v884, 0.0
    %v894 = vmax.f32 %v886, %v888
    %v895 = vmax.f32 %v887, %v889
    %v896 = vmax.f32 %v890, %v892
    %v897 = vmax.f32 %v891, %v893
    %v898 = vpack.c.bf16 %v896, %v894
    %v899 = vpack.c.bf16 %v897, %v895
    %v900 = vld [vmem:[#allocation10] sm:$0xf]
    %v901 = vld [vmem:[#allocation10 + $0x4] sm:$0xf]
    %v902 = vld [vmem:[#allocation10 + $0x8] sm:$0xf]
    %v903 = vld [vmem:[#allocation10 + $0xc] sm:$0xf]
    %v904 = vld [vmem:[#allocation10 + $0x10] sm:$0xf]
    %v905 = vld [vmem:[#allocation10 + $0x14] sm:$0xf]
    %v906 = vld [vmem:[#allocation10 + $0x18] sm:$0xf]
    %v907 = vld [vmem:[#allocation10 + $0x1c] sm:$0xf]
    %v908 = vld [vmem:[#allocation10 + $0x20] sm:$0xf]
    %v909 = vld [vmem:[#allocation10 + $0x24] sm:$0xf]
    %v910 = vld [vmem:[#allocation10 + $0x28] sm:$0xf]
    %v911 = vld [vmem:[#allocation10 + $0x2c] sm:$0xf]
    %v912 = vld [vmem:[#allocation10 + $0x30] sm:$0xf]
    %v913 = vld [vmem:[#allocation10 + $0x34] sm:$0xf]
    %v914 = vld [vmem:[#allocation10 + $0x38] sm:$0xf]
    %v915 = vld [vmem:[#allocation10 + $0x3c] sm:$0xf]
    %v916 = vld [vmem:[#allocation10 + $0x40] sm:$0xf]
    %v917 = vld [vmem:[#allocation10 + $0x44] sm:$0xf]
    %v918 = vld [vmem:[#allocation10 + $0x48] sm:$0xf]
    %v919 = vld [vmem:[#allocation10 + $0x4c] sm:$0xf]
    %v920 = vld [vmem:[#allocation10 + $0x50] sm:$0xf]
    %v921 = vld [vmem:[#allocation10 + $0x54] sm:$0xf]
    %v922 = vld [vmem:[#allocation10 + $0x58] sm:$0xf]
    %v923 = vld [vmem:[#allocation10 + $0x5c] sm:$0xf]
    %v924 = vld [vmem:[#allocation10 + $0x60] sm:$0xf]
    %v925 = vld [vmem:[#allocation10 + $0x64] sm:$0xf]
    %v926 = vld [vmem:[#allocation10 + $0x68] sm:$0xf]
    %v927 = vld [vmem:[#allocation10 + $0x6c] sm:$0xf]
    %v928 = vld [vmem:[#allocation10 + $0x70] sm:$0xf]
    %v929 = vld [vmem:[#allocation10 + $0x74] sm:$0xf]
    %v930 = vld [vmem:[#allocation10 + $0x78] sm:$0xf]
    %v931 = vld [vmem:[#allocation10 + $0x7c] sm:$0xf]
    %v932 = vld [vmem:[#allocation11] sm:$0x1]
    %v934 = vperm.slane %v932, 0
    %v968 = vunpack.c.l.b16 %v900
    %v969 = vunpack.c.l.b16 %v901
    %v970 = vunpack.c.l.b16 %v902
    %v971 = vunpack.c.l.b16 %v903
    %v972 = vunpack.c.l.b16 %v904
    %v973 = vunpack.c.l.b16 %v905
    %v974 = vunpack.c.l.b16 %v906
    %v975 = vunpack.c.l.b16 %v907
    %v976 = vunpack.c.l.b16 %v908
    %v977 = vunpack.c.l.b16 %v909
    %v978 = vunpack.c.l.b16 %v910
    %v979 = vunpack.c.l.b16 %v911
    %v980 = vunpack.c.l.b16 %v912
    %v981 = vunpack.c.l.b16 %v913
    %v982 = vunpack.c.l.b16 %v914
    %v983 = vunpack.c.l.b16 %v915
    %v984 = vunpack.c.l.b16 %v916
    %v985 = vunpack.c.l.b16 %v917
    %v986 = vunpack.c.l.b16 %v918
    %v987 = vunpack.c.l.b16 %v919
    %v988 = vunpack.c.l.b16 %v920
    %v989 = vunpack.c.l.b16 %v921
    %v990 = vunpack.c.l.b16 %v922
    %v991 = vunpack.c.l.b16 %v923
    %v992 = vunpack.c.l.b16 %v924
    %v993 = vunpack.c.l.b16 %v925
    %v994 = vunpack.c.l.b16 %v926
    %v995 = vunpack.c.l.b16 %v927
    %v996 = vunpack.c.l.b16 %v928
    %v997 = vunpack.c.l.b16 %v929
    %v998 = vunpack.c.l.b16 %v930
    %v999 = vunpack.c.l.b16 %v931
    %v1000 = vpack.c.b16 %v969, %v968
    %v1001 = vpack.c.b16 %v971, %v970
    %v1002 = vpack.c.b16 %v973, %v972
    %v1003 = vpack.c.b16 %v975, %v974
    %v1004 = vpack.c.b16 %v977, %v976
    %v1005 = vpack.c.b16 %v979, %v978
    %v1006 = vpack.c.b16 %v981, %v980
    %v1007 = vpack.c.b16 %v983, %v982
    %v1008 = vpack.c.b16 %v985, %v984
    %v1009 = vpack.c.b16 %v987, %v986
    %v1010 = vpack.c.b16 %v989, %v988
    %v1011 = vpack.c.b16 %v991, %v990
    %v1012 = vpack.c.b16 %v993, %v992
    %v1013 = vpack.c.b16 %v995, %v994
    %v1014 = vpack.c.b16 %v997, %v996
    %v1015 = vpack.c.b16 %v999, %v998
    %1032 = vmatpush.bf16.msra.mxu0 %v1007
    %1033 = vmatpush.bf16.msra.mxu0 %v1006
    %1034 = vmatpush.bf16.msra.mxu0 %v1005
    %1035 = vmatpush.bf16.msra.mxu0 %v1004
    %1036 = vmatpush.bf16.msra.mxu0 %v1003
    %1037 = vmatpush.bf16.msra.mxu0 %v1002
    %1038 = vmatpush.bf16.msra.mxu0 %v1001
    %1039 = vmatpush.bf16.msra.mxu0 %v1000
    %1040 = vmatmul.bf16.gmra.mxu0 %v898
    %v1041 = vpop.f32.mrf.mxu0
    %v1042 = vadd.f32 %v934, %v1041
    %v1043 = vpop.f32.mrf.mxu0
    %v1044 = vadd.f32 %v934, %v1043
    %1045 = vdwg.mxu0
    %1046 = vmatpush.bf16.msra.mxu0 %v1015
    %1047 = vmatpush.bf16.msra.mxu0 %v1014
    %1048 = vmatpush.bf16.msra.mxu0 %v1013
    %1049 = vmatpush.bf16.msra.mxu0 %v1012
    %1050 = vmatpush.bf16.msra.mxu0 %v1011
    %1051 = vmatpush.bf16.msra.mxu0 %v1010
    %1052 = vmatpush.bf16.msra.mxu0 %v1009
    %1053 = vmatpush.bf16.msra.mxu0 %v1008
    %1054 = vmatmul.bf16.gmra.mxu0 %v899
    %v1055 = vpop.f32.mrf.mxu0
    %v1056 = vadd.f32 %v1042, %v1055
    %v1057 = vpop.f32.mrf.mxu0
    %v1058 = vadd.f32 %v1044, %v1057
    %1059 = vdwg.mxu0
    %v1060 = vld [vmem:[%s1] sm:$0xff]
    %v1061 = vadd.f32 %v1056, %v1060
    %v1062 = vadd.f32 %v1058, %v1060
    %v1063 = vld [vmem:[#allocation13] sm:$0xff]
    %v1064 = vld [vmem:[#allocation13 + $0x8] sm:$0xf]
    %v1065 = vld [vmem:[#allocation13 + $0xc] sm:$0xff]
    %v1066 = vld [vmem:[#allocation13 + $0x14] sm:$0xf]
    %v1067 = vld [vmem:[#allocation13 + $0x18] sm:$0xff]
    %v1068 = vld [vmem:[#allocation13 + $0x20] sm:$0xf]
    %v1069 = vld [vmem:[#allocation13 + $0x24] sm:$0xff]
    %v1070 = vld [vmem:[#allocation13 + $0x2c] sm:$0xf]
    %v1071 = vld [vmem:[#allocation13 + $0x30] sm:$0xff]
    %v1072 = vld [vmem:[#allocation13 + $0x38] sm:$0xf]
    %v1073 = vld [vmem:[#allocation13 + $0x3c] sm:$0xff]
    %v1074 = vld [vmem:[#allocation13 + $0x44] sm:$0xf]
    %v1075 = vld [vmem:[#allocation13 + $0x48] sm:$0xff]
    %v1076 = vld [vmem:[#allocation13 + $0x50] sm:$0xf]
    %v1077 = vld [vmem:[#allocation13 + $0x54] sm:$0xff]
    %v1078 = vld [vmem:[#allocation13 + $0x5c] sm:$0xf]
    %v1079 = vld [vmem:[#allocation13 + $0x60] sm:$0xff]
    %v1080 = vld [vmem:[#allocation13 + $0x68] sm:$0xf]
    %v1081 = vld [vmem:[#allocation13 + $0x6c] sm:$0xff]
    %v1082 = vld [vmem:[#allocation13 + $0x74] sm:$0xf]
    %v1083 = vld [vmem:[#allocation13 + $0x78] sm:$0xff]
    %v1084 = vld [vmem:[#allocation13 + $0x80] sm:$0xf]
    %v1085 = vld [vmem:[#allocation13 + $0x84] sm:$0xff]
    %v1086 = vld [vmem:[#allocation13 + $0x8c] sm:$0xf]
    %v1087 = vld [vmem:[#allocation13 + $0x90] sm:$0xff]
    %v1088 = vld [vmem:[#allocation13 + $0x98] sm:$0xf]
    %v1089 = vld [vmem:[#allocation13 + $0x9c] sm:$0xff]
    %v1090 = vld [vmem:[#allocation13 + $0xa4] sm:$0xf]
    %v1091 = vld [vmem:[#allocation13 + $0xa8] sm:$0xff]
    %v1092 = vld [vmem:[#allocation13 + $0xb0] sm:$0xf]
    %v1093 = vld [vmem:[#allocation13 + $0xb4] sm:$0xff]
    %v1094 = vld [vmem:[#allocation13 + $0xbc] sm:$0xf]
    %v1095 = vld [vmem:[#allocation16] sm:$0xf]
    %v1096 = vld [vmem:[#allocation16 + $0x4] sm:$0xf]
    %v1097 = vld [vmem:[#allocation16 + $0x8] sm:$0xf]
    %v1098 = vld [vmem:[#allocation16 + $0xc] sm:$0xf]
    %v1099 = vld [vmem:[#allocation16 + $0x10] sm:$0xf]
    %v1100 = vld [vmem:[#allocation16 + $0x14] sm:$0xf]
    %v1101 = vld [vmem:[#allocation16 + $0x18] sm:$0xf]
    %v1102 = vld [vmem:[#allocation16 + $0x1c] sm:$0xf]
    %v1103 = vld [vmem:[#allocation16 + $0x20] sm:$0xf]
    %v1104 = vld [vmem:[#allocation16 + $0x24] sm:$0xf]
    %v1105 = vld [vmem:[#allocation16 + $0x28] sm:$0xf]
    %v1106 = vld [vmem:[#allocation16 + $0x2c] sm:$0xf]
    %v1107 = vld [vmem:[#allocation16 + $0x30] sm:$0xf]
    %v1108 = vld [vmem:[#allocation16 + $0x34] sm:$0xf]
    %v1109 = vld [vmem:[#allocation16 + $0x38] sm:$0xf]
    %v1110 = vld [vmem:[#allocation16 + $0x3c] sm:$0xf]
    %v1111 = vpack.c.bf16 %v1062, %v1061
    %v1112 = vld [vmem:[#allocation14] sm:$0x7]
    %v1114 = vperm.slane %v1112, 0
    %v1115 = vperm.slane %v1112, 1
    %v1116 = vperm.slane %v1112, 2
    %v1152 = vunpack.c.l.b16 %v1063
    %v1153 = vunpack.c.h.b16 %v1063
    %v1154 = vunpack.c.l.b16 %v1064
    %v1155 = vunpack.c.l.b16 %v1065
    %v1156 = vunpack.c.h.b16 %v1065
    %v1157 = vunpack.c.l.b16 %v1066
    %v1158 = vunpack.c.l.b16 %v1067
    %v1159 = vunpack.c.h.b16 %v1067
    %v1160 = vunpack.c.l.b16 %v1068
    %v1161 = vunpack.c.l.b16 %v1069
    %v1162 = vunpack.c.h.b16 %v1069
    %v1163 = vunpack.c.l.b16 %v1070
    %v1164 = vunpack.c.l.b16 %v1071
    %v1165 = vunpack.c.h.b16 %v1071
    %v1166 = vunpack.c.l.b16 %v1072
    %v1167 = vunpack.c.l.b16 %v1073
    %v1168 = vunpack.c.h.b16 %v1073
    %v1169 = vunpack.c.l.b16 %v1074
    %v1170 = vunpack.c.l.b16 %v1075
    %v1171 = vunpack.c.h.b16 %v1075
    %v1172 = vunpack.c.l.b16 %v1076
    %v1173 = vunpack.c.l.b16 %v1077
    %v1174 = vunpack.c.h.b16 %v1077
    %v1175 = vunpack.c.l.b16 %v1078
    %v1176 = vunpack.c.l.b16 %v1079
    %v1177 = vunpack.c.h.b16 %v1079
    %v1178 = vunpack.c.l.b16 %v1080
    %v1179 = vunpack.c.l.b16 %v1081
    %v1180 = vunpack.c.h.b16 %v1081
    %v1181 = vunpack.c.l.b16 %v1082
    %v1182 = vunpack.c.l.b16 %v1083
    %v1183 = vunpack.c.h.b16 %v1083
    %v1184 = vunpack.c.l.b16 %v1084
    %v1185 = vunpack.c.l.b16 %v1085
    %v1186 = vunpack.c.h.b16 %v1085
    %v1187 = vunpack.c.l.b16 %v1086
    %v1188 = vunpack.c.l.b16 %v1087
    %v1189 = vunpack.c.h.b16 %v1087
    %v1190 = vunpack.c.l.b16 %v1088
    %v1191 = vunpack.c.l.b16 %v1089
    %v1192 = vunpack.c.h.b16 %v1089
    %v1193 = vunpack.c.l.b16 %v1090
    %v1194 = vunpack.c.l.b16 %v1091
    %v1195 = vunpack.c.h.b16 %v1091
    %v1196 = vunpack.c.l.b16 %v1092
    %v1197 = vunpack.c.l.b16 %v1093
    %v1198 = vunpack.c.h.b16 %v1093
    %v1199 = vunpack.c.l.b16 %v1094
    %v1200 = vpack.c.b16 %v1155, %v1152
    %v1201 = vpack.c.b16 %v1156, %v1153
    %v1202 = vpack.c.b16 %v1157, %v1154
    %v1203 = vpack.c.b16 %v1161, %v1158
    %v1204 = vpack.c.b16 %v1162, %v1159
    %v1205 = vpack.c.b16 %v1163, %v1160
    %v1206 = vpack.c.b16 %v1167, %v1164
    %v1207 = vpack.c.b16 %v1168, %v1165
    %v1208 = vpack.c.b16 %v1169, %v1166
    %v1209 = vpack.c.b16 %v1173, %v1170
    %v1210 = vpack.c.b16 %v1174, %v1171
    %v1211 = vpack.c.b16 %v1175, %v1172
    %v1212 = vpack.c.b16 %v1179, %v1176
    %v1213 = vpack.c.b16 %v1180, %v1177
    %v1214 = vpack.c.b16 %v1181, %v1178
    %v1215 = vpack.c.b16 %v1185, %v1182
    %v1216 = vpack.c.b16 %v1186, %v1183
    %v1217 = vpack.c.b16 %v1187, %v1184
    %v1218 = vpack.c.b16 %v1191, %v1188
    %v1219 = vpack.c.b16 %v1192, %v1189
    %v1220 = vpack.c.b16 %v1193, %v1190
    %v1221 = vpack.c.b16 %v1197, %v1194
    %v1222 = vpack.c.b16 %v1198, %v1195
    %v1223 = vpack.c.b16 %v1199, %v1196
    %1248 = vmatpush.bf16.msra.mxu0 %v1221
    %1249 = vmatpush.bf16.msra.mxu0 %v1218
    %1250 = vmatpush.bf16.msra.mxu0 %v1215
    %1251 = vmatpush.bf16.msra.mxu0 %v1212
    %1252 = vmatpush.bf16.msra.mxu0 %v1209
    %1253 = vmatpush.bf16.msra.mxu0 %v1206
    %1254 = vmatpush.bf16.msra.mxu0 %v1203
    %1255 = vmatpush.bf16.msra.mxu0 %v1200
    %1256 = vmatmul.bf16.gmra.mxu0 %v1111
    %v1257 = vpop.f32.mrf.mxu0
    %v1258 = vadd.f32 %v1114, %v1257
    %v1259 = vpop.f32.mrf.mxu0
    %v1260 = vadd.f32 %v1114, %v1259
    %1261 = vdwg.mxu0
    %1262 = vmatpush.bf16.msra.mxu0 %v1222
    %1263 = vmatpush.bf16.msra.mxu0 %v1219
    %1264 = vmatpush.bf16.msra.mxu0 %v1216
    %1265 = vmatpush.bf16.msra.mxu0 %v1213
    %1266 = vmatpush.bf16.msra.mxu0 %v1210
    %1267 = vmatpush.bf16.msra.mxu0 %v1207
    %1268 = vmatpush.bf16.msra.mxu0 %v1204
    %1269 = vmatpush.bf16.msra.mxu0 %v1201
    %1270 = vmatmul.bf16.gmra.mxu0 %v1111
    %v1271 = vpop.f32.mrf.mxu0
    %v1272 = vadd.f32 %v1115, %v1271
    %v1273 = vpop.f32.mrf.mxu0
    %v1274 = vadd.f32 %v1115, %v1273
    %1275 = vdwg.mxu0
    %1276 = vmatpush.bf16.msra.mxu0 %v1223
    %1277 = vmatpush.bf16.msra.mxu0 %v1220
    %1278 = vmatpush.bf16.msra.mxu0 %v1217
    %1279 = vmatpush.bf16.msra.mxu0 %v1214
    %1280 = vmatpush.bf16.msra.mxu0 %v1211
    %1281 = vmatpush.bf16.msra.mxu0 %v1208
    %1282 = vmatpush.bf16.msra.mxu0 %v1205
    %1283 = vmatpush.bf16.msra.mxu0 %v1202
    %1284 = vmatmul.bf16.gmra.mxu0 %v1111
    %v1285 = vpop.f32.mrf.mxu0
    %v1286 = vadd.f32 %v1116, %v1285
    %v1287 = vpop.f32.mrf.mxu0
    %v1288 = vadd.f32 %v1116, %v1287
    %1289 = vdwg.mxu0
    %v1290 = vpack.c.bf16 %v1272, %v1258
    %v1291 = vpack.c.bf16 %v1286, %v1286
    %v1292 = vpack.c.bf16 %v1274, %v1260
    %v1293 = vpack.c.bf16 %v1288, %v1288
    %v1296 = vrot.slane %v1290, 4
    %v1297 = vrot.slane %v1292, 4
    %vm1298 = vcmask 261120
    %v1300 = vsel %vm1298, %v1290, 0
    %v1303 = vsel %vm1298, %v1296, 0
    %1305 = vmatpush.bf16.xpose.msra.mxu0 0
    %1306 = vmatpush.bf16.xpose.msra.mxu0 0
    %1307 = vmatpush.bf16.xpose.msra.mxu0 0
    %1308 = vmatpush.bf16.xpose.msra.mxu0 0
    %1309 = vmatpush.bf16.xpose.msra.mxu0 0
    %1310 = vmatpush.bf16.xpose.msra.mxu0 0
    %1311 = vmatpush.bf16.xpose.msra.mxu0 0
    %1312 = vmatpush.bf16.xpose.msra.mxu0 %v1303
    %1313 = vmatmul.bf16.gmra.mxu0 %v1300
    %v1314 = vpop.f32.mrf.mxu0
    %v1315 = vadd.f32 0.0, %v1314
    %v1316 = vpop.f32.mrf.mxu0
    %1317 = vdwg.mxu0
    %v1319 = vsel %vm1298, %v1292, 0
    %v1322 = vsel %vm1298, %v1297, 0
    %1324 = vmatpush.bf16.xpose.msra.mxu0 0
    %1325 = vmatpush.bf16.xpose.msra.mxu0 0
    %1326 = vmatpush.bf16.xpose.msra.mxu0 0
    %1327 = vmatpush.bf16.xpose.msra.mxu0 0
    %1328 = vmatpush.bf16.xpose.msra.mxu0 0
    %1329 = vmatpush.bf16.xpose.msra.mxu0 0
    %1330 = vmatpush.bf16.xpose.msra.mxu0 0
    %1331 = vmatpush.bf16.xpose.msra.mxu0 %v1322
    %1332 = vmatmul.bf16.gmra.mxu0 %v1319
    %v1333 = vpop.f32.mrf.mxu0
    %v1334 = vadd.f32 0.0, %v1333
    %v1335 = vpop.f32.mrf.mxu0
    %1336 = vdwg.mxu0
    %v1337 = vmul.f32 %v1315, 0.17677669
    %v1338 = vmul.f32 %v1334, 0.17677669
    %vm1339 = vcmask 64512
    %v1340 = vsel %vm1339, %v1337, -inf
    %1341 = vmax.xlane.f32.xlu0 %v1340
    %v1342 = vpop.xlane.xlu0 %1341
    %v1343 = vsel %vm1339, %v1338, -inf
    %1344 = vmax.xlane.f32.xlu0 %v1343
    %v1345 = vpop.xlane.xlu0 %1344
    %v1346 = vsub.f32 %v1337, %v1342
    %v1347 = vsub.f32 %v1338, %v1345
    %v1348 = vmul.f32 %v1346, 1.442695
    %v1349 = vpow.pop %v1348
    %v1350 = vmul.f32 %v1347, 1.442695
    %v1351 = vpow.pop %v1350
    %v1352 = vsel %vm1339, %v1349, 0.0
    %1353 = vadd.xlane.f32.xlu0 %v1352
    %v1354 = vpop.xlane.xlu0 %1353
    %v1355 = vsel %vm1339, %v1351, 0.0
    %1356 = vadd.xlane.f32.xlu0 %v1355
    %v1357 = vpop.xlane.xlu0 %1356
    %v1358 = vrcp.pop %v1354
    %v1359 = vrcp.pop %v1357
    %v1360 = vmul.f32 %v1349, %v1358
    %v1361 = vmul.f32 %v1351, %v1359
    %v1362 = vpack.c.bf16 %v1360, %v1360
    %v1363 = vpack.c.bf16 %v1361, %v1361
    %v1365 = vsel %vm1339, %v1362, 0
    %vm1367 = vcmask 1043456
    %v1369 = vsel %vm1367, %v1291, 0
    %1371 = vmatpush.bf16.msra.mxu0 0
    %1372 = vmatpush.bf16.msra.mxu0 0
    %1373 = vmatpush.bf16.msra.mxu0 0
    %1374 = vmatpush.bf16.msra.mxu0 0
    %1375 = vmatpush.bf16.msra.mxu0 0
    %1376 = vmatpush.bf16.msra.mxu0 0
    %1377 = vmatpush.bf16.msra.mxu0 0
    %1378 = vmatpush.bf16.msra.mxu0 %v1369
    %1379 = vmatmul.bf16.gmra.mxu0 %v1365
    %v1380 = vpop.f32.mrf.mxu0
    %v1381 = vadd.f32 0.0, %v1380
    %v1382 = vpop.f32.mrf.mxu0
    %1383 = vdwg.mxu0
    %v1385 = vsel %vm1339, %v1363, 0
    %v1388 = vsel %vm1367, %v1293, 0
    %1390 = vmatpush.bf16.msra.mxu0 0
    %1391 = vmatpush.bf16.msra.mxu0 0
    %1392 = vmatpush.bf16.msra.mxu0 0
    %1393 = vmatpush.bf16.msra.mxu0 0
    %1394 = vmatpush.bf16.msra.mxu0 0
    %1395 = vmatpush.bf16.msra.mxu0 0
    %1396 = vmatpush.bf16.msra.mxu0 0
    %1397 = vmatpush.bf16.msra.mxu0 %v1388
    %1398 = vmatmul.bf16.gmra.mxu0 %v1385
    %v1399 = vpop.f32.mrf.mxu0
    %v1400 = vadd.f32 0.0, %v1399
    %v1401 = vpop.f32.mrf.mxu0
    %1402 = vdwg.mxu0
    %v1403 = vpack.c.bf16 %v1400, %v1381
    %v1404 = vunpack.c.l.b16 %v1290
    %v1405 = vpack.c.b16 %v1404, %v1404
    %1406 = vrot.lane.b32.xlu0 %v1405, 96
    %v1407 = vpop.permute.xlu0 %1406
    %v1408 = vunpack.c.l.b16 %v1296
    %v1409 = vpack.c.b16 %v1408, %v1408
    %1410 = vrot.lane.b32.xlu0 %v1409, 96
    %v1411 = vpop.permute.xlu0 %1410
    %v1413 = vsel %vm1298, %v1407, 0
    %v1416 = vsel %vm1298, %v1411, 0
    %1418 = vmatpush.bf16.xpose.msra.mxu0 0
    %1419 = vmatpush.bf16.xpose.msra.mxu0 0
    %1420 = vmatpush.bf16.xpose.msra.mxu0 0
    %1421 = vmatpush.bf16.xpose.msra.mxu0 0
    %1422 = vmatpush.bf16.xpose.msra.mxu0 0
    %1423 = vmatpush.bf16.xpose.msra.mxu0 0
    %1424 = vmatpush.bf16.xpose.msra.mxu0 0
    %1425 = vmatpush.bf16.xpose.msra.mxu0 %v1416
    %1426 = vmatmul.bf16.gmra.mxu0 %v1413
    %v1427 = vpop.f32.mrf.mxu0
    %v1428 = vadd.f32 0.0, %v1427
    %v1429 = vpop.f32.mrf.mxu0
    %1430 = vdwg.mxu0
    %v1431 = vunpack.c.l.b16 %v1292
    %v1432 = vpack.c.b16 %v1431, %v1431
    %1433 = vrot.lane.b32.xlu0 %v1432, 96
    %v1434 = vpop.permute.xlu0 %1433
    %v1435 = vunpack.c.l.b16 %v1297
    %v1436 = vpack.c.b16 %v1435, %v1435
    %1437 = vrot.lane.b32.xlu0 %v1436, 96
    %v1438 = vpop.permute.xlu0 %1437
    %v1440 = vsel %vm1298, %v1434, 0
    %v1443 = vsel %vm1298, %v1438, 0
    %1445 = vmatpush.bf16.xpose.msra.mxu0 0
    %1446 = vmatpush.bf16.xpose.msra.mxu0 0
    %1447 = vmatpush.bf16.xpose.msra.mxu0 0
    %1448 = vmatpush.bf16.xpose.msra.mxu0 0
    %1449 = vmatpush.bf16.xpose.msra.mxu0 0
    %1450 = vmatpush.bf16.xpose.msra.mxu0 0
    %1451 = vmatpush.bf16.xpose.msra.mxu0 0
    %1452 = vmatpush.bf16.xpose.msra.mxu0 %v1443
    %1453 = vmatmul.bf16.gmra.mxu0 %v1440
    %v1454 = vpop.f32.mrf.mxu0
    %v1455 = vadd.f32 0.0, %v1454
    %v1456 = vpop.f32.mrf.mxu0
    %1457 = vdwg.mxu0
    %v1458 = vmul.f32 %v1428, 0.17677669
    %v1459 = vmul.f32 %v1455, 0.17677669
    %v1460 = vsel %vm1339, %v1458, -inf
    %1461 = vmax.xlane.f32.xlu0 %v1460
    %v1462 = vpop.xlane.xlu0 %1461
    %v1463 = vsel %vm1339, %v1459, -inf
    %1464 = vmax.xlane.f32.xlu0 %v1463
    %v1465 = vpop.xlane.xlu0 %1464
    %v1466 = vsub.f32 %v1458, %v1462
    %v1467 = vsub.f32 %v1459, %v1465
    %v1468 = vmul.f32 %v1466, 1.442695
    %v1469 = vpow.pop %v1468
    %v1470 = vmul.f32 %v1467, 1.442695
    %v1471 = vpow.pop %v1470
    %v1472 = vsel %vm1339, %v1469, 0.0
    %1473 = vadd.xlane.f32.xlu0 %v1472
    %v1474 = vpop.xlane.xlu0 %1473
    %v1475 = vsel %vm1339, %v1471, 0.0
    %1476 = vadd.xlane.f32.xlu0 %v1475
    %v1477 = vpop.xlane.xlu0 %1476
    %v1478 = vrcp.pop %v1474
    %v1479 = vrcp.pop %v1477
    %v1480 = vmul.f32 %v1469, %v1478
    %v1481 = vmul.f32 %v1471, %v1479
    %v1482 = vpack.c.bf16 %v1480, %v1480
    %v1483 = vpack.c.bf16 %v1481, %v1481
    %v1485 = vunpack.c.l.b16 %v1291
    %v1486 = vpack.c.b16 %v1485, %v1485
    %1487 = vrot.lane.b32.xlu0 %v1486, 96
    %v1488 = vpop.permute.xlu0 %1487
    %v1490 = vsel %vm1339, %v1482, 0
    %v1493 = vsel %vm1367, %v1488, 0
    %1495 = vmatpush.bf16.msra.mxu0 0
    %1496 = vmatpush.bf16.msra.mxu0 0
    %1497 = vmatpush.bf16.msra.mxu0 0
    %1498 = vmatpush.bf16.msra.mxu0 0
    %1499 = vmatpush.bf16.msra.mxu0 0
    %1500 = vmatpush.bf16.msra.mxu0 0
    %1501 = vmatpush.bf16.msra.mxu0 0
    %1502 = vmatpush.bf16.msra.mxu0 %v1493
    %1503 = vmatmul.bf16.gmra.mxu0 %v1490
    %v1504 = vpop.f32.mrf.mxu0
    %v1505 = vadd.f32 0.0, %v1504
    %v1506 = vpop.f32.mrf.mxu0
    %1507 = vdwg.mxu0
    %v1509 = vunpack.c.l.b16 %v1293
    %v1510 = vpack.c.b16 %v1509, %v1509
    %1511 = vrot.lane.b32.xlu0 %v1510, 96
    %v1512 = vpop.permute.xlu0 %1511
    %v1514 = vsel %vm1339, %v1483, 0
    %v1517 = vsel %vm1367, %v1512, 0
    %1519 = vmatpush.bf16.msra.mxu0 0
    %1520 = vmatpush.bf16.msra.mxu0 0
    %1521 = vmatpush.bf16.msra.mxu0 0
    %1522 = vmatpush.bf16.msra.mxu0 0
    %1523 = vmatpush.bf16.msra.mxu0 0
    %1524 = vmatpush.bf16.msra.mxu0 0
    %1525 = vmatpush.bf16.msra.mxu0 0
    %1526 = vmatpush.bf16.msra.mxu0 %v1517
    %1527 = vmatmul.bf16.gmra.mxu0 %v1514
    %v1528 = vpop.f32.mrf.mxu0
    %v1529 = vadd.f32 0.0, %v1528
    %v1530 = vpop.f32.mrf.mxu0
    %1531 = vdwg.mxu0
    %v1532 = vpack.c.bf16 %v1529, %v1505
    %v1537 = vunpack.c.l.b16 %v1099
    %v1538 = vunpack.c.l.b16 %v1100
    %v1539 = vunpack.c.l.b16 %v1101
    %v1540 = vunpack.c.l.b16 %v1102
    %v1541 = vpack.c.b16 %v1538, %v1537
    %v1542 = vpack.c.b16 %v1540, %v1539
    %v1546 = vsel %vm1298, %v1532, 0
    %1548 = vmatpush.bf16.msra.mxu0 0
    %1549 = vmatpush.bf16.msra.mxu0 0
    %1550 = vmatpush.bf16.msra.mxu0 0
    %1551 = vmatpush.bf16.msra.mxu0 0
    %1552 = vmatpush.bf16.msra.mxu0 0
    %1553 = vmatpush.bf16.msra.mxu0 0
    %1554 = vmatpush.bf16.msra.mxu0 %v1542
    %1555 = vmatpush.bf16.msra.mxu0 %v1541
    %1556 = vmatmul.bf16.gmra.mxu0 %v1546
    %v1557 = vpop.f32.mrf.mxu0
    %v1558 = vadd.f32 0.0, %v1557
    %v1559 = vpop.f32.mrf.mxu0
    %v1560 = vadd.f32 0.0, %v1559
    %1561 = vdwg.mxu0
    %v1566 = vunpack.c.l.b16 %v1095
    %v1567 = vunpack.c.l.b16 %v1096
    %v1568 = vunpack.c.l.b16 %v1097
    %v1569 = vunpack.c.l.b16 %v1098
    %v1570 = vpack.c.b16 %v1567, %v1566
    %v1571 = vpack.c.b16 %v1569, %v1568
    %v1575 = vsel %vm1298, %v1403, 0
    %1577 = vmatpush.bf16.msra.mxu0 0
    %1578 = vmatpush.bf16.msra.mxu0 0
    %1579 = vmatpush.bf16.msra.mxu0 0
    %1580 = vmatpush.bf16.msra.mxu0 0
    %1581 = vmatpush.bf16.msra.mxu0 0
    %1582 = vmatpush.bf16.msra.mxu0 0
    %1583 = vmatpush.bf16.msra.mxu0 %v1571
    %1584 = vmatpush.bf16.msra.mxu0 %v1570
    %1585 = vmatmul.bf16.gmra.mxu0 %v1575
    %v1586 = vpop.f32.mrf.mxu0
    %v1587 = vadd.f32 %v1558, %v1586
    %v1588 = vpop.f32.mrf.mxu0
    %v1589 = vadd.f32 %v1560, %v1588
    %1590 = vdwg.mxu0
    %1591 = vrot.lane.b32.xlu0 %v1405, 64
    %v1592 = vpop.permute.xlu0 %1591
    %1593 = vrot.lane.b32.xlu0 %v1409, 64
    %v1594 = vpop.permute.xlu0 %1593
    %v1596 = vsel %vm1298, %v1592, 0
    %v1599 = vsel %vm1298, %v1594, 0
    %1601 = vmatpush.bf16.xpose.msra.mxu0 0
    %1602 = vmatpush.bf16.xpose.msra.mxu0 0
    %1603 = vmatpush.bf16.xpose.msra.mxu0 0
    %1604 = vmatpush.bf16.xpose.msra.mxu0 0
    %1605 = vmatpush.bf16.xpose.msra.mxu0 0
    %1606 = vmatpush.bf16.xpose.msra.mxu0 0
    %1607 = vmatpush.bf16.xpose.msra.mxu0 0
    %1608 = vmatpush.bf16.xpose.msra.mxu0 %v1599
    %1609 = vmatmul.bf16.gmra.mxu0 %v1596
    %v1610 = vpop.f32.mrf.mxu0
    %v1611 = vadd.f32 0.0, %v1610
    %v1612 = vpop.f32.mrf.mxu0
    %1613 = vdwg.mxu0
    %1614 = vrot.lane.b32.xlu0 %v1432, 64
    %v1615 = vpop.permute.xlu0 %1614
    %1616 = vrot.lane.b32.xlu0 %v1436, 64
    %v1617 = vpop.permute.xlu0 %1616
    %v1619 = vsel %vm1298, %v1615, 0
    %v1622 = vsel %vm1298, %v1617, 0
    %1624 = vmatpush.bf16.xpose.msra.mxu0 0
    %1625 = vmatpush.bf16.xpose.msra.mxu0 0
    %1626 = vmatpush.bf16.xpose.msra.mxu0 0
    %1627 = vmatpush.bf16.xpose.msra.mxu0 0
    %1628 = vmatpush.bf16.xpose.msra.mxu0 0
    %1629 = vmatpush.bf16.xpose.msra.mxu0 0
    %1630 = vmatpush.bf16.xpose.msra.mxu0 0
    %1631 = vmatpush.bf16.xpose.msra.mxu0 %v1622
    %1632 = vmatmul.bf16.gmra.mxu0 %v1619
    %v1633 = vpop.f32.mrf.mxu0
    %v1634 = vadd.f32 0.0, %v1633
    %v1635 = vpop.f32.mrf.mxu0
    %1636 = vdwg.mxu0
    %v1637 = vmul.f32 %v1611, 0.17677669
    %v1638 = vmul.f32 %v1634, 0.17677669
    %v1639 = vsel %vm1339, %v1637, -inf
    %1640 = vmax.xlane.f32.xlu0 %v1639
    %v1641 = vpop.xlane.xlu0 %1640
    %v1642 = vsel %vm1339, %v1638, -inf
    %1643 = vmax.xlane.f32.xlu0 %v1642
    %v1644 = vpop.xlane.xlu0 %1643
    %v1645 = vsub.f32 %v1637, %v1641
    %v1646 = vsub.f32 %v1638, %v1644
    %v1647 = vmul.f32 %v1645, 1.442695
    %v1648 = vpow.pop %v1647
    %v1649 = vmul.f32 %v1646, 1.442695
    %v1650 = vpow.pop %v1649
    %v1651 = vsel %vm1339, %v1648, 0.0
    %1652 = vadd.xlane.f32.xlu0 %v1651
    %v1653 = vpop.xlane.xlu0 %1652
    %v1654 = vsel %vm1339, %v1650, 0.0
    %1655 = vadd.xlane.f32.xlu0 %v1654
    %v1656 = vpop.xlane.xlu0 %1655
    %v1657 = vrcp.pop %v1653
    %v1658 = vrcp.pop %v1656
    %v1659 = vmul.f32 %v1648, %v1657
    %v1660 = vmul.f32 %v1650, %v1658
    %v1661 = vpack.c.bf16 %v1659, %v1659
    %v1662 = vpack.c.bf16 %v1660, %v1660
    %1663 = vrot.lane.b32.xlu0 %v1486, 64
    %v1664 = vpop.permute.xlu0 %1663
    %v1666 = vsel %vm1339, %v1661, 0
    %v1669 = vsel %vm1367, %v1664, 0
    %1671 = vmatpush.bf16.msra.mxu0 0
    %1672 = vmatpush.bf16.msra.mxu0 0
    %1673 = vmatpush.bf16.msra.mxu0 0
    %1674 = vmatpush.bf16.msra.mxu0 0
    %1675 = vmatpush.bf16.msra.mxu0 0
    %1676 = vmatpush.bf16.msra.mxu0 0
    %1677 = vmatpush.bf16.msra.mxu0 0
    %1678 = vmatpush.bf16.msra.mxu0 %v1669
    %1679 = vmatmul.bf16.gmra.mxu0 %v1666
    %v1680 = vpop.f32.mrf.mxu0
    %v1681 = vadd.f32 0.0, %v1680
    %v1682 = vpop.f32.mrf.mxu0
    %1683 = vdwg.mxu0
    %1684 = vrot.lane.b32.xlu0 %v1510, 64
    %v1685 = vpop.permute.xlu0 %1684
    %v1687 = vsel %vm1339, %v1662, 0
    %v1690 = vsel %vm1367, %v1685, 0
    %1692 = vmatpush.bf16.msra.mxu0 0
    %1693 = vmatpush.bf16.msra.mxu0 0
    %1694 = vmatpush.bf16.msra.mxu0 0
    %1695 = vmatpush.bf16.msra.mxu0 0
    %1696 = vmatpush.bf16.msra.mxu0 0
    %1697 = vmatpush.bf16.msra.mxu0 0
    %1698 = vmatpush.bf16.msra.mxu0 0
    %1699 = vmatpush.bf16.msra.mxu0 %v1690
    %1700 = vmatmul.bf16.gmra.mxu0 %v1687
    %v1701 = vpop.f32.mrf.mxu0
    %v1702 = vadd.f32 0.0, %v1701
    %v1703 = vpop.f32.mrf.mxu0
    %1704 = vdwg.mxu0
    %v1705 = vpack.c.bf16 %v1702, %v1681
    %v1710 = vunpack.c.l.b16 %v1103
    %v1711 = vunpack.c.l.b16 %v1104
    %v1712 = vunpack.c.l.b16 %v1105
    %v1713 = vunpack.c.l.b16 %v1106
    %v1714 = vpack.c.b16 %v1711, %v1710
    %v1715 = vpack.c.b16 %v1713, %v1712
    %v1719 = vsel %vm1298, %v1705, 0
    %1721 = vmatpush.bf16.msra.mxu0 0
    %1722 = vmatpush.bf16.msra.mxu0 0
    %1723 = vmatpush.bf16.msra.mxu0 0
    %1724 = vmatpush.bf16.msra.mxu0 0
    %1725 = vmatpush.bf16.msra.mxu0 0
    %1726 = vmatpush.bf16.msra.mxu0 0
    %1727 = vmatpush.bf16.msra.mxu0 %v1715
    %1728 = vmatpush.bf16.msra.mxu0 %v1714
    %1729 = vmatmul.bf16.gmra.mxu0 %v1719
    %v1730 = vpop.f32.mrf.mxu0
    %v1731 = vadd.f32 0.0, %v1730
    %v1732 = vpop.f32.mrf.mxu0
    %v1733 = vadd.f32 0.0, %v1732
    %1734 = vdwg.mxu0
    %v1735 = vadd.f32 %v1587, %v1731
    %v1736 = vadd.f32 %v1589, %v1733
    %1737 = vrot.lane.b32.xlu0 %v1405, 32
    %v1738 = vpop.permute.xlu0 %1737
    %1739 = vrot.lane.b32.xlu0 %v1409, 32
    %v1740 = vpop.permute.xlu0 %1739
    %v1742 = vsel %vm1298, %v1738, 0
    %v1745 = vsel %vm1298, %v1740, 0
    %1747 = vmatpush.bf16.xpose.msra.mxu0 0
    %1748 = vmatpush.bf16.xpose.msra.mxu0 0
    %1749 = vmatpush.bf16.xpose.msra.mxu0 0
    %1750 = vmatpush.bf16.xpose.msra.mxu0 0
    %1751 = vmatpush.bf16.xpose.msra.mxu0 0
    %1752 = vmatpush.bf16.xpose.msra.mxu0 0
    %1753 = vmatpush.bf16.xpose.msra.mxu0 0
    %1754 = vmatpush.bf16.xpose.msra.mxu0 %v1745
    %1755 = vmatmul.bf16.gmra.mxu0 %v1742
    %v1756 = vpop.f32.mrf.mxu0
    %v1757 = vadd.f32 0.0, %v1756
    %v1758 = vpop.f32.mrf.mxu0
    %1759 = vdwg.mxu0
    %1760 = vrot.lane.b32.xlu0 %v1432, 32
    %v1761 = vpop.permute.xlu0 %1760
    %1762 = vrot.lane.b32.xlu0 %v1436, 32
    %v1763 = vpop.permute.xlu0 %1762
    %v1765 = vsel %vm1298, %v1761, 0
    %v1768 = vsel %vm1298, %v1763, 0
    %1770 = vmatpush.bf16.xpose.msra.mxu0 0
    %1771 = vmatpush.bf16.xpose.msra.mxu0 0
    %1772 = vmatpush.bf16.xpose.msra.mxu0 0
    %1773 = vmatpush.bf16.xpose.msra.mxu0 0
    %1774 = vmatpush.bf16.xpose.msra.mxu0 0
    %1775 = vmatpush.bf16.xpose.msra.mxu0 0
    %1776 = vmatpush.bf16.xpose.msra.mxu0 0
    %1777 = vmatpush.bf16.xpose.msra.mxu0 %v1768
    %1778 = vmatmul.bf16.gmra.mxu0 %v1765
    %v1779 = vpop.f32.mrf.mxu0
    %v1780 = vadd.f32 0.0, %v1779
    %v1781 = vpop.f32.mrf.mxu0
    %1782 = vdwg.mxu0
    %v1783 = vmul.f32 %v1757, 0.17677669
    %v1784 = vmul.f32 %v1780, 0.17677669
    %v1785 = vsel %vm1339, %v1783, -inf
    %1786 = vmax.xlane.f32.xlu0 %v1785
    %v1787 = vpop.xlane.xlu0 %1786
    %v1788 = vsel %vm1339, %v1784, -inf
    %1789 = vmax.xlane.f32.xlu0 %v1788
    %v1790 = vpop.xlane.xlu0 %1789
    %v1791 = vsub.f32 %v1783, %v1787
    %v1792 = vsub.f32 %v1784, %v1790
    %v1793 = vmul.f32 %v1791, 1.442695
    %v1794 = vpow.pop %v1793
    %v1795 = vmul.f32 %v1792, 1.442695
    %v1796 = vpow.pop %v1795
    %v1797 = vsel %vm1339, %v1794, 0.0
    %1798 = vadd.xlane.f32.xlu0 %v1797
    %v1799 = vpop.xlane.xlu0 %1798
    %v1800 = vsel %vm1339, %v1796, 0.0
    %1801 = vadd.xlane.f32.xlu0 %v1800
    %v1802 = vpop.xlane.xlu0 %1801
    %v1803 = vrcp.pop %v1799
    %v1804 = vrcp.pop %v1802
    %v1805 = vmul.f32 %v1794, %v1803
    %v1806 = vmul.f32 %v1796, %v1804
    %v1807 = vpack.c.bf16 %v1805, %v1805
    %v1808 = vpack.c.bf16 %v1806, %v1806
    %1809 = vrot.lane.b32.xlu0 %v1486, 32
    %v1810 = vpop.permute.xlu0 %1809
    %v1812 = vsel %vm1339, %v1807, 0
    %v1815 = vsel %vm1367, %v1810, 0
    %1817 = vmatpush.bf16.msra.mxu0 0
    %1818 = vmatpush.bf16.msra.mxu0 0
    %1819 = vmatpush.bf16.msra.mxu0 0
    %1820 = vmatpush.bf16.msra.mxu0 0
    %1821 = vmatpush.bf16.msra.mxu0 0
    %1822 = vmatpush.bf16.msra.mxu0 0
    %1823 = vmatpush.bf16.msra.mxu0 0
    %1824 = vmatpush.bf16.msra.mxu0 %v1815
    %1825 = vmatmul.bf16.gmra.mxu0 %v1812
    %v1826 = vpop.f32.mrf.mxu0
    %v1827 = vadd.f32 0.0, %v1826
    %v1828 = vpop.f32.mrf.mxu0
    %1829 = vdwg.mxu0
    %1830 = vrot.lane.b32.xlu0 %v1510, 32
    %v1831 = vpop.permute.xlu0 %1830
    %v1833 = vsel %vm1339, %v1808, 0
    %v1836 = vsel %vm1367, %v1831, 0
    %1838 = vmatpush.bf16.msra.mxu0 0
    %1839 = vmatpush.bf16.msra.mxu0 0
    %1840 = vmatpush.bf16.msra.mxu0 0
    %1841 = vmatpush.bf16.msra.mxu0 0
    %1842 = vmatpush.bf16.msra.mxu0 0
    %1843 = vmatpush.bf16.msra.mxu0 0
    %1844 = vmatpush.bf16.msra.mxu0 0
    %1845 = vmatpush.bf16.msra.mxu0 %v1836
    %1846 = vmatmul.bf16.gmra.mxu0 %v1833
    %v1847 = vpop.f32.mrf.mxu0
    %v1848 = vadd.f32 0.0, %v1847
    %v1849 = vpop.f32.mrf.mxu0
    %1850 = vdwg.mxu0
    %v1851 = vpack.c.bf16 %v1848, %v1827
    %v1856 = vunpack.c.l.b16 %v1107
    %v1857 = vunpack.c.l.b16 %v1108
    %v1858 = vunpack.c.l.b16 %v1109
    %v1859 = vunpack.c.l.b16 %v1110
    %v1860 = vpack.c.b16 %v1857, %v1856
    %v1861 = vpack.c.b16 %v1859, %v1858
    %v1865 = vsel %vm1298, %v1851, 0
    %1867 = vmatpush.bf16.msra.mxu0 0
    %1868 = vmatpush.bf16.msra.mxu0 0
    %1869 = vmatpush.bf16.msra.mxu0 0
    %1870 = vmatpush.bf16.msra.mxu0 0
    %1871 = vmatpush.bf16.msra.mxu0 0
    %1872 = vmatpush.bf16.msra.mxu0 0
    %1873 = vmatpush.bf16.msra.mxu0 %v1861
    %1874 = vmatpush.bf16.msra.mxu0 %v1860
    %1875 = vmatmul.bf16.gmra.mxu0 %v1865
    %v1876 = vpop.f32.mrf.mxu0
    %v1877 = vadd.f32 0.0, %v1876
    %v1878 = vpop.f32.mrf.mxu0
    %v1879 = vadd.f32 0.0, %v1878
    %1880 = vdwg.mxu0
    %v1881 = vadd.f32 %v1735, %v1877
    %v1882 = vadd.f32 %v1736, %v1879
    %v1883 = vld [vmem:[#allocation17] sm:$0x1]
    %v1885 = vperm.slane %v1883, 0
    %v1887 = vadd.f32 %v1881, %v1885
    %v1888 = vadd.f32 %v1882, %v1885
    %v1889 = vadd.f32 %v1061, %v1887
    %v1890 = vadd.f32 %v1062, %v1888
    %v1891 = vld [vmem:[#allocation25] sm:$0x1]
    %v1892 = vld [vmem:[#allocation26] sm:$0x1]
    %1893 = vadd.xlane.f32.xlu0 %v1889
    %v1894 = vpop.xlane.xlu0 %1893
    %1895 = vadd.xlane.f32.xlu0 %v1890
    %v1896 = vpop.xlane.xlu0 %1895
    %v1897 = vrcp.pop 128.0
    %v1898 = vmul.f32 128.0, %v1897
    %v1899 = vsub.f32 1.0, %v1898
    %v1900 = vmul.f32 %v1897, %v1899
    %v1901 = vadd.f32 %v1897, %v1900
    %vm1902 = vweird.f32 %v1897
    %v1903 = vsel %vm1902, %v1897, %v1901
    %v1904 = vmul.f32 %v1894, %v1903
    %v1905 = vmul.f32 %v1896, %v1903
    %v1906 = vsub.f32 %v1889, %v1904
    %v1907 = vsub.f32 %v1890, %v1905
    %v1908 = vmul.f32 %v1906, %v1906
    %v1909 = vmul.f32 %v1907, %v1907
    %1910 = vadd.xlane.f32.xlu0 %v1908
    %v1911 = vpop.xlane.xlu0 %1910
    %1912 = vadd.xlane.f32.xlu0 %v1909
    %v1913 = vpop.xlane.xlu0 %1912
    %v1914 = vmul.f32 %v1911, %v1903
    %v1915 = vmul.f32 %v1913, %v1903
    %v1916 = vadd.f32 %v1914, 1e-05
    %v1917 = vadd.f32 %v1915, 1e-05
    %v1918 = vrsqrt.pop %v1916
    %v1919 = vmul.f32 %v1918, %v1916
    %v1920 = vmul.f32 %v1919, %v1918
    %v1921 = vmul.f32 0.5, %v1920
    %v1922 = vsub.f32 1.5, %v1921
    %v1923 = vmul.f32 %v1918, %v1922
    %vm1924 = vweird.f32 %v1916
    %vm1925 = vweird.f32 %v1918
    %vm1926 = vmor %vm1924, %vm1925
    %v1927 = vsel %vm1926, %v1918, %v1923
    %v1928 = vrsqrt.pop %v1917
    %v1929 = vmul.f32 %v1928, %v1917
    %v1930 = vmul.f32 %v1929, %v1928
    %v1931 = vmul.f32 0.5, %v1930
    %v1932 = vsub.f32 1.5, %v1931
    %v1933 = vmul.f32 %v1928, %v1932
    %vm1934 = vweird.f32 %v1917
    %vm1935 = vweird.f32 %v1928
    %vm1936 = vmor %vm1934, %vm1935
    %v1937 = vsel %vm1936, %v1928, %v1933
    %v1938 = vmul.f32 %v1906, %v1927
    %v1939 = vmul.f32 %v1907, %v1937
    %v1941 = vperm.slane %v1891, 0
    %v1943 = vmul.f32 %v1938, %v1941
    %v1944 = vmul.f32 %v1939, %v1941
    %v1946 = vperm.slane %v1892, 0
    %v1948 = vadd.f32 %v1943, %v1946
    %v1949 = vadd.f32 %v1944, %v1946
    %v1950 = vpack.c.bf16 %v1949, %v1948
    %v1951 = vld [vmem:[#allocation19] sm:$0xff]
    %v1952 = vld [vmem:[#allocation19 + $0x8] sm:$0xff]
    %v1953 = vld [vmem:[#allocation19 + $0x10] sm:$0xff]
    %v1954 = vld [vmem:[#allocation19 + $0x18] sm:$0xff]
    %v1955 = vld [vmem:[#allocation19 + $0x20] sm:$0xff]
    %v1956 = vld [vmem:[#allocation19 + $0x28] sm:$0xff]
    %v1957 = vld [vmem:[#allocation19 + $0x30] sm:$0xff]
    %v1958 = vld [vmem:[#allocation19 + $0x38] sm:$0xff]
    %v1959 = vld [vmem:[#allocation19 + $0x40] sm:$0xff]
    %v1960 = vld [vmem:[#allocation19 + $0x48] sm:$0xff]
    %v1961 = vld [vmem:[#allocation19 + $0x50] sm:$0xff]
    %v1962 = vld [vmem:[#allocation19 + $0x58] sm:$0xff]
    %v1963 = vld [vmem:[#allocation19 + $0x60] sm:$0xff]
    %v1964 = vld [vmem:[#allocation19 + $0x68] sm:$0xff]
    %v1965 = vld [vmem:[#allocation19 + $0x70] sm:$0xff]
    %v1966 = vld [vmem:[#allocation19 + $0x78] sm:$0xff]
    %v1967 = vld [vmem:[#allocation20] sm:$0x3]
    %v1969 = vperm.slane %v1967, 0
    %v1970 = vperm.slane %v1967, 1
    %v1989 = vunpack.c.l.b16 %v1951
    %v1990 = vunpack.c.h.b16 %v1951
    %v1991 = vunpack.c.l.b16 %v1952
    %v1992 = vunpack.c.h.b16 %v1952
    %v1993 = vunpack.c.l.b16 %v1953
    %v1994 = vunpack.c.h.b16 %v1953
    %v1995 = vunpack.c.l.b16 %v1954
    %v1996 = vunpack.c.h.b16 %v1954
    %v1997 = vunpack.c.l.b16 %v1955
    %v1998 = vunpack.c.h.b16 %v1955
    %v1999 = vunpack.c.l.b16 %v1956
    %v2000 = vunpack.c.h.b16 %v1956
    %v2001 = vunpack.c.l.b16 %v1957
    %v2002 = vunpack.c.h.b16 %v1957
    %v2003 = vunpack.c.l.b16 %v1958
    %v2004 = vunpack.c.h.b16 %v1958
    %v2005 = vunpack.c.l.b16 %v1959
    %v2006 = vunpack.c.h.b16 %v1959
    %v2007 = vunpack.c.l.b16 %v1960
    %v2008 = vunpack.c.h.b16 %v1960
    %v2009 = vunpack.c.l.b16 %v1961
    %v2010 = vunpack.c.h.b16 %v1961
    %v2011 = vunpack.c.l.b16 %v1962
    %v2012 = vunpack.c.h.b16 %v1962
    %v2013 = vunpack.c.l.b16 %v1963
    %v2014 = vunpack.c.h.b16 %v1963
    %v2015 = vunpack.c.l.b16 %v1964
    %v2016 = vunpack.c.h.b16 %v1964
    %v2017 = vunpack.c.l.b16 %v1965
    %v2018 = vunpack.c.h.b16 %v1965
    %v2019 = vunpack.c.l.b16 %v1966
    %v2020 = vunpack.c.h.b16 %v1966
    %v2021 = vpack.c.b16 %v1991, %v1989
    %v2022 = vpack.c.b16 %v1992, %v1990
    %v2023 = vpack.c.b16 %v1995, %v1993
    %v2024 = vpack.c.b16 %v1996, %v1994
    %v2025 = vpack.c.b16 %v1999, %v1997
    %v2026 = vpack.c.b16 %v2000, %v1998
    %v2027 = vpack.c.b16 %v2003, %v2001
    %v2028 = vpack.c.b16 %v2004, %v2002
    %v2029 = vpack.c.b16 %v2007, %v2005
    %v2030 = vpack.c.b16 %v2008, %v2006
    %v2031 = vpack.c.b16 %v2011, %v2009
    %v2032 = vpack.c.b16 %v2012, %v2010
    %v2033 = vpack.c.b16 %v2015, %v2013
    %v2034 = vpack.c.b16 %v2016, %v2014
    %v2035 = vpack.c.b16 %v2019, %v2017
    %v2036 = vpack.c.b16 %v2020, %v2018
    %2053 = vmatpush.bf16.msra.mxu0 %v2035
    %2054 = vmatpush.bf16.msra.mxu0 %v2033
    %2055 = vmatpush.bf16.msra.mxu0 %v2031
    %2056 = vmatpush.bf16.msra.mxu0 %v2029
    %2057 = vmatpush.bf16.msra.mxu0 %v2027
    %2058 = vmatpush.bf16.msra.mxu0 %v2025
    %2059 = vmatpush.bf16.msra.mxu0 %v2023
    %2060 = vmatpush.bf16.msra.mxu0 %v2021
    %2061 = vmatmul.bf16.gmra.mxu0 %v1950
    %v2062 = vpop.f32.mrf.mxu0
    %v2063 = vadd.f32 %v1969, %v2062
    %v2064 = vpop.f32.mrf.mxu0
    %v2065 = vadd.f32 %v1969, %v2064
    %2066 = vdwg.mxu0
    %2067 = vmatpush.bf16.msra.mxu0 %v2036
    %2068 = vmatpush.bf16.msra.mxu0 %v2034
    %2069 = vmatpush.bf16.msra.mxu0 %v2032
    %2070 = vmatpush.bf16.msra.mxu0 %v2030
    %2071 = vmatpush.bf16.msra.mxu0 %v2028
    %2072 = vmatpush.bf16.msra.mxu0 %v2026
    %2073 = vmatpush.bf16.msra.mxu0 %v2024
    %2074 = vmatpush.bf16.msra.mxu0 %v2022
    %2075 = vmatmul.bf16.gmra.mxu0 %v1950
    %v2076 = vpop.f32.mrf.mxu0
    %v2077 = vadd.f32 %v1970, %v2076
    %v2078 = vpop.f32.mrf.mxu0
    %v2079 = vadd.f32 %v1970, %v2078
    %2080 = vdwg.mxu0
    %v2081 = vmax.f32 %v2063, 0.0
    %v2082 = vmax.f32 %v2077, 0.0
    %v2083 = vmax.f32 %v2065, 0.0
    %v2084 = vmax.f32 %v2079, 0.0
    %v2085 = vpack.c.bf16 %v2083, %v2081
    %v2086 = vpack.c.bf16 %v2084, %v2082
    %v2087 = vld [vmem:[#allocation22] sm:$0xf]
    %v2088 = vld [vmem:[#allocation22 + $0x4] sm:$0xf]
    %v2089 = vld [vmem:[#allocation22 + $0x8] sm:$0xf]
    %v2090 = vld [vmem:[#allocation22 + $0xc] sm:$0xf]
    %v2091 = vld [vmem:[#allocation22 + $0x10] sm:$0xf]
    %v2092 = vld [vmem:[#allocation22 + $0x14] sm:$0xf]
    %v2093 = vld [vmem:[#allocation22 + $0x18] sm:$0xf]
    %v2094 = vld [vmem:[#allocation22 + $0x1c] sm:$0xf]
    %v2095 = vld [vmem:[#allocation22 + $0x20] sm:$0xf]
    %v2096 = vld [vmem:[#allocation22 + $0x24] sm:$0xf]
    %v2097 = vld [vmem:[#allocation22 + $0x28] sm:$0xf]
    %v2098 = vld [vmem:[#allocation22 + $0x2c] sm:$0xf]
    %v2099 = vld [vmem:[#allocation22 + $0x30] sm:$0xf]
    %v2100 = vld [vmem:[#allocation22 + $0x34] sm:$0xf]
    %v2101 = vld [vmem:[#allocation22 + $0x38] sm:$0xf]
    %v2102 = vld [vmem:[#allocation22 + $0x3c] sm:$0xf]
    %v2103 = vld [vmem:[#allocation22 + $0x40] sm:$0xf]
    %v2104 = vld [vmem:[#allocation22 + $0x44] sm:$0xf]
    %v2105 = vld [vmem:[#allocation22 + $0x48] sm:$0xf]
    %v2106 = vld [vmem:[#allocation22 + $0x4c] sm:$0xf]
    %v2107 = vld [vmem:[#allocation22 + $0x50] sm:$0xf]
    %v2108 = vld [vmem:[#allocation22 + $0x54] sm:$0xf]
    %v2109 = vld [vmem:[#allocation22 + $0x58] sm:$0xf]
    %v2110 = vld [vmem:[#allocation22 + $0x5c] sm:$0xf]
    %v2111 = vld [vmem:[#allocation22 + $0x60] sm:$0xf]
    %v2112 = vld [vmem:[#allocation22 + $0x64] sm:$0xf]
    %v2113 = vld [vmem:[#allocation22 + $0x68] sm:$0xf]
    %v2114 = vld [vmem:[#allocation22 + $0x6c] sm:$0xf]
    %v2115 = vld [vmem:[#allocation22 + $0x70] sm:$0xf]
    %v2116 = vld [vmem:[#allocation22 + $0x74] sm:$0xf]
    %v2117 = vld [vmem:[#allocation22 + $0x78] sm:$0xf]
    %v2118 = vld [vmem:[#allocation22 + $0x7c] sm:$0xf]
    %v2119 = vld [vmem:[#allocation23] sm:$0x1]
    %v2121 = vperm.slane %v2119, 0
    %v2155 = vunpack.c.l.b16 %v2087
    %v2156 = vunpack.c.l.b16 %v2088
    %v2157 = vunpack.c.l.b16 %v2089
    %v2158 = vunpack.c.l.b16 %v2090
    %v2159 = vunpack.c.l.b16 %v2091
    %v2160 = vunpack.c.l.b16 %v2092
    %v2161 = vunpack.c.l.b16 %v2093
    %v2162 = vunpack.c.l.b16 %v2094
    %v2163 = vunpack.c.l.b16 %v2095
    %v2164 = vunpack.c.l.b16 %v2096
    %v2165 = vunpack.c.l.b16 %v2097
    %v2166 = vunpack.c.l.b16 %v2098
    %v2167 = vunpack.c.l.b16 %v2099
    %v2168 = vunpack.c.l.b16 %v2100
    %v2169 = vunpack.c.l.b16 %v2101
    %v2170 = vunpack.c.l.b16 %v2102
    %v2171 = vunpack.c.l.b16 %v2103
    %v2172 = vunpack.c.l.b16 %v2104
    %v2173 = vunpack.c.l.b16 %v2105
    %v2174 = vunpack.c.l.b16 %v2106
    %v2175 = vunpack.c.l.b16 %v2107
    %v2176 = vunpack.c.l.b16 %v2108
    %v2177 = vunpack.c.l.b16 %v2109
    %v2178 = vunpack.c.l.b16 %v2110
    %v2179 = vunpack.c.l.b16 %v2111
    %v2180 = vunpack.c.l.b16 %v2112
    %v2181 = vunpack.c.l.b16 %v2113
    %v2182 = vunpack.c.l.b16 %v2114
    %v2183 = vunpack.c.l.b16 %v2115
    %v2184 = vunpack.c.l.b16 %v2116
    %v2185 = vunpack.c.l.b16 %v2117
    %v2186 = vunpack.c.l.b16 %v2118
    %v2187 = vpack.c.b16 %v2156, %v2155
    %v2188 = vpack.c.b16 %v2158, %v2157
    %v2189 = vpack.c.b16 %v2160, %v2159
    %v2190 = vpack.c.b16 %v2162, %v2161
    %v2191 = vpack.c.b16 %v2164, %v2163
    %v2192 = vpack.c.b16 %v2166, %v2165
    %v2193 = vpack.c.b16 %v2168, %v2167
    %v2194 = vpack.c.b16 %v2170, %v2169
    %v2195 = vpack.c.b16 %v2172, %v2171
    %v2196 = vpack.c.b16 %v2174, %v2173
    %v2197 = vpack.c.b16 %v2176, %v2175
    %v2198 = vpack.c.b16 %v2178, %v2177
    %v2199 = vpack.c.b16 %v2180, %v2179
    %v2200 = vpack.c.b16 %v2182, %v2181
    %v2201 = vpack.c.b16 %v2184, %v2183
    %v2202 = vpack.c.b16 %v2186, %v2185
    %2219 = vmatpush.bf16.msra.mxu0 %v2194
    %2220 = vmatpush.bf16.msra.mxu0 %v2193
    %2221 = vmatpush.bf16.msra.mxu0 %v2192
    %2222 = vmatpush.bf16.msra.mxu0 %v2191
    %2223 = vmatpush.bf16.msra.mxu0 %v2190
    %2224 = vmatpush.bf16.msra.mxu0 %v2189
    %2225 = vmatpush.bf16.msra.mxu0 %v2188
    %2226 = vmatpush.bf16.msra.mxu0 %v2187
    %2227 = vmatmul.bf16.gmra.mxu0 %v2085
    %v2228 = vpop.f32.mrf.mxu0
    %v2229 = vadd.f32 %v2121, %v2228
    %v2230 = vpop.f32.mrf.mxu0
    %v2231 = vadd.f32 %v2121, %v2230
    %2232 = vdwg.mxu0
    %2233 = vmatpush.bf16.msra.mxu0 %v2202
    %2234 = vmatpush.bf16.msra.mxu0 %v2201
    %2235 = vmatpush.bf16.msra.mxu0 %v2200
    %2236 = vmatpush.bf16.msra.mxu0 %v2199
    %2237 = vmatpush.bf16.msra.mxu0 %v2198
    %2238 = vmatpush.bf16.msra.mxu0 %v2197
    %2239 = vmatpush.bf16.msra.mxu0 %v2196
    %2240 = vmatpush.bf16.msra.mxu0 %v2195
    %2241 = vmatmul.bf16.gmra.mxu0 %v2086
    %v2242 = vpop.f32.mrf.mxu0
    %v2243 = vadd.f32 %v2229, %v2242
    %v2244 = vpop.f32.mrf.mxu0
    %v2245 = vadd.f32 %v2231, %v2244
    %2246 = vdwg.mxu0
    %v2247 = vadd.f32 %v1948, %v2243
    %v2248 = vadd.f32 %v1949, %v2245
    %v2249 = vld [vmem:[#allocation28] sm:$0x1]
    %v2250 = vld [vmem:[#allocation29] sm:$0x1]
    %2251 = vadd.xlane.f32.xlu0 %v2247
    %v2252 = vpop.xlane.xlu0 %2251
    %2253 = vadd.xlane.f32.xlu0 %v2248
    %v2254 = vpop.xlane.xlu0 %2253
    %v2255 = vmul.f32 %v2252, %v1903
    %v2256 = vmul.f32 %v2254, %v1903
    %v2257 = vsub.f32 %v2247, %v2255
    %v2258 = vsub.f32 %v2248, %v2256
    %v2259 = vmul.f32 %v2257, %v2257
    %v2260 = vmul.f32 %v2258, %v2258
    %2261 = vadd.xlane.f32.xlu0 %v2259
    %v2262 = vpop.xlane.xlu0 %2261
    %2263 = vadd.xlane.f32.xlu0 %v2260
    %v2264 = vpop.xlane.xlu0 %2263
    %v2265 = vmul.f32 %v2262, %v1903
    %v2266 = vmul.f32 %v2264, %v1903
    %v2267 = vadd.f32 %v2265, 1e-05
    %v2268 = vadd.f32 %v2266, 1e-05
    %v2269 = vrsqrt.pop %v2267
    %v2270 = vmul.f32 %v2269, %v2267
    %v2271 = vmul.f32 %v2270, %v2269
    %v2272 = vmul.f32 0.5, %v2271
    %v2273 = vsub.f32 1.5, %v2272
    %v2274 = vmul.f32 %v2269, %v2273
    %vm2275 = vweird.f32 %v2267
    %vm2276 = vweird.f32 %v2269
    %vm2277 = vmor %vm2275, %vm2276
    %v2278 = vsel %vm2277, %v2269, %v2274
    %v2279 = vrsqrt.pop %v2268
    %v2280 = vmul.f32 %v2279, %v2268
    %v2281 = vmul.f32 %v2280, %v2279
    %v2282 = vmul.f32 0.5, %v2281
    %v2283 = vsub.f32 1.5, %v2282
    %v2284 = vmul.f32 %v2279, %v2283
    %vm2285 = vweird.f32 %v2268
    %vm2286 = vweird.f32 %v2279
    %vm2287 = vmor %vm2285, %vm2286
    %v2288 = vsel %vm2287, %v2279, %v2284
    %v2289 = vmul.f32 %v2257, %v2278
    %v2290 = vmul.f32 %v2258, %v2288
    %v2292 = vperm.slane %v2249, 0
    %v2294 = vmul.f32 %v2289, %v2292
    %v2295 = vmul.f32 %v2290, %v2292
    %v2297 = vperm.slane %v2250, 0
    %v2299 = vadd.f32 %v2294, %v2297
    %v2300 = vadd.f32 %v2295, %v2297
    %s2301 = scalar_lea.vmem [#allocation13], 192
    %v2302 = vld [vmem:[%s2301] sm:$0xff]
    %v2303 = vld [vmem:[%s2301 + $0x8] sm:$0xf]
    %v2304 = vld [vmem:[%s2301 + $0xc] sm:$0xff]
    %v2305 = vld [vmem:[%s2301 + $0x14] sm:$0xf]
    %v2306 = vld [vmem:[%s2301 + $0x18] sm:$0xff]
    %v2307 = vld [vmem:[%s2301 + $0x20] sm:$0xf]
    %v2308 = vld [vmem:[%s2301 + $0x24] sm:$0xff]
    %v2309 = vld [vmem:[%s2301 + $0x2c] sm:$0xf]
    %v2310 = vld [vmem:[%s2301 + $0x30] sm:$0xff]
    %v2311 = vld [vmem:[%s2301 + $0x38] sm:$0xf]
    %v2312 = vld [vmem:[%s2301 + $0x3c] sm:$0xff]
    %v2313 = vld [vmem:[%s2301 + $0x44] sm:$0xf]
    %v2314 = vld [vmem:[%s2301 + $0x48] sm:$0xff]
    %v2315 = vld [vmem:[%s2301 + $0x50] sm:$0xf]
    %v2316 = vld [vmem:[%s2301 + $0x54] sm:$0xff]
    %v2317 = vld [vmem:[%s2301 + $0x5c] sm:$0xf]
    %v2318 = vld [vmem:[%s2301 + $0x60] sm:$0xff]
    %v2319 = vld [vmem:[%s2301 + $0x68] sm:$0xf]
    %v2320 = vld [vmem:[%s2301 + $0x6c] sm:$0xff]
    %v2321 = vld [vmem:[%s2301 + $0x74] sm:$0xf]
    %v2322 = vld [vmem:[%s2301 + $0x78] sm:$0xff]
    %v2323 = vld [vmem:[%s2301 + $0x80] sm:$0xf]
    %v2324 = vld [vmem:[%s2301 + $0x84] sm:$0xff]
    %v2325 = vld [vmem:[%s2301 + $0x8c] sm:$0xf]
    %v2326 = vld [vmem:[%s2301 + $0x90] sm:$0xff]
    %v2327 = vld [vmem:[%s2301 + $0x98] sm:$0xf]
    %v2328 = vld [vmem:[%s2301 + $0x9c] sm:$0xff]
    %v2329 = vld [vmem:[%s2301 + $0xa4] sm:$0xf]
    %v2330 = vld [vmem:[%s2301 + $0xa8] sm:$0xff]
    %v2331 = vld [vmem:[%s2301 + $0xb0] sm:$0xf]
    %v2332 = vld [vmem:[%s2301 + $0xb4] sm:$0xff]
    %v2333 = vld [vmem:[%s2301 + $0xbc] sm:$0xf]
    %s2334 = scalar_lea.vmem [#allocation16], 64
    %v2335 = vld [vmem:[%s2334] sm:$0xf]
    %v2336 = vld [vmem:[%s2334 + $0x4] sm:$0xf]
    %v2337 = vld [vmem:[%s2334 + $0x8] sm:$0xf]
    %v2338 = vld [vmem:[%s2334 + $0xc] sm:$0xf]
    %v2339 = vld [vmem:[%s2334 + $0x10] sm:$0xf]
    %v2340 = vld [vmem:[%s2334 + $0x14] sm:$0xf]
    %v2341 = vld [vmem:[%s2334 + $0x18] sm:$0xf]
    %v2342 = vld [vmem:[%s2334 + $0x1c] sm:$0xf]
    %v2343 = vld [vmem:[%s2334 + $0x20] sm:$0xf]
    %v2344 = vld [vmem:[%s2334 + $0x24] sm:$0xf]
    %v2345 = vld [vmem:[%s2334 + $0x28] sm:$0xf]
    %v2346 = vld [vmem:[%s2334 + $0x2c] sm:$0xf]
    %v2347 = vld [vmem:[%s2334 + $0x30] sm:$0xf]
    %v2348 = vld [vmem:[%s2334 + $0x34] sm:$0xf]
    %v2349 = vld [vmem:[%s2334 + $0x38] sm:$0xf]
    %v2350 = vld [vmem:[%s2334 + $0x3c] sm:$0xf]
    %v2351 = vpack.c.bf16 %v2300, %v2299
    %s2352 = scalar_lea.vmem [#allocation14], 3
    %v2353 = vld [vmem:[%s2352] sm:$0x7]
    %v2355 = vperm.slane %v2353, 0
    %v2356 = vperm.slane %v2353, 1
    %v2357 = vperm.slane %v2353, 2
    %v2393 = vunpack.c.l.b16 %v2302
    %v2394 = vunpack.c.h.b16 %v2302
    %v2395 = vunpack.c.l.b16 %v2303
    %v2396 = vunpack.c.l.b16 %v2304
    %v2397 = vunpack.c.h.b16 %v2304
    %v2398 = vunpack.c.l.b16 %v2305
    %v2399 = vunpack.c.l.b16 %v2306
    %v2400 = vunpack.c.h.b16 %v2306
    %v2401 = vunpack.c.l.b16 %v2307
    %v2402 = vunpack.c.l.b16 %v2308
    %v2403 = vunpack.c.h.b16 %v2308
    %v2404 = vunpack.c.l.b16 %v2309
    %v2405 = vunpack.c.l.b16 %v2310
    %v2406 = vunpack.c.h.b16 %v2310
    %v2407 = vunpack.c.l.b16 %v2311
    %v2408 = vunpack.c.l.b16 %v2312
    %v2409 = vunpack.c.h.b16 %v2312
    %v2410 = vunpack.c.l.b16 %v2313
    %v2411 = vunpack.c.l.b16 %v2314
    %v2412 = vunpack.c.h.b16 %v2314
    %v2413 = vunpack.c.l.b16 %v2315
    %v2414 = vunpack.c.l.b16 %v2316
    %v2415 = vunpack.c.h.b16 %v2316
    %v2416 = vunpack.c.l.b16 %v2317
    %v2417 = vunpack.c.l.b16 %v2318
    %v2418 = vunpack.c.h.b16 %v2318
    %v2419 = vunpack.c.l.b16 %v2319
    %v2420 = vunpack.c.l.b16 %v2320
    %v2421 = vunpack.c.h.b16 %v2320
    %v2422 = vunpack.c.l.b16 %v2321
    %v2423 = vunpack.c.l.b16 %v2322
    %v2424 = vunpack.c.h.b16 %v2322
    %v2425 = vunpack.c.l.b16 %v2323
    %v2426 = vunpack.c.l.b16 %v2324
    %v2427 = vunpack.c.h.b16 %v2324
    %v2428 = vunpack.c.l.b16 %v2325
    %v2429 = vunpack.c.l.b16 %v2326
    %v2430 = vunpack.c.h.b16 %v2326
    %v2431 = vunpack.c.l.b16 %v2327
    %v2432 = vunpack.c.l.b16 %v2328
    %v2433 = vunpack.c.h.b16 %v2328
    %v2434 = vunpack.c.l.b16 %v2329
    %v2435 = vunpack.c.l.b16 %v2330
    %v2436 = vunpack.c.h.b16 %v2330
    %v2437 = vunpack.c.l.b16 %v2331
    %v2438 = vunpack.c.l.b16 %v2332
    %v2439 = vunpack.c.h.b16 %v2332
    %v2440 = vunpack.c.l.b16 %v2333
    %v2441 = vpack.c.b16 %v2396, %v2393
    %v2442 = vpack.c.b16 %v2397, %v2394
    %v2443 = vpack.c.b16 %v2398, %v2395
    %v2444 = vpack.c.b16 %v2402, %v2399
    %v2445 = vpack.c.b16 %v2403, %v2400
    %v2446 = vpack.c.b16 %v2404, %v2401
    %v2447 = vpack.c.b16 %v2408, %v2405
    %v2448 = vpack.c.b16 %v2409, %v2406
    %v2449 = vpack.c.b16 %v2410, %v2407
    %v2450 = vpack.c.b16 %v2414, %v2411
    %v2451 = vpack.c.b16 %v2415, %v2412
    %v2452 = vpack.c.b16 %v2416, %v2413
    %v2453 = vpack.c.b16 %v2420, %v2417
    %v2454 = vpack.c.b16 %v2421, %v2418
    %v2455 = vpack.c.b16 %v2422, %v2419
    %v2456 = vpack.c.b16 %v2426, %v2423
    %v2457 = vpack.c.b16 %v2427, %v2424
    %v2458 = vpack.c.b16 %v2428, %v2425
    %v2459 = vpack.c.b16 %v2432, %v2429
    %v2460 = vpack.c.b16 %v2433, %v2430
    %v2461 = vpack.c.b16 %v2434, %v2431
    %v2462 = vpack.c.b16 %v2438, %v2435
    %v2463 = vpack.c.b16 %v2439, %v2436
    %v2464 = vpack.c.b16 %v2440, %v2437
    %2489 = vmatpush.bf16.msra.mxu0 %v2462
    %2490 = vmatpush.bf16.msra.mxu0 %v2459
    %2491 = vmatpush.bf16.msra.mxu0 %v2456
    %2492 = vmatpush.bf16.msra.mxu0 %v2453
    %2493 = vmatpush.bf16.msra.mxu0 %v2450
    %2494 = vmatpush.bf16.msra.mxu0 %v2447
    %2495 = vmatpush.bf16.msra.mxu0 %v2444
    %2496 = vmatpush.bf16.msra.mxu0 %v2441
    %2497 = vmatmul.bf16.gmra.mxu0 %v2351
    %v2498 = vpop.f32.mrf.mxu0
    %v2499 = vadd.f32 %v2355, %v2498
    %v2500 = vpop.f32.mrf.mxu0
    %v2501 = vadd.f32 %v2355, %v2500
    %2502 = vdwg.mxu0
    %2503 = vmatpush.bf16.msra.mxu0 %v2463
    %2504 = vmatpush.bf16.msra.mxu0 %v2460
    %2505 = vmatpush.bf16.msra.mxu0 %v2457
    %2506 = vmatpush.bf16.msra.mxu0 %v2454
    %2507 = vmatpush.bf16.msra.mxu0 %v2451
    %2508 = vmatpush.bf16.msra.mxu0 %v2448
    %2509 = vmatpush.bf16.msra.mxu0 %v2445
    %2510 = vmatpush.bf16.msra.mxu0 %v2442
    %2511 = vmatmul.bf16.gmra.mxu0 %v2351
    %v2512 = vpop.f32.mrf.mxu0
    %v2513 = vadd.f32 %v2356, %v2512
    %v2514 = vpop.f32.mrf.mxu0
    %v2515 = vadd.f32 %v2356, %v2514
    %2516 = vdwg.mxu0
    %2517 = vmatpush.bf16.msra.mxu0 %v2464
    %2518 = vmatpush.bf16.msra.mxu0 %v2461
    %2519 = vmatpush.bf16.msra.mxu0 %v2458
    %2520 = vmatpush.bf16.msra.mxu0 %v2455
    %2521 = vmatpush.bf16.msra.mxu0 %v2452
    %2522 = vmatpush.bf16.msra.mxu0 %v2449
    %2523 = vmatpush.bf16.msra.mxu0 %v2446
    %2524 = vmatpush.bf16.msra.mxu0 %v2443
    %2525 = vmatmul.bf16.gmra.mxu0 %v2351
    %v2526 = vpop.f32.mrf.mxu0
    %v2527 = vadd.f32 %v2357, %v2526
    %v2528 = vpop.f32.mrf.mxu0
    %v2529 = vadd.f32 %v2357, %v2528
    %2530 = vdwg.mxu0
    %v2531 = vpack.c.bf16 %v2513, %v2499
    %v2532 = vpack.c.bf16 %v2527, %v2527
    %v2533 = vpack.c.bf16 %v2515, %v2501
    %v2534 = vpack.c.bf16 %v2529, %v2529
    %v2537 = vrot.slane %v2531, 4
    %v2538 = vrot.slane %v2533, 4
    %v2540 = vsel %vm1298, %v2531, 0
    %v2543 = vsel %vm1298, %v2537, 0
    %2545 = vmatpush.bf16.xpose.msra.mxu0 0
    %2546 = vmatpush.bf16.xpose.msra.mxu0 0
    %2547 = vmatpush.bf16.xpose.msra.mxu0 0
    %2548 = vmatpush.bf16.xpose.msra.mxu0 0
    %2549 = vmatpush.bf16.xpose.msra.mxu0 0
    %2550 = vmatpush.bf16.xpose.msra.mxu0 0
    %2551 = vmatpush.bf16.xpose.msra.mxu0 0
    %2552 = vmatpush.bf16.xpose.msra.mxu0 %v2543
    %2553 = vmatmul.bf16.gmra.mxu0 %v2540
    %v2554 = vpop.f32.mrf.mxu0
    %v2555 = vadd.f32 0.0, %v2554
    %v2556 = vpop.f32.mrf.mxu0
    %2557 = vdwg.mxu0
    %v2559 = vsel %vm1298, %v2533, 0
    %v2562 = vsel %vm1298, %v2538, 0
    %2564 = vmatpush.bf16.xpose.msra.mxu0 0
    %2565 = vmatpush.bf16.xpose.msra.mxu0 0
    %2566 = vmatpush.bf16.xpose.msra.mxu0 0
    %2567 = vmatpush.bf16.xpose.msra.mxu0 0
    %2568 = vmatpush.bf16.xpose.msra.mxu0 0
    %2569 = vmatpush.bf16.xpose.msra.mxu0 0
    %2570 = vmatpush.bf16.xpose.msra.mxu0 0
    %2571 = vmatpush.bf16.xpose.msra.mxu0 %v2562
    %2572 = vmatmul.bf16.gmra.mxu0 %v2559
    %v2573 = vpop.f32.mrf.mxu0
    %v2574 = vadd.f32 0.0, %v2573
    %v2575 = vpop.f32.mrf.mxu0
    %2576 = vdwg.mxu0
    %v2577 = vmul.f32 %v2555, 0.17677669
    %v2578 = vmul.f32 %v2574, 0.17677669
    %v2579 = vsel %vm1339, %v2577, -inf
    %2580 = vmax.xlane.f32.xlu0 %v2579
    %v2581 = vpop.xlane.xlu0 %2580
    %v2582 = vsel %vm1339, %v2578, -inf
    %2583 = vmax.xlane.f32.xlu0 %v2582
    %v2584 = vpop.xlane.xlu0 %2583
    %v2585 = vsub.f32 %v2577, %v2581
    %v2586 = vsub.f32 %v2578, %v2584
    %v2587 = vmul.f32 %v2585, 1.442695
    %v2588 = vpow.pop %v2587
    %v2589 = vmul.f32 %v2586, 1.442695
    %v2590 = vpow.pop %v2589
    %v2591 = vsel %vm1339, %v2588, 0.0
    %2592 = vadd.xlane.f32.xlu0 %v2591
    %v2593 = vpop.xlane.xlu0 %2592
    %v2594 = vsel %vm1339, %v2590, 0.0
    %2595 = vadd.xlane.f32.xlu0 %v2594
    %v2596 = vpop.xlane.xlu0 %2595
    %v2597 = vrcp.pop %v2593
    %v2598 = vrcp.pop %v2596
    %v2599 = vmul.f32 %v2588, %v2597
    %v2600 = vmul.f32 %v2590, %v2598
    %v2601 = vpack.c.bf16 %v2599, %v2599
    %v2602 = vpack.c.bf16 %v2600, %v2600
    %v2604 = vsel %vm1339, %v2601, 0
    %v2607 = vsel %vm1367, %v2532, 0
    %2609 = vmatpush.bf16.msra.mxu0 0
    %2610 = vmatpush.bf16.msra.mxu0 0
    %2611 = vmatpush.bf16.msra.mxu0 0
    %2612 = vmatpush.bf16.msra.mxu0 0
    %2613 = vmatpush.bf16.msra.mxu0 0
    %2614 = vmatpush.bf16.msra.mxu0 0
    %2615 = vmatpush.bf16.msra.mxu0 0
    %2616 = vmatpush.bf16.msra.mxu0 %v2607
    %2617 = vmatmul.bf16.gmra.mxu0 %v2604
    %v2618 = vpop.f32.mrf.mxu0
    %v2619 = vadd.f32 0.0, %v2618
    %v2620 = vpop.f32.mrf.mxu0
    %2621 = vdwg.mxu0
    %v2623 = vsel %vm1339, %v2602, 0
    %v2626 = vsel %vm1367, %v2534, 0
    %2628 = vmatpush.bf16.msra.mxu0 0
    %2629 = vmatpush.bf16.msra.mxu0 0
    %2630 = vmatpush.bf16.msra.mxu0 0
    %2631 = vmatpush.bf16.msra.mxu0 0
    %2632 = vmatpush.bf16.msra.mxu0 0
    %2633 = vmatpush.bf16.msra.mxu0 0
    %2634 = vmatpush.bf16.msra.mxu0 0
    %2635 = vmatpush.bf16.msra.mxu0 %v2626
    %2636 = vmatmul.bf16.gmra.mxu0 %v2623
    %v2637 = vpop.f32.mrf.mxu0
    %v2638 = vadd.f32 0.0, %v2637
    %v2639 = vpop.f32.mrf.mxu0
    %2640 = vdwg.mxu0
    %v2641 = vpack.c.bf16 %v2638, %v2619
    %v2642 = vunpack.c.l.b16 %v2531
    %v2643 = vpack.c.b16 %v2642, %v2642
    %2644 = vrot.lane.b32.xlu0 %v2643, 96
    %v2645 = vpop.permute.xlu0 %2644
    %v2646 = vunpack.c.l.b16 %v2537
    %v2647 = vpack.c.b16 %v2646, %v2646
    %2648 = vrot.lane.b32.xlu0 %v2647, 96
    %v2649 = vpop.permute.xlu0 %2648
    %v2651 = vsel %vm1298, %v2645, 0
    %v2654 = vsel %vm1298, %v2649, 0
    %2656 = vmatpush.bf16.xpose.msra.mxu0 0
    %2657 = vmatpush.bf16.xpose.msra.mxu0 0
    %2658 = vmatpush.bf16.xpose.msra.mxu0 0
    %2659 = vmatpush.bf16.xpose.msra.mxu0 0
    %2660 = vmatpush.bf16.xpose.msra.mxu0 0
    %2661 = vmatpush.bf16.xpose.msra.mxu0 0
    %2662 = vmatpush.bf16.xpose.msra.mxu0 0
    %2663 = vmatpush.bf16.xpose.msra.mxu0 %v2654
    %2664 = vmatmul.bf16.gmra.mxu0 %v2651
    %v2665 = vpop.f32.mrf.mxu0
    %v2666 = vadd.f32 0.0, %v2665
    %v2667 = vpop.f32.mrf.mxu0
    %2668 = vdwg.mxu0
    %v2669 = vunpack.c.l.b16 %v2533
    %v2670 = vpack.c.b16 %v2669, %v2669
    %2671 = vrot.lane.b32.xlu0 %v2670, 96
    %v2672 = vpop.permute.xlu0 %2671
    %v2673 = vunpack.c.l.b16 %v2538
    %v2674 = vpack.c.b16 %v2673, %v2673
    %2675 = vrot.lane.b32.xlu0 %v2674, 96
    %v2676 = vpop.permute.xlu0 %2675
    %v2678 = vsel %vm1298, %v2672, 0
    %v2681 = vsel %vm1298, %v2676, 0
    %2683 = vmatpush.bf16.xpose.msra.mxu0 0
    %2684 = vmatpush.bf16.xpose.msra.mxu0 0
    %2685 = vmatpush.bf16.xpose.msra.mxu0 0
    %2686 = vmatpush.bf16.xpose.msra.mxu0 0
    %2687 = vmatpush.bf16.xpose.msra.mxu0 0
    %2688 = vmatpush.bf16.xpose.msra.mxu0 0
    %2689 = vmatpush.bf16.xpose.msra.mxu0 0
    %2690 = vmatpush.bf16.xpose.msra.mxu0 %v2681
    %2691 = vmatmul.bf16.gmra.mxu0 %v2678
    %v2692 = vpop.f32.mrf.mxu0
    %v2693 = vadd.f32 0.0, %v2692
    %v2694 = vpop.f32.mrf.mxu0
    %2695 = vdwg.mxu0
    %v2696 = vmul.f32 %v2666, 0.17677669
    %v2697 = vmul.f32 %v2693, 0.17677669
    %v2698 = vsel %vm1339, %v2696, -inf
    %2699 = vmax.xlane.f32.xlu0 %v2698
    %v2700 = vpop.xlane.xlu0 %2699
    %v2701 = vsel %vm1339, %v2697, -inf
    %2702 = vmax.xlane.f32.xlu0 %v2701
    %v2703 = vpop.xlane.xlu0 %2702
    %v2704 = vsub.f32 %v2696, %v2700
    %v2705 = vsub.f32 %v2697, %v2703
    %v2706 = vmul.f32 %v2704, 1.442695
    %v2707 = vpow.pop %v2706
    %v2708 = vmul.f32 %v2705, 1.442695
    %v2709 = vpow.pop %v2708
    %v2710 = vsel %vm1339, %v2707, 0.0
    %2711 = vadd.xlane.f32.xlu0 %v2710
    %v2712 = vpop.xlane.xlu0 %2711
    %v2713 = vsel %vm1339, %v2709, 0.0
    %2714 = vadd.xlane.f32.xlu0 %v2713
    %v2715 = vpop.xlane.xlu0 %2714
    %v2716 = vrcp.pop %v2712
    %v2717 = vrcp.pop %v2715
    %v2718 = vmul.f32 %v2707, %v2716
    %v2719 = vmul.f32 %v2709, %v2717
    %v2720 = vpack.c.bf16 %v2718, %v2718
    %v2721 = vpack.c.bf16 %v2719, %v2719
    %v2723 = vunpack.c.l.b16 %v2532
    %v2724 = vpack.c.b16 %v2723, %v2723
    %2725 = vrot.lane.b32.xlu0 %v2724, 96
    %v2726 = vpop.permute.xlu0 %2725
    %v2728 = vsel %vm1339, %v2720, 0
    %v2731 = vsel %vm1367, %v2726, 0
    %2733 = vmatpush.bf16.msra.mxu0 0
    %2734 = vmatpush.bf16.msra.mxu0 0
    %2735 = vmatpush.bf16.msra.mxu0 0
    %2736 = vmatpush.bf16.msra.mxu0 0
    %2737 = vmatpush.bf16.msra.mxu0 0
    %2738 = vmatpush.bf16.msra.mxu0 0
    %2739 = vmatpush.bf16.msra.mxu0 0
    %2740 = vmatpush.bf16.msra.mxu0 %v2731
    %2741 = vmatmul.bf16.gmra.mxu0 %v2728
    %v2742 = vpop.f32.mrf.mxu0
    %v2743 = vadd.f32 0.0, %v2742
    %v2744 = vpop.f32.mrf.mxu0
    %2745 = vdwg.mxu0
    %v2747 = vunpack.c.l.b16 %v2534
    %v2748 = vpack.c.b16 %v2747, %v2747
    %2749 = vrot.lane.b32.xlu0 %v2748, 96
    %v2750 = vpop.permute.xlu0 %2749
    %v2752 = vsel %vm1339, %v2721, 0
    %v2755 = vsel %vm1367, %v2750, 0
    %2757 = vmatpush.bf16.msra.mxu0 0
    %2758 = vmatpush.bf16.msra.mxu0 0
    %2759 = vmatpush.bf16.msra.mxu0 0
    %2760 = vmatpush.bf16.msra.mxu0 0
    %2761 = vmatpush.bf16.msra.mxu0 0
    %2762 = vmatpush.bf16.msra.mxu0 0
    %2763 = vmatpush.bf16.msra.mxu0 0
    %2764 = vmatpush.bf16.msra.mxu0 %v2755
    %2765 = vmatmul.bf16.gmra.mxu0 %v2752
    %v2766 = vpop.f32.mrf.mxu0
    %v2767 = vadd.f32 0.0, %v2766
    %v2768 = vpop.f32.mrf.mxu0
    %2769 = vdwg.mxu0
    %v2770 = vpack.c.bf16 %v2767, %v2743
    %v2775 = vunpack.c.l.b16 %v2339
    %v2776 = vunpack.c.l.b16 %v2340
    %v2777 = vunpack.c.l.b16 %v2341
    %v2778 = vunpack.c.l.b16 %v2342
    %v2779 = vpack.c.b16 %v2776, %v2775
    %v2780 = vpack.c.b16 %v2778, %v2777
    %v2784 = vsel %vm1298, %v2770, 0
    %2786 = vmatpush.bf16.msra.mxu0 0
    %2787 = vmatpush.bf16.msra.mxu0 0
    %2788 = vmatpush.bf16.msra.mxu0 0
    %2789 = vmatpush.bf16.msra.mxu0 0
    %2790 = vmatpush.bf16.msra.mxu0 0
    %2791 = vmatpush.bf16.msra.mxu0 0
    %2792 = vmatpush.bf16.msra.mxu0 %v2780
    %2793 = vmatpush.bf16.msra.mxu0 %v2779
    %2794 = vmatmul.bf16.gmra.mxu0 %v2784
    %v2795 = vpop.f32.mrf.mxu0
    %v2796 = vadd.f32 0.0, %v2795
    %v2797 = vpop.f32.mrf.mxu0
    %v2798 = vadd.f32 0.0, %v2797
    %2799 = vdwg.mxu0
    %v2804 = vunpack.c.l.b16 %v2335
    %v2805 = vunpack.c.l.b16 %v2336
    %v2806 = vunpack.c.l.b16 %v2337
    %v2807 = vunpack.c.l.b16 %v2338
    %v2808 = vpack.c.b16 %v2805, %v2804
    %v2809 = vpack.c.b16 %v2807, %v2806
    %v2813 = vsel %vm1298, %v2641, 0
    %2815 = vmatpush.bf16.msra.mxu0 0
    %2816 = vmatpush.bf16.msra.mxu0 0
    %2817 = vmatpush.bf16.msra.mxu0 0
    %2818 = vmatpush.bf16.msra.mxu0 0
    %2819 = vmatpush.bf16.msra.mxu0 0
    %2820 = vmatpush.bf16.msra.mxu0 0
    %2821 = vmatpush.bf16.msra.mxu0 %v2809
    %2822 = vmatpush.bf16.msra.mxu0 %v2808
    %2823 = vmatmul.bf16.gmra.mxu0 %v2813
    %v2824 = vpop.f32.mrf.mxu0
    %v2825 = vadd.f32 %v2796, %v2824
    %v2826 = vpop.f32.mrf.mxu0
    %v2827 = vadd.f32 %v2798, %v2826
    %2828 = vdwg.mxu0
    %2829 = vrot.lane.b32.xlu0 %v2643, 64
    %v2830 = vpop.permute.xlu0 %2829
    %2831 = vrot.lane.b32.xlu0 %v2647, 64
    %v2832 = vpop.permute.xlu0 %2831
    %v2834 = vsel %vm1298, %v2830, 0
    %v2837 = vsel %vm1298, %v2832, 0
    %2839 = vmatpush.bf16.xpose.msra.mxu0 0
    %2840 = vmatpush.bf16.xpose.msra.mxu0 0
    %2841 = vmatpush.bf16.xpose.msra.mxu0 0
    %2842 = vmatpush.bf16.xpose.msra.mxu0 0
    %2843 = vmatpush.bf16.xpose.msra.mxu0 0
    %2844 = vmatpush.bf16.xpose.msra.mxu0 0
    %2845 = vmatpush.bf16.xpose.msra.mxu0 0
    %2846 = vmatpush.bf16.xpose.msra.mxu0 %v2837
    %2847 = vmatmul.bf16.gmra.mxu0 %v2834
    %v2848 = vpop.f32.mrf.mxu0
    %v2849 = vadd.f32 0.0, %v2848
    %v2850 = vpop.f32.mrf.mxu0
    %2851 = vdwg.mxu0
    %2852 = vrot.lane.b32.xlu0 %v2670, 64
    %v2853 = vpop.permute.xlu0 %2852
    %2854 = vrot.lane.b32.xlu0 %v2674, 64
    %v2855 = vpop.permute.xlu0 %2854
    %v2857 = vsel %vm1298, %v2853, 0
    %v2860 = vsel %vm1298, %v2855, 0
    %2862 = vmatpush.bf16.xpose.msra.mxu0 0
    %2863 = vmatpush.bf16.xpose.msra.mxu0 0
    %2864 = vmatpush.bf16.xpose.msra.mxu0 0
    %2865 = vmatpush.bf16.xpose.msra.mxu0 0
    %2866 = vmatpush.bf16.xpose.msra.mxu0 0
    %2867 = vmatpush.bf16.xpose.msra.mxu0 0
    %2868 = vmatpush.bf16.xpose.msra.mxu0 0
    %2869 = vmatpush.bf16.xpose.msra.mxu0 %v2860
    %2870 = vmatmul.bf16.gmra.mxu0 %v2857
    %v2871 = vpop.f32.mrf.mxu0
    %v2872 = vadd.f32 0.0, %v2871
    %v2873 = vpop.f32.mrf.mxu0
    %2874 = vdwg.mxu0
    %v2875 = vmul.f32 %v2849, 0.17677669
    %v2876 = vmul.f32 %v2872, 0.17677669
    %v2877 = vsel %vm1339, %v2875, -inf
    %2878 = vmax.xlane.f32.xlu0 %v2877
    %v2879 = vpop.xlane.xlu0 %2878
    %v2880 = vsel %vm1339, %v2876, -inf
    %2881 = vmax.xlane.f32.xlu0 %v2880
    %v2882 = vpop.xlane.xlu0 %2881
    %v2883 = vsub.f32 %v2875, %v2879
    %v2884 = vsub.f32 %v2876, %v2882
    %v2885 = vmul.f32 %v2883, 1.442695
    %v2886 = vpow.pop %v2885
    %v2887 = vmul.f32 %v2884, 1.442695
    %v2888 = vpow.pop %v2887
    %v2889 = vsel %vm1339, %v2886, 0.0
    %2890 = vadd.xlane.f32.xlu0 %v2889
    %v2891 = vpop.xlane.xlu0 %2890
    %v2892 = vsel %vm1339, %v2888, 0.0
    %2893 = vadd.xlane.f32.xlu0 %v2892
    %v2894 = vpop.xlane.xlu0 %2893
    %v2895 = vrcp.pop %v2891
    %v2896 = vrcp.pop %v2894
    %v2897 = vmul.f32 %v2886, %v2895
    %v2898 = vmul.f32 %v2888, %v2896
    %v2899 = vpack.c.bf16 %v2897, %v2897
    %v2900 = vpack.c.bf16 %v2898, %v2898
    %2901 = vrot.lane.b32.xlu0 %v2724, 64
    %v2902 = vpop.permute.xlu0 %2901
    %v2904 = vsel %vm1339, %v2899, 0
    %v2907 = vsel %vm1367, %v2902, 0
    %2909 = vmatpush.bf16.msra.mxu0 0
    %2910 = vmatpush.bf16.msra.mxu0 0
    %2911 = vmatpush.bf16.msra.mxu0 0
    %2912 = vmatpush.bf16.msra.mxu0 0
    %2913 = vmatpush.bf16.msra.mxu0 0
    %2914 = vmatpush.bf16.msra.mxu0 0
    %2915 = vmatpush.bf16.msra.mxu0 0
    %2916 = vmatpush.bf16.msra.mxu0 %v2907
    %2917 = vmatmul.bf16.gmra.mxu0 %v2904
    %v2918 = vpop.f32.mrf.mxu0
    %v2919 = vadd.f32 0.0, %v2918
    %v2920 = vpop.f32.mrf.mxu0
    %2921 = vdwg.mxu0
    %2922 = vrot.lane.b32.xlu0 %v2748, 64
    %v2923 = vpop.permute.xlu0 %2922
    %v2925 = vsel %vm1339, %v2900, 0
    %v2928 = vsel %vm1367, %v2923, 0
    %2930 = vmatpush.bf16.msra.mxu0 0
    %2931 = vmatpush.bf16.msra.mxu0 0
    %2932 = vmatpush.bf16.msra.mxu0 0
    %2933 = vmatpush.bf16.msra.mxu0 0
    %2934 = vmatpush.bf16.msra.mxu0 0
    %2935 = vmatpush.bf16.msra.mxu0 0
    %2936 = vmatpush.bf16.msra.mxu0 0
    %2937 = vmatpush.bf16.msra.mxu0 %v2928
    %2938 = vmatmul.bf16.gmra.mxu0 %v2925
    %v2939 = vpop.f32.mrf.mxu0
    %v2940 = vadd.f32 0.0, %v2939
    %v2941 = vpop.f32.mrf.mxu0
    %2942 = vdwg.mxu0
    %v2943 = vpack.c.bf16 %v2940, %v2919
    %v2948 = vunpack.c.l.b16 %v2343
    %v2949 = vunpack.c.l.b16 %v2344
    %v2950 = vunpack.c.l.b16 %v2345
    %v2951 = vunpack.c.l.b16 %v2346
    %v2952 = vpack.c.b16 %v2949, %v2948
    %v2953 = vpack.c.b16 %v2951, %v2950
    %v2957 = vsel %vm1298, %v2943, 0
    %2959 = vmatpush.bf16.msra.mxu0 0
    %2960 = vmatpush.bf16.msra.mxu0 0
    %2961 = vmatpush.bf16.msra.mxu0 0
    %2962 = vmatpush.bf16.msra.mxu0 0
    %2963 = vmatpush.bf16.msra.mxu0 0
    %2964 = vmatpush.bf16.msra.mxu0 0
    %2965 = vmatpush.bf16.msra.mxu0 %v2953
    %2966 = vmatpush.bf16.msra.mxu0 %v2952
    %2967 = vmatmul.bf16.gmra.mxu0 %v2957
    %v2968 = vpop.f32.mrf.mxu0
    %v2969 = vadd.f32 0.0, %v2968
    %v2970 = vpop.f32.mrf.mxu0
    %v2971 = vadd.f32 0.0, %v2970
    %2972 = vdwg.mxu0
    %v2973 = vadd.f32 %v2825, %v2969
    %v2974 = vadd.f32 %v2827, %v2971
    %2975 = vrot.lane.b32.xlu0 %v2643, 32
    %v2976 = vpop.permute.xlu0 %2975
    %2977 = vrot.lane.b32.xlu0 %v2647, 32
    %v2978 = vpop.permute.xlu0 %2977
    %v2980 = vsel %vm1298, %v2976, 0
    %v2983 = vsel %vm1298, %v2978, 0
    %2985 = vmatpush.bf16.xpose.msra.mxu0 0
    %2986 = vmatpush.bf16.xpose.msra.mxu0 0
    %2987 = vmatpush.bf16.xpose.msra.mxu0 0
    %2988 = vmatpush.bf16.xpose.msra.mxu0 0
    %2989 = vmatpush.bf16.xpose.msra.mxu0 0
    %2990 = vmatpush.bf16.xpose.msra.mxu0 0
    %2991 = vmatpush.bf16.xpose.msra.mxu0 0
    %2992 = vmatpush.bf16.xpose.msra.mxu0 %v2983
    %2993 = vmatmul.bf16.gmra.mxu0 %v2980
    %v2994 = vpop.f32.mrf.mxu0
    %v2995 = vadd.f32 0.0, %v2994
    %v2996 = vpop.f32.mrf.mxu0
    %2997 = vdwg.mxu0
    %2998 = vrot.lane.b32.xlu0 %v2670, 32
    %v2999 = vpop.permute.xlu0 %2998
    %3000 = vrot.lane.b32.xlu0 %v2674, 32
    %v3001 = vpop.permute.xlu0 %3000
    %v3003 = vsel %vm1298, %v2999, 0
    %v3006 = vsel %vm1298, %v3001, 0
    %3008 = vmatpush.bf16.xpose.msra.mxu0 0
    %3009 = vmatpush.bf16.xpose.msra.mxu0 0
    %3010 = vmatpush.bf16.xpose.msra.mxu0 0
    %3011 = vmatpush.bf16.xpose.msra.mxu0 0
    %3012 = vmatpush.bf16.xpose.msra.mxu0 0
    %3013 = vmatpush.bf16.xpose.msra.mxu0 0
    %3014 = vmatpush.bf16.xpose.msra.mxu0 0
    %3015 = vmatpush.bf16.xpose.msra.mxu0 %v3006
    %3016 = vmatmul.bf16.gmra.mxu0 %v3003
    %v3017 = vpop.f32.mrf.mxu0
    %v3018 = vadd.f32 0.0, %v3017
    %v3019 = vpop.f32.mrf.mxu0
    %3020 = vdwg.mxu0
    %v3021 = vmul.f32 %v2995, 0.17677669
    %v3022 = vmul.f32 %v3018, 0.17677669
    %v3023 = vsel %vm1339, %v3021, -inf
    %3024 = vmax.xlane.f32.xlu0 %v3023
    %v3025 = vpop.xlane.xlu0 %3024
    %v3026 = vsel %vm1339, %v3022, -inf
    %3027 = vmax.xlane.f32.xlu0 %v3026
    %v3028 = vpop.xlane.xlu0 %3027
    %v3029 = vsub.f32 %v3021, %v3025
    %v3030 = vsub.f32 %v3022, %v3028
    %v3031 = vmul.f32 %v3029, 1.442695
    %v3032 = vpow.pop %v3031
    %v3033 = vmul.f32 %v3030, 1.442695
    %v3034 = vpow.pop %v3033
    %v3035 = vsel %vm1339, %v3032, 0.0
    %3036 = vadd.xlane.f32.xlu0 %v3035
    %v3037 = vpop.xlane.xlu0 %3036
    %v3038 = vsel %vm1339, %v3034, 0.0
    %3039 = vadd.xlane.f32.xlu0 %v3038
    %v3040 = vpop.xlane.xlu0 %3039
    %v3041 = vrcp.pop %v3037
    %v3042 = vrcp.pop %v3040
    %v3043 = vmul.f32 %v3032, %v3041
    %v3044 = vmul.f32 %v3034, %v3042
    %v3045 = vpack.c.bf16 %v3043, %v3043
    %v3046 = vpack.c.bf16 %v3044, %v3044
    %3047 = vrot.lane.b32.xlu0 %v2724, 32
    %v3048 = vpop.permute.xlu0 %3047
    %v3050 = vsel %vm1339, %v3045, 0
    %v3053 = vsel %vm1367, %v3048, 0
    %3055 = vmatpush.bf16.msra.mxu0 0
    %3056 = vmatpush.bf16.msra.mxu0 0
    %3057 = vmatpush.bf16.msra.mxu0 0
    %3058 = vmatpush.bf16.msra.mxu0 0
    %3059 = vmatpush.bf16.msra.mxu0 0
    %3060 = vmatpush.bf16.msra.mxu0 0
    %3061 = vmatpush.bf16.msra.mxu0 0
    %3062 = vmatpush.bf16.msra.mxu0 %v3053
    %3063 = vmatmul.bf16.gmra.mxu0 %v3050
    %v3064 = vpop.f32.mrf.mxu0
    %v3065 = vadd.f32 0.0, %v3064
    %v3066 = vpop.f32.mrf.mxu0
    %3067 = vdwg.mxu0
    %3068 = vrot.lane.b32.xlu0 %v2748, 32
    %v3069 = vpop.permute.xlu0 %3068
    %v3071 = vsel %vm1339, %v3046, 0
    %v3074 = vsel %vm1367, %v3069, 0
    %3076 = vmatpush.bf16.msra.mxu0 0
    %3077 = vmatpush.bf16.msra.mxu0 0
    %3078 = vmatpush.bf16.msra.mxu0 0
    %3079 = vmatpush.bf16.msra.mxu0 0
    %3080 = vmatpush.bf16.msra.mxu0 0
    %3081 = vmatpush.bf16.msra.mxu0 0
    %3082 = vmatpush.bf16.msra.mxu0 0
    %3083 = vmatpush.bf16.msra.mxu0 %v3074
    %3084 = vmatmul.bf16.gmra.mxu0 %v3071
    %v3085 = vpop.f32.mrf.mxu0
    %v3086 = vadd.f32 0.0, %v3085
    %v3087 = vpop.f32.mrf.mxu0
    %3088 = vdwg.mxu0
    %v3089 = vpack.c.bf16 %v3086, %v3065
    %v3094 = vunpack.c.l.b16 %v2347
    %v3095 = vunpack.c.l.b16 %v2348
    %v3096 = vunpack.c.l.b16 %v2349
    %v3097 = vunpack.c.l.b16 %v2350
    %v3098 = vpack.c.b16 %v3095, %v3094
    %v3099 = vpack.c.b16 %v3097, %v3096
    %v3103 = vsel %vm1298, %v3089, 0
    %3105 = vmatpush.bf16.msra.mxu0 0
    %3106 = vmatpush.bf16.msra.mxu0 0
    %3107 = vmatpush.bf16.msra.mxu0 0
    %3108 = vmatpush.bf16.msra.mxu0 0
    %3109 = vmatpush.bf16.msra.mxu0 0
    %3110 = vmatpush.bf16.msra.mxu0 0
    %3111 = vmatpush.bf16.msra.mxu0 %v3099
    %3112 = vmatpush.bf16.msra.mxu0 %v3098
    %3113 = vmatmul.bf16.gmra.mxu0 %v3103
    %v3114 = vpop.f32.mrf.mxu0
    %v3115 = vadd.f32 0.0, %v3114
    %v3116 = vpop.f32.mrf.mxu0
    %v3117 = vadd.f32 0.0, %v3116
    %3118 = vdwg.mxu0
    %v3119 = vadd.f32 %v2973, %v3115
    %v3120 = vadd.f32 %v2974, %v3117
    %s3121 = scalar_lea.vmem [#allocation17], 1
    %v3122 = vld [vmem:[%s3121] sm:$0x1]
    %v3124 = vperm.slane %v3122, 0
    %v3126 = vadd.f32 %v3119, %v3124
    %v3127 = vadd.f32 %v3120, %v3124
    %v3128 = vadd.f32 %v2299, %v3126
    %v3129 = vadd.f32 %v2300, %v3127
    %s3130 = scalar_lea.vmem [#allocation25], 1
    %v3131 = vld [vmem:[%s3130] sm:$0x1]
    %s3132 = scalar_lea.vmem [#allocation26], 1
    %v3133 = vld [vmem:[%s3132] sm:$0x1]
    %3134 = vadd.xlane.f32.xlu0 %v3128
    %v3135 = vpop.xlane.xlu0 %3134
    %3136 = vadd.xlane.f32.xlu0 %v3129
    %v3137 = vpop.xlane.xlu0 %3136
    %v3138 = vmul.f32 %v3135, %v1903
    %v3139 = vmul.f32 %v3137, %v1903
    %v3140 = vsub.f32 %v3128, %v3138
    %v3141 = vsub.f32 %v3129, %v3139
    %v3142 = vmul.f32 %v3140, %v3140
    %v3143 = vmul.f32 %v3141, %v3141
    %3144 = vadd.xlane.f32.xlu0 %v3142
    %v3145 = vpop.xlane.xlu0 %3144
    %3146 = vadd.xlane.f32.xlu0 %v3143
    %v3147 = vpop.xlane.xlu0 %3146
    %v3148 = vmul.f32 %v3145, %v1903
    %v3149 = vmul.f32 %v3147, %v1903
    %v3150 = vadd.f32 %v3148, 1e-05
    %v3151 = vadd.f32 %v3149, 1e-05
    %v3152 = vrsqrt.pop %v3150
    %v3153 = vmul.f32 %v3152, %v3150
    %v3154 = vmul.f32 %v3153, %v3152
    %v3155 = vmul.f32 0.5, %v3154
    %v3156 = vsub.f32 1.5, %v3155
    %v3157 = vmul.f32 %v3152, %v3156
    %vm3158 = vweird.f32 %v3150
    %vm3159 = vweird.f32 %v3152
    %vm3160 = vmor %vm3158, %vm3159
    %v3161 = vsel %vm3160, %v3152, %v3157
    %v3162 = vrsqrt.pop %v3151
    %v3163 = vmul.f32 %v3162, %v3151
    %v3164 = vmul.f32 %v3163, %v3162
    %v3165 = vmul.f32 0.5, %v3164
    %v3166 = vsub.f32 1.5, %v3165
    %v3167 = vmul.f32 %v3162, %v3166
    %vm3168 = vweird.f32 %v3151
    %vm3169 = vweird.f32 %v3162
    %vm3170 = vmor %vm3168, %vm3169
    %v3171 = vsel %vm3170, %v3162, %v3167
    %v3172 = vmul.f32 %v3140, %v3161
    %v3173 = vmul.f32 %v3141, %v3171
    %v3175 = vperm.slane %v3131, 0
    %v3177 = vmul.f32 %v3172, %v3175
    %v3178 = vmul.f32 %v3173, %v3175
    %v3180 = vperm.slane %v3133, 0
    %v3182 = vadd.f32 %v3177, %v3180
    %v3183 = vadd.f32 %v3178, %v3180
    %v3184 = vpack.c.bf16 %v3183, %v3182
    %s3185 = scalar_lea.vmem [#allocation19], 128
    %v3186 = vld [vmem:[%s3185] sm:$0xff]
    %v3187 = vld [vmem:[%s3185 + $0x8] sm:$0xff]
    %v3188 = vld [vmem:[%s3185 + $0x10] sm:$0xff]
    %v3189 = vld [vmem:[%s3185 + $0x18] sm:$0xff]
    %v3190 = vld [vmem:[%s3185 + $0x20] sm:$0xff]
    %v3191 = vld [vmem:[%s3185 + $0x28] sm:$0xff]
    %v3192 = vld [vmem:[%s3185 + $0x30] sm:$0xff]
    %v3193 = vld [vmem:[%s3185 + $0x38] sm:$0xff]
    %v3194 = vld [vmem:[%s3185 + $0x40] sm:$0xff]
    %v3195 = vld [vmem:[%s3185 + $0x48] sm:$0xff]
    %v3196 = vld [vmem:[%s3185 + $0x50] sm:$0xff]
    %v3197 = vld [vmem:[%s3185 + $0x58] sm:$0xff]
    %v3198 = vld [vmem:[%s3185 + $0x60] sm:$0xff]
    %v3199 = vld [vmem:[%s3185 + $0x68] sm:$0xff]
    %v3200 = vld [vmem:[%s3185 + $0x70] sm:$0xff]
    %v3201 = vld [vmem:[%s3185 + $0x78] sm:$0xff]
    %s3202 = scalar_lea.vmem [#allocation20], 2
    %v3203 = vld [vmem:[%s3202] sm:$0x3]
    %v3205 = vperm.slane %v3203, 0
    %v3206 = vperm.slane %v3203, 1
    %v3225 = vunpack.c.l.b16 %v3186
    %v3226 = vunpack.c.h.b16 %v3186
    %v3227 = vunpack.c.l.b16 %v3187
    %v3228 = vunpack.c.h.b16 %v3187
    %v3229 = vunpack.c.l.b16 %v3188
    %v3230 = vunpack.c.h.b16 %v3188
    %v3231 = vunpack.c.l.b16 %v3189
    %v3232 = vunpack.c.h.b16 %v3189
    %v3233 = vunpack.c.l.b16 %v3190
    %v3234 = vunpack.c.h.b16 %v3190
    %v3235 = vunpack.c.l.b16 %v3191
    %v3236 = vunpack.c.h.b16 %v3191
    %v3237 = vunpack.c.l.b16 %v3192
    %v3238 = vunpack.c.h.b16 %v3192
    %v3239 = vunpack.c.l.b16 %v3193
    %v3240 = vunpack.c.h.b16 %v3193
    %v3241 = vunpack.c.l.b16 %v3194
    %v3242 = vunpack.c.h.b16 %v3194
    %v3243 = vunpack.c.l.b16 %v3195
    %v3244 = vunpack.c.h.b16 %v3195
    %v3245 = vunpack.c.l.b16 %v3196
    %v3246 = vunpack.c.h.b16 %v3196
    %v3247 = vunpack.c.l.b16 %v3197
    %v3248 = vunpack.c.h.b16 %v3197
    %v3249 = vunpack.c.l.b16 %v3198
    %v3250 = vunpack.c.h.b16 %v3198
    %v3251 = vunpack.c.l.b16 %v3199
    %v3252 = vunpack.c.h.b16 %v3199
    %v3253 = vunpack.c.l.b16 %v3200
    %v3254 = vunpack.c.h.b16 %v3200
    %v3255 = vunpack.c.l.b16 %v3201
    %v3256 = vunpack.c.h.b16 %v3201
    %v3257 = vpack.c.b16 %v3227, %v3225
    %v3258 = vpack.c.b16 %v3228, %v3226
    %v3259 = vpack.c.b16 %v3231, %v3229
    %v3260 = vpack.c.b16 %v3232, %v3230
    %v3261 = vpack.c.b16 %v3235, %v3233
    %v3262 = vpack.c.b16 %v3236, %v3234
    %v3263 = vpack.c.b16 %v3239, %v3237
    %v3264 = vpack.c.b16 %v3240, %v3238
    %v3265 = vpack.c.b16 %v3243, %v3241
    %v3266 = vpack.c.b16 %v3244, %v3242
    %v3267 = vpack.c.b16 %v3247, %v3245
    %v3268 = vpack.c.b16 %v3248, %v3246
    %v3269 = vpack.c.b16 %v3251, %v3249
    %v3270 = vpack.c.b16 %v3252, %v3250
    %v3271 = vpack.c.b16 %v3255, %v3253
    %v3272 = vpack.c.b16 %v3256, %v3254
    %3289 = vmatpush.bf16.msra.mxu0 %v3271
    %3290 = vmatpush.bf16.msra.mxu0 %v3269
    %3291 = vmatpush.bf16.msra.mxu0 %v3267
    %3292 = vmatpush.bf16.msra.mxu0 %v3265
    %3293 = vmatpush.bf16.msra.mxu0 %v3263
    %3294 = vmatpush.bf16.msra.mxu0 %v3261
    %3295 = vmatpush.bf16.msra.mxu0 %v3259
    %3296 = vmatpush.bf16.msra.mxu0 %v3257
    %3297 = vmatmul.bf16.gmra.mxu0 %v3184
    %v3298 = vpop.f32.mrf.mxu0
    %v3299 = vadd.f32 %v3205, %v3298
    %v3300 = vpop.f32.mrf.mxu0
    %v3301 = vadd.f32 %v3205, %v3300
    %3302 = vdwg.mxu0
    %3303 = vmatpush.bf16.msra.mxu0 %v3272
    %3304 = vmatpush.bf16.msra.mxu0 %v3270
    %3305 = vmatpush.bf16.msra.mxu0 %v3268
    %3306 = vmatpush.bf16.msra.mxu0 %v3266
    %3307 = vmatpush.bf16.msra.mxu0 %v3264
    %3308 = vmatpush.bf16.msra.mxu0 %v3262
    %3309 = vmatpush.bf16.msra.mxu0 %v3260
    %3310 = vmatpush.bf16.msra.mxu0 %v3258
    %3311 = vmatmul.bf16.gmra.mxu0 %v3184
    %v3312 = vpop.f32.mrf.mxu0
    %v3313 = vadd.f32 %v3206, %v3312
    %v3314 = vpop.f32.mrf.mxu0
    %v3315 = vadd.f32 %v3206, %v3314
    %3316 = vdwg.mxu0
    %v3317 = vmax.f32 %v3299, 0.0
    %v3318 = vmax.f32 %v3313, 0.0
    %v3319 = vmax.f32 %v3301, 0.0
    %v3320 = vmax.f32 %v3315, 0.0
    %v3321 = vpack.c.bf16 %v3319, %v3317
    %v3322 = vpack.c.bf16 %v3320, %v3318
    %s3323 = scalar_lea.vmem [#allocation22], 128
    %v3324 = vld [vmem:[%s3323] sm:$0xf]
    %v3325 = vld [vmem:[%s3323 + $0x4] sm:$0xf]
    %v3326 = vld [vmem:[%s3323 + $0x8] sm:$0xf]
    %v3327 = vld [vmem:[%s3323 + $0xc] sm:$0xf]
    %v3328 = vld [vmem:[%s3323 + $0x10] sm:$0xf]
    %v3329 = vld [vmem:[%s3323 + $0x14] sm:$0xf]
    %v3330 = vld [vmem:[%s3323 + $0x18] sm:$0xf]
    %v3331 = vld [vmem:[%s3323 + $0x1c] sm:$0xf]
    %v3332 = vld [vmem:[%s3323 + $0x20] sm:$0xf]
    %v3333 = vld [vmem:[%s3323 + $0x24] sm:$0xf]
    %v3334 = vld [vmem:[%s3323 + $0x28] sm:$0xf]
    %v3335 = vld [vmem:[%s3323 + $0x2c] sm:$0xf]
    %v3336 = vld [vmem:[%s3323 + $0x30] sm:$0xf]
    %v3337 = vld [vmem:[%s3323 + $0x34] sm:$0xf]
    %v3338 = vld [vmem:[%s3323 + $0x38] sm:$0xf]
    %v3339 = vld [vmem:[%s3323 + $0x3c] sm:$0xf]
    %v3340 = vld [vmem:[%s3323 + $0x40] sm:$0xf]
    %v3341 = vld [vmem:[%s3323 + $0x44] sm:$0xf]
    %v3342 = vld [vmem:[%s3323 + $0x48] sm:$0xf]
    %v3343 = vld [vmem:[%s3323 + $0x4c] sm:$0xf]
    %v3344 = vld [vmem:[%s3323 + $0x50] sm:$0xf]
    %v3345 = vld [vmem:[%s3323 + $0x54] sm:$0xf]
    %v3346 = vld [vmem:[%s3323 + $0x58] sm:$0xf]
    %v3347 = vld [vmem:[%s3323 + $0x5c] sm:$0xf]
    %v3348 = vld [vmem:[%s3323 + $0x60] sm:$0xf]
    %v3349 = vld [vmem:[%s3323 + $0x64] sm:$0xf]
    %v3350 = vld [vmem:[%s3323 + $0x68] sm:$0xf]
    %v3351 = vld [vmem:[%s3323 + $0x6c] sm:$0xf]
    %v3352 = vld [vmem:[%s3323 + $0x70] sm:$0xf]
    %v3353 = vld [vmem:[%s3323 + $0x74] sm:$0xf]
    %v3354 = vld [vmem:[%s3323 + $0x78] sm:$0xf]
    %v3355 = vld [vmem:[%s3323 + $0x7c] sm:$0xf]
    %s3356 = scalar_lea.vmem [#allocation23], 1
    %v3357 = vld [vmem:[%s3356] sm:$0x1]
    %v3359 = vperm.slane %v3357, 0
    %v3393 = vunpack.c.l.b16 %v3324
    %v3394 = vunpack.c.l.b16 %v3325
    %v3395 = vunpack.c.l.b16 %v3326
    %v3396 = vunpack.c.l.b16 %v3327
    %v3397 = vunpack.c.l.b16 %v3328
    %v3398 = vunpack.c.l.b16 %v3329
    %v3399 = vunpack.c.l.b16 %v3330
    %v3400 = vunpack.c.l.b16 %v3331
    %v3401 = vunpack.c.l.b16 %v3332
    %v3402 = vunpack.c.l.b16 %v3333
    %v3403 = vunpack.c.l.b16 %v3334
    %v3404 = vunpack.c.l.b16 %v3335
    %v3405 = vunpack.c.l.b16 %v3336
    %v3406 = vunpack.c.l.b16 %v3337
    %v3407 = vunpack.c.l.b16 %v3338
    %v3408 = vunpack.c.l.b16 %v3339
    %v3409 = vunpack.c.l.b16 %v3340
    %v3410 = vunpack.c.l.b16 %v3341
    %v3411 = vunpack.c.l.b16 %v3342
    %v3412 = vunpack.c.l.b16 %v3343
    %v3413 = vunpack.c.l.b16 %v3344
    %v3414 = vunpack.c.l.b16 %v3345
    %v3415 = vunpack.c.l.b16 %v3346
    %v3416 = vunpack.c.l.b16 %v3347
    %v3417 = vunpack.c.l.b16 %v3348
    %v3418 = vunpack.c.l.b16 %v3349
    %v3419 = vunpack.c.l.b16 %v3350
    %v3420 = vunpack.c.l.b16 %v3351
    %v3421 = vunpack.c.l.b16 %v3352
    %v3422 = vunpack.c.l.b16 %v3353
    %v3423 = vunpack.c.l.b16 %v3354
    %v3424 = vunpack.c.l.b16 %v3355
    %v3425 = vpack.c.b16 %v3394, %v3393
    %v3426 = vpack.c.b16 %v3396, %v3395
    %v3427 = vpack.c.b16 %v3398, %v3397
    %v3428 = vpack.c.b16 %v3400, %v3399
    %v3429 = vpack.c.b16 %v3402, %v3401
    %v3430 = vpack.c.b16 %v3404, %v3403
    %v3431 = vpack.c.b16 %v3406, %v3405
    %v3432 = vpack.c.b16 %v3408, %v3407
    %v3433 = vpack.c.b16 %v3410, %v3409
    %v3434 = vpack.c.b16 %v3412, %v3411
    %v3435 = vpack.c.b16 %v3414, %v3413
    %v3436 = vpack.c.b16 %v3416, %v3415
    %v3437 = vpack.c.b16 %v3418, %v3417
    %v3438 = vpack.c.b16 %v3420, %v3419
    %v3439 = vpack.c.b16 %v3422, %v3421
    %v3440 = vpack.c.b16 %v3424, %v3423
    %3457 = vmatpush.bf16.msra.mxu0 %v3432
    %3458 = vmatpush.bf16.msra.mxu0 %v3431
    %3459 = vmatpush.bf16.msra.mxu0 %v3430
    %3460 = vmatpush.bf16.msra.mxu0 %v3429
    %3461 = vmatpush.bf16.msra.mxu0 %v3428
    %3462 = vmatpush.bf16.msra.mxu0 %v3427
    %3463 = vmatpush.bf16.msra.mxu0 %v3426
    %3464 = vmatpush.bf16.msra.mxu0 %v3425
    %3465 = vmatmul.bf16.gmra.mxu0 %v3321
    %v3466 = vpop.f32.mrf.mxu0
    %v3467 = vadd.f32 %v3359, %v3466
    %v3468 = vpop.f32.mrf.mxu0
    %v3469 = vadd.f32 %v3359, %v3468
    %3470 = vdwg.mxu0
    %3471 = vmatpush.bf16.msra.mxu0 %v3440
    %3472 = vmatpush.bf16.msra.mxu0 %v3439
    %3473 = vmatpush.bf16.msra.mxu0 %v3438
    %3474 = vmatpush.bf16.msra.mxu0 %v3437
    %3475 = vmatpush.bf16.msra.mxu0 %v3436
    %3476 = vmatpush.bf16.msra.mxu0 %v3435
    %3477 = vmatpush.bf16.msra.mxu0 %v3434
    %3478 = vmatpush.bf16.msra.mxu0 %v3433
    %3479 = vmatmul.bf16.gmra.mxu0 %v3322
    %v3480 = vpop.f32.mrf.mxu0
    %v3481 = vadd.f32 %v3467, %v3480
    %v3482 = vpop.f32.mrf.mxu0
    %v3483 = vadd.f32 %v3469, %v3482
    %3484 = vdwg.mxu0
    %v3485 = vadd.f32 %v3182, %v3481
    %v3486 = vadd.f32 %v3183, %v3483
    %s3487 = scalar_lea.vmem [#allocation28], 1
    %v3488 = vld [vmem:[%s3487] sm:$0x1]
    %s3489 = scalar_lea.vmem [#allocation29], 1
    %v3490 = vld [vmem:[%s3489] sm:$0x1]
    %3491 = vadd.xlane.f32.xlu0 %v3485
    %v3492 = vpop.xlane.xlu0 %3491
    %3493 = vadd.xlane.f32.xlu0 %v3486
    %v3494 = vpop.xlane.xlu0 %3493
    %v3495 = vmul.f32 %v3492, %v1903
    %v3496 = vmul.f32 %v3494, %v1903
    %v3497 = vsub.f32 %v3485, %v3495
    %v3498 = vsub.f32 %v3486, %v3496
    %v3499 = vmul.f32 %v3497, %v3497
    %v3500 = vmul.f32 %v3498, %v3498
    %3501 = vadd.xlane.f32.xlu0 %v3499
    %v3502 = vpop.xlane.xlu0 %3501
    %3503 = vadd.xlane.f32.xlu0 %v3500
    %v3504 = vpop.xlane.xlu0 %3503
    %v3505 = vmul.f32 %v3502, %v1903
    %v3506 = vmul.f32 %v3504, %v1903
    %v3507 = vadd.f32 %v3505, 1e-05
    %v3508 = vadd.f32 %v3506, 1e-05
    %v3509 = vrsqrt.pop %v3507
    %v3510 = vmul.f32 %v3509, %v3507
    %v3511 = vmul.f32 %v3510, %v3509
    %v3512 = vmul.f32 0.5, %v3511
    %v3513 = vsub.f32 1.5, %v3512
    %v3514 = vmul.f32 %v3509, %v3513
    %vm3515 = vweird.f32 %v3507
    %vm3516 = vweird.f32 %v3509
    %vm3517 = vmor %vm3515, %vm3516
    %v3518 = vsel %vm3517, %v3509, %v3514
    %v3519 = vrsqrt.pop %v3508
    %v3520 = vmul.f32 %v3519, %v3508
    %v3521 = vmul.f32 %v3520, %v3519
    %v3522 = vmul.f32 0.5, %v3521
    %v3523 = vsub.f32 1.5, %v3522
    %v3524 = vmul.f32 %v3519, %v3523
    %vm3525 = vweird.f32 %v3508
    %vm3526 = vweird.f32 %v3519
    %vm3527 = vmor %vm3525, %vm3526
    %v3528 = vsel %vm3527, %v3519, %v3524
    %v3529 = vmul.f32 %v3497, %v3518
    %v3530 = vmul.f32 %v3498, %v3528
    %v3532 = vperm.slane %v3488, 0
    %v3534 = vmul.f32 %v3529, %v3532
    %v3535 = vmul.f32 %v3530, %v3532
    %v3537 = vperm.slane %v3490, 0
    %v3539 = vadd.f32 %v3534, %v3537
    %v3540 = vadd.f32 %v3535, %v3537
    %v3541 = vrot.slane %v3539, 4
    %v3542 = vadd.f32 %v3539, %v3541
    %v3543 = vrot.slane %v3542, 2
    %v3544 = vadd.f32 %v3542, %v3543
    %v3545 = vrot.slane %v3544, 1
    %v3546 = vadd.f32 %v3544, %v3545
    %v3547 = vrot.slane %v3540, 4
    %v3548 = vadd.f32 %v3540, %v3547
    %v3549 = vrot.slane %v3548, 2
    %v3550 = vadd.f32 %v3548, %v3549
    %v3551 = vrot.slane %v3550, 1
    %v3552 = vadd.f32 %v3550, %v3551
    %v3553 = vrcp.pop 8.0
    %v3554 = vmul.f32 8.0, %v3553
    %v3555 = vsub.f32 1.0, %v3554
    %v3556 = vmul.f32 %v3553, %v3555
    %v3557 = vadd.f32 %v3553, %v3556
    %vm3558 = vweird.f32 %v3553
    %v3559 = vsel %vm3558, %v3553, %v3557
    %v3560 = vmul.f32 %v3546, %v3559
    %v3561 = vmul.f32 %v3552, %v3559
    %v3562 = vld [vmem:[#allocation31] sm:$0x1]
    %v3563 = vld [vmem:[#allocation32] sm:$0x1]
    %vm3566 = vcmask 1041409
    %v3567 = vsel %vm3566, %v3561, %v3560
    %vm3569 = vcmask 1041408
    %v3570 = vsel %vm3569, %v3567, 0.0
    %3571 = vadd.xlane.f32.xlu0 %v3570
    %v3572 = vpop.xlane.xlu0 %3571
    %v3573 = vmul.f32 %v3572, %v1903
    %v3575 = vrot.slane %v3573, 1
    %v3578 = vsub.f32 %v3560, %v3573
    %v3579 = vsub.f32 %v3561, %v3575
    %v3580 = vmul.f32 %v3578, %v3578
    %v3581 = vmul.f32 %v3579, %v3579
    %v3584 = vrot.slane %v3581, 7
    %v3585 = vsel %vm3566, %v3584, %v3580
    %v3587 = vsel %vm3569, %v3585, 0.0
    %3588 = vadd.xlane.f32.xlu0 %v3587
    %v3589 = vpop.xlane.xlu0 %3588
    %v3590 = vmul.f32 %v3589, %v1903
    %v3591 = vadd.f32 %v3590, 1e-05
    %v3592 = vrsqrt.pop %v3591
    %v3593 = vmul.f32 %v3592, %v3591
    %v3594 = vmul.f32 %v3593, %v3592
    %v3595 = vmul.f32 0.5, %v3594
    %v3596 = vsub.f32 1.5, %v3595
    %v3597 = vmul.f32 %v3592, %v3596
    %vm3598 = vweird.f32 %v3591
    %vm3599 = vweird.f32 %v3592
    %vm3600 = vmor %vm3598, %vm3599
    %v3601 = vsel %vm3600, %v3592, %v3597
    %v3603 = vrot.slane %v3601, 1
    %v3606 = vmul.f32 %v3578, %v3601
    %v3607 = vmul.f32 %v3579, %v3603
    %v3609 = vperm.slane %v3562, 0
    %v3611 = vmul.f32 %v3606, %v3609
    %v3612 = vmul.f32 %v3607, %v3609
    %v3614 = vperm.slane %v3563, 0
    %v3616 = vadd.f32 %v3611, %v3614
    %v3617 = vadd.f32 %v3612, %v3614
    %v3618 = vpack.c.bf16 %v3616, %v3616
    %v3619 = vpack.c.bf16 %v3617, %v3617
    %v3620 = vld [vmem:[#allocation34] sm:$0xf]
    %v3621 = vld [vmem:[#allocation34 + $0x4] sm:$0xf]
    %v3622 = vld [vmem:[#allocation34 + $0x8] sm:$0xf]
    %v3623 = vld [vmem:[#allocation34 + $0xc] sm:$0xf]
    %v3624 = vld [vmem:[#allocation34 + $0x10] sm:$0xf]
    %v3625 = vld [vmem:[#allocation34 + $0x14] sm:$0xf]
    %v3626 = vld [vmem:[#allocation34 + $0x18] sm:$0xf]
    %v3627 = vld [vmem:[#allocation34 + $0x1c] sm:$0xf]
    %v3628 = vld [vmem:[#allocation34 + $0x20] sm:$0xf]
    %v3629 = vld [vmem:[#allocation34 + $0x24] sm:$0xf]
    %v3630 = vld [vmem:[#allocation34 + $0x28] sm:$0xf]
    %v3631 = vld [vmem:[#allocation34 + $0x2c] sm:$0xf]
    %v3632 = vld [vmem:[#allocation34 + $0x30] sm:$0xf]
    %v3633 = vld [vmem:[#allocation34 + $0x34] sm:$0xf]
    %v3634 = vld [vmem:[#allocation34 + $0x38] sm:$0xf]
    %v3635 = vld [vmem:[#allocation34 + $0x3c] sm:$0xf]
    %v3636 = vld [vmem:[#allocation35] sm:$0x1]
    %v3638 = vperm.slane %v3636, 0
    %v3642 = vunpack.c.l.b16 %v3618
    %v3643 = vunpack.c.l.b16 %v3619
    %v3644 = vrot.slane %v3643, 7
    %v3645 = vsel %vm3566, %v3644, %v3642
    %v3646 = vpack.c.b16 %v3645, %v3645
    %v3664 = vunpack.c.l.b16 %v3620
    %v3665 = vunpack.c.l.b16 %v3621
    %v3666 = vunpack.c.l.b16 %v3622
    %v3667 = vunpack.c.l.b16 %v3623
    %v3668 = vunpack.c.l.b16 %v3624
    %v3669 = vunpack.c.l.b16 %v3625
    %v3670 = vunpack.c.l.b16 %v3626
    %v3671 = vunpack.c.l.b16 %v3627
    %v3672 = vunpack.c.l.b16 %v3628
    %v3673 = vunpack.c.l.b16 %v3629
    %v3674 = vunpack.c.l.b16 %v3630
    %v3675 = vunpack.c.l.b16 %v3631
    %v3676 = vunpack.c.l.b16 %v3632
    %v3677 = vunpack.c.l.b16 %v3633
    %v3678 = vunpack.c.l.b16 %v3634
    %v3679 = vunpack.c.l.b16 %v3635
    %v3680 = vpack.c.b16 %v3665, %v3664
    %v3681 = vpack.c.b16 %v3667, %v3666
    %v3682 = vpack.c.b16 %v3669, %v3668
    %v3683 = vpack.c.b16 %v3671, %v3670
    %v3684 = vpack.c.b16 %v3673, %v3672
    %v3685 = vpack.c.b16 %v3675, %v3674
    %v3686 = vpack.c.b16 %v3677, %v3676
    %v3687 = vpack.c.b16 %v3679, %v3678
    %3696 = vmatpush.bf16.msra.mxu0 %v3687
    %3697 = vmatpush.bf16.msra.mxu0 %v3686
    %3698 = vmatpush.bf16.msra.mxu0 %v3685
    %3699 = vmatpush.bf16.msra.mxu0 %v3684
    %3700 = vmatpush.bf16.msra.mxu0 %v3683
    %3701 = vmatpush.bf16.msra.mxu0 %v3682
    %3702 = vmatpush.bf16.msra.mxu0 %v3681
    %3703 = vmatpush.bf16.msra.mxu0 %v3680
    %3704 = vmatmul.bf16.gmra.mxu0 %v3646
    %v3705 = vpop.f32.mrf.mxu0
    %v3706 = vadd.f32 %v3638, %v3705
    %v3707 = vpop.f32.mrf.mxu0
    %3708 = vdwg.mxu0
    %3709 = vst [vmem:[#allocation37] sm:$0x3] %v3706
    // Predicated region
    $region186: #{forward.1} parent=1 // pred_check
      _
    $region187: #{forward.1} parent=1 // pred_check_branch
      %3711 = sbr.rel (0) target = $region189
    $region188: #{forward.1} parent=1 // pred_region
      %3713 = vsyncadd [#allocation4], 0
      %s3715 = sshll.u32 [#allocation37], 4
      %s3716 = int_to_ptr.vmem [resolvable:$true] %s3715
      %s3717 = sshll.u32 %s24, 4
      %s3718 = int_to_ptr.hbm [resolvable:$true] %s3717
      %3720 = dma.vmem_to_hbm [thread:$0]  %s3716, 32, %s3718, [#allocation4]
    $region189: #{forward.1} parent=1 // pred_fallthru
      _
    // Predicated region
    $region190: #{forward.1} parent=1 // pred_check
      _
    $region191: #{forward.1} parent=1 // pred_check_branch
      %3722 = sbr.rel (0) target = $region193
    $region192: #{forward.1} parent=1 // pred_region
      %3724 = dma.done [#allocation4], 32
    $region193: #{forward.1} parent=1 // pred_fallthru
      _
    %3725 = vsyncpa [#allocation3], 1
    %3726 = vsyncpa [#allocation6], 1
    %3727 = vsyncpa [#allocation9], 1
    %3728 = vsyncpa [#allocation12], 1
    %3729 = vsyncpa [#allocation15], 1
    %3730 = vsyncpa [#allocation18], 1
    %3731 = vsyncpa [#allocation21], 1
    %3732 = vsyncpa [#allocation24], 1
    %3733 = vsyncpa [#allocation27], 1
    %3734 = vsyncpa [#allocation30], 1
    %3735 = vsyncpa [#allocation33], 1
    %3736 = vsyncpa [#allocation36], 1
    %3737 = vsyncpa [#allocation4], 1

</llo_original>
